<compile_context>
chip_gen: v7x
topology: tpu7x:2x2x1
jax: 0.10.0
libtpu: 0.0.40
codegen_flags: <defaults>
</compile_context>

<pallas_src>
import jax
import jax.numpy as jnp
from jax.experimental import pallas as pl
from jax.experimental.pallas import tpu as pltpu

# ---- small config (stands in for xlm-roberta-base: 768 hidden, 12 heads, 12 layers) ----
VOCAB = 64
HIDDEN = 32
N_HEADS = 4
HEAD_DIM = HIDDEN // N_HEADS
INTERMEDIATE = 64
N_LAYERS = 2
MAX_POS = 32
N_TYPES = 2
N_LABELS = 8          # stands in for len(encode_reverse)
OUT_PAD = 128         # logits padded to a lane-dense 128-wide store
HEAD_H1, HEAD_H2 = 256, 64
LN_EPS = 1e-5
BN_EPS = 1e-5
BATCH, SEQ = 2, 8
SCALE = 1.0 / float(HEAD_DIM) ** 0.5

# NOTE: toy lane widths (32/64) are below 128, so some loads are masked; at real
# xlm-roberta sizes (768/3072) the same kernel structure becomes lane-dense.
# TODO(synk): on v5e/v6e the stacked encoder weights could be int8 (native MXU int
# path, halves per-layer DMA); not portable to v7x (fp8-only MXU), so left bf16 here.


# --------------------------------------------------------------------------------------
# helpers used inside the kernel
# --------------------------------------------------------------------------------------
def _mish(x):
    return x * jnp.tanh(jax.nn.softplus(x))


def _gelu(x):
    # TODO(synk): tanh approximation; xlm-roberta uses exact (erf) GELU -> tiny drift.
    return 0.5 * x * (1.0 + jnp.tanh(0.7978845608028654 * (x + 0.044715 * x * x * x)))


def _layernorm(x, g, b):
    x = x.astype(jnp.float32)
    mu = jnp.mean(x, axis=-1, keepdims=True)
    var = jnp.mean(jnp.square(x - mu), axis=-1, keepdims=True)
    return (x - mu) * jax.lax.rsqrt(var + LN_EPS) * g + b


def _bf16_dot(a, w_bf16, bias=None):
    out = jnp.dot(a.astype(jnp.bfloat16), w_bf16, preferred_element_type=jnp.float32)
    if bias is not None:
        out = out + bias
    return out


# --------------------------------------------------------------------------------------
# fused per-(batch-row, layer) kernel body
# --------------------------------------------------------------------------------------
def _mybert_kernel(
    emb_ref, mask_ref, eg_ref, eb_ref,
    wqkv_ref, bqkv_ref, wo_ref, bo_ref, ln1g_ref, ln1b_ref,
    w1_ref, b1_ref, w2_ref, b2_ref, ln2g_ref, ln2b_ref,
    wp_ref, bp_ref,
    hw1_ref, hb1_ref, hs1_ref, hsh1_ref,
    hw2_ref, hb2_ref, hs2_ref, hsh2_ref,
    hw3_ref, hb3_ref,
    out_ref,
    h_ref,                      # VMEM scratch [S, H] bf16: resident residual stream
):
    l = pl.program_id(1)

    # ---- embedding LayerNorm, only on the first layer step of this batch row ----
    @pl.when(l == 0)
    def _():
        h_ref[...] = _layernorm(emb_ref[...], eg_ref[...], eb_ref[...]).astype(jnp.bfloat16)

    x = h_ref[...]                                   # [S, H] bf16
    x_f32 = x.astype(jnp.float32)
    mask = mask_ref[...]                             # [1, S] additive key mask

    # fused QKV projection: one lane-dense [S, 3H] matmul
    qkv = _bf16_dot(x, wqkv_ref[...], bqkv_ref[...])           # [S, 3H] f32

    # multi-head self-attention; WO fused into the head loop (no ctx scratch,
    # no sub-128-lane masked stores)
    attn_out = None
    for hh in range(N_HEADS):                        # short fixed unroll (12 at real size)
        c0 = hh * HEAD_DIM
        qh = qkv[:, c0:c0 + HEAD_DIM]
        kh = qkv[:, HIDDEN + c0:HIDDEN + c0 + HEAD_DIM]
        vh = qkv[:, 2 * HIDDEN + c0:2 * HIDDEN + c0 + HEAD_DIM]
        s = jax.lax.dot_general(
            qh.astype(jnp.bfloat16), kh.astype(jnp.bfloat16),
            (((1,), (1,)), ((), ())),
            preferred_element_type=jnp.float32) * SCALE          # [S, S]
        s = s + mask
        s = s - jnp.max(s, axis=-1, keepdims=True)
        p = jnp.exp(s)
        p = p * pl.reciprocal(jnp.sum(p, axis=-1, keepdims=True), approx=True)
        ctx_h = jnp.dot(p.astype(jnp.bfloat16), vh.astype(jnp.bfloat16),
                        preferred_element_type=jnp.float32)      # [S, D]
        contrib = jnp.dot(ctx_h.astype(jnp.bfloat16),
                          wo_ref[c0:c0 + HEAD_DIM, :],
                          preferred_element_type=jnp.float32)    # [S, H]
        attn_out = contrib if attn_out is None else attn_out + contrib
    attn_out = attn_out + bo_ref[...]

    h1 = _layernorm(attn_out + x_f32, ln1g_ref[...], ln1b_ref[...])

    ff = _gelu(_bf16_dot(h1, w1_ref[...], b1_ref[...]))          # [S, I]
    ff = _bf16_dot(ff, w2_ref[...], b2_ref[...])                 # [S, H]
    h_new = _layernorm(ff + h1, ln2g_ref[...], ln2b_ref[...])
    h_ref[...] = h_new.astype(jnp.bfloat16)

    # ---- pooler + multilabel head, only on the last layer step ----
    @pl.when(l == pl.num_programs(1) - 1)
    def _():
        cls = h_new[0:1, :]                          # CLS row of this batch element
        pooled = jnp.tanh(_bf16_dot(cls, wp_ref[...], bp_ref[...]))
        # TODO(synk): Dropout(0.1) treated as identity (inference semantics).
        z = _mish(_bf16_dot(pooled, hw1_ref[...], hb1_ref[...]))
        z = z * hs1_ref[...] + hsh1_ref[...]         # eval-mode BatchNorm1d (folded)
        z = _mish(_bf16_dot(z, hw2_ref[...], hb2_ref[...]))
        z = z * hs2_ref[...] + hsh2_ref[...]
        out_ref[...] = _bf16_dot(z, hw3_ref[...], hb3_ref[...])   # [1, OUT_PAD]


# --------------------------------------------------------------------------------------
# BlockSpec helpers
# --------------------------------------------------------------------------------------
def _resident(shape):
    """Weight resident across the whole grid (block index constant)."""
    n = len(shape)
    return pl.BlockSpec(shape, lambda b, l, _n=n: (0,) * _n)


def _per_layer(shape):
    """Stacked [L, ...] weight: squeeze the layer axis, pipeline over the l grid axis."""
    n = len(shape) - 1
    return pl.BlockSpec((None,) + tuple(shape[1:]),
                        lambda b, l, _n=n: (l,) + (0,) * _n)


def _per_batch(shape):
    """[B, ...] data: squeeze the batch axis, indexed by the parallel b grid axis."""
    n = len(shape) - 1
    return pl.BlockSpec((None,) + tuple(shape[1:]),
                        lambda b, l, _n=n: (b,) + (0,) * _n)


# --------------------------------------------------------------------------------------
# parameter packing (stack per-layer, fuse QKV, bf16 weights, fold BN, pad logits)
# --------------------------------------------------------------------------------------
def pack_params(params):
    Ls = params["layers"]
    bf, f32 = jnp.bfloat16, jnp.float32
    stack = lambda name: jnp.stack([lp[name] for lp in Ls])

    wqkv = jnp.stack([jnp.concatenate([lp["wq"], lp["wk"], lp["wv"]], axis=1)
                      for lp in Ls]).astype(bf)                      # [L, H, 3H]
    bqkv = jnp.stack([jnp.concatenate([lp["bq"], lp["bk"], lp["bv"]])
                      for lp in Ls])[:, None, :].astype(f32)         # [L, 1, 3H]

    hp = params["head"]
    s1 = hp["g1"] / jnp.sqrt(hp["rv1"] + BN_EPS)
    sh1 = hp["be1"] - hp["rm1"] * s1
    s2 = hp["g2"] / jnp.sqrt(hp["rv2"] + BN_EPS)
    sh2 = hp["be2"] - hp["rm2"] * s2

    # pad the final projection to a lane-dense 128-wide output
    w3p = jnp.zeros((HEAD_H2, OUT_PAD), f32).at[:, :N_LABELS].set(hp["w3"])
    b3p = jnp.zeros((1, OUT_PAD), f32).at[0, :N_LABELS].set(hp["b3"])

    return (
        params["emb_ln_g"].reshape(1, HIDDEN).astype(f32),
        params["emb_ln_b"].reshape(1, HIDDEN).astype(f32),
        wqkv, bqkv,
        stack("wo").astype(bf), stack("bo")[:, None, :].astype(f32),
        stack("ln1_g")[:, None, :].astype(f32), stack("ln1_b")[:, None, :].astype(f32),
        stack("w1").astype(bf), stack("b1")[:, None, :].astype(f32),
        stack("w2").astype(bf), stack("b2")[:, None, :].astype(f32),
        stack("ln2_g")[:, None, :].astype(f32), stack("ln2_b")[:, None, :].astype(f32),
        params["wp"].astype(bf), params["bp"].reshape(1, HIDDEN).astype(f32),
        hp["w1"].astype(bf), hp["b1"].reshape(1, -1).astype(f32),
        s1.reshape(1, -1).astype(f32), sh1.reshape(1, -1).astype(f32),
        hp["w2"].astype(bf), hp["b2"].reshape(1, -1).astype(f32),
        s2.reshape(1, -1).astype(f32), sh2.reshape(1, -1).astype(f32),
        w3p.astype(bf), b3p,
    )


# --------------------------------------------------------------------------------------
# pallas_call wrapper
# --------------------------------------------------------------------------------------
def my_bert_forward(params, input_ids, attention_mask, token_type_ids):
    B, S = input_ids.shape
    # TODO(synk): embedding gather left in XLA glue; at real sizes it could be fused via
    # PrefetchScalarGridSpec (input_ids scalar-prefetch) + pl.Element row-gather.
    emb = (params["word_emb"][input_ids]
           + params["pos_emb"][jnp.arange(S)][None, :, :]
           + params["type_emb"][token_type_ids]).astype(jnp.float32)          # [B, S, H]
    add_mask = ((1.0 - attention_mask.astype(jnp.float32)) * -1e9)[:, None, :]  # [B,1,S]

    args = (emb, add_mask) + pack_params(params)

    L, H, I = N_LAYERS, HIDDEN, INTERMEDIATE
    in_specs = [
        _per_batch((B, S, H)),                                  # emb
        _per_batch((B, 1, S)),                                  # additive mask
        _resident((1, H)), _resident((1, H)),                   # emb LN g, b
        _per_layer((L, H, 3 * H)), _per_layer((L, 1, 3 * H)),   # wqkv, bqkv
        _per_layer((L, H, H)), _per_layer((L, 1, H)),           # wo, bo
        _per_layer((L, 1, H)), _per_layer((L, 1, H)),           # ln1 g, b
        _per_layer((L, H, I)), _per_layer((L, 1, I)),           # w1, b1
        _per_layer((L, I, H)), _per_layer((L, 1, H)),           # w2, b2
        _per_layer((L, 1, H)), _per_layer((L, 1, H)),           # ln2 g, b
        _resident((H, H)), _resident((1, H)),                   # pooler
        _resident((H, HEAD_H1)), _resident((1, HEAD_H1)),       # head L1
        _resident((1, HEAD_H1)), _resident((1, HEAD_H1)),       # BN1 scale/shift
        _resident((HEAD_H1, HEAD_H2)), _resident((1, HEAD_H2)), # head L2
        _resident((1, HEAD_H2)), _resident((1, HEAD_H2)),       # BN2 scale/shift
        _resident((HEAD_H2, OUT_PAD)), _resident((1, OUT_PAD)), # head L3 (padded)
    ]

    out_shape = jax.ShapeDtypeStruct((B, 1, OUT_PAD), jnp.float32)

    out = pl.pallas_call(
        _mybert_kernel,
        out_shape=out_shape,
        grid=(B, N_LAYERS),
        in_specs=in_specs,
        out_specs=_per_batch((B, 1, OUT_PAD)),
        scratch_shapes=[pltpu.VMEM((S, H), jnp.bfloat16)],       # resident hidden state
        compiler_params=pltpu.CompilerParams(
            # batch rows shard across v7x's two TensorCores; layers are sequential
            dimension_semantics=("parallel", "arbitrary"),
            # per-layer bf16 weight block + double buffer + activations fits easily;
            # at real xlm-roberta sizes (~28 MB double-buffered / layer) this stays
            # under the 64 MiB v7x VMEM cap.
            vmem_limit_bytes=32 * 1024 * 1024),
    )(*args)
    return out[:, 0, :N_LABELS]


# --------------------------------------------------------------------------------------
# parameters
# --------------------------------------------------------------------------------------
def init_params(key):
    def nrm(k, shape, scale=0.02):
        return scale * jax.random.normal(k, shape, jnp.float32)

    keys = iter(jax.random.split(key, 128))
    params = {
        "word_emb": nrm(next(keys), (VOCAB, HIDDEN)),
        "pos_emb": nrm(next(keys), (MAX_POS, HIDDEN)),
        "type_emb": nrm(next(keys), (N_TYPES, HIDDEN)),
        "emb_ln_g": jnp.ones((HIDDEN,), jnp.float32),
        "emb_ln_b": jnp.zeros((HIDDEN,), jnp.float32),
        "layers": [],
        "wp": nrm(next(keys), (HIDDEN, HIDDEN)),
        "bp": jnp.zeros((HIDDEN,), jnp.float32),
        "head": {
            "w1": nrm(next(keys), (HIDDEN, HEAD_H1)),
            "b1": jnp.zeros((HEAD_H1,), jnp.float32),
            "g1": jnp.ones((HEAD_H1,), jnp.float32),
            "be1": jnp.zeros((HEAD_H1,), jnp.float32),
            "rm1": jnp.zeros((HEAD_H1,), jnp.float32),   # BN running mean (eval mode)
            "rv1": jnp.ones((HEAD_H1,), jnp.float32),    # BN running var
            "w2": nrm(next(keys), (HEAD_H1, HEAD_H2)),
            "b2": jnp.zeros((HEAD_H2,), jnp.float32),
            "g2": jnp.ones((HEAD_H2,), jnp.float32),
            "be2": jnp.zeros((HEAD_H2,), jnp.float32),
            "rm2": jnp.zeros((HEAD_H2,), jnp.float32),
            "rv2": jnp.ones((HEAD_H2,), jnp.float32),
            "w3": nrm(next(keys), (HEAD_H2, N_LABELS)),
            "b3": jnp.zeros((N_LABELS,), jnp.float32),
        },
    }
    for _ in range(N_LAYERS):
        params["layers"].append({
            "wq": nrm(next(keys), (HIDDEN, HIDDEN)), "bq": jnp.zeros((HIDDEN,), jnp.float32),
            "wk": nrm(next(keys), (HIDDEN, HIDDEN)), "bk": jnp.zeros((HIDDEN,), jnp.float32),
            "wv": nrm(next(keys), (HIDDEN, HIDDEN)), "bv": jnp.zeros((HIDDEN,), jnp.float32),
            "wo": nrm(next(keys), (HIDDEN, HIDDEN)), "bo": jnp.zeros((HIDDEN,), jnp.float32),
            "ln1_g": jnp.ones((HIDDEN,), jnp.float32), "ln1_b": jnp.zeros((HIDDEN,), jnp.float32),
            "w1": nrm(next(keys), (HIDDEN, INTERMEDIATE)), "b1": jnp.zeros((INTERMEDIATE,), jnp.float32),
            "w2": nrm(next(keys), (INTERMEDIATE, HIDDEN)), "b2": jnp.zeros((HIDDEN,), jnp.float32),
            "ln2_g": jnp.ones((HIDDEN,), jnp.float32), "ln2_b": jnp.zeros((HIDDEN,), jnp.float32),
        })
    return params


if __name__ == "__main__":
    key = jax.random.PRNGKey(0)
    pkey, ikey = jax.random.split(key)
    params = init_params(pkey)

    input_ids = jax.random.randint(ikey, (BATCH, SEQ), 0, VOCAB, dtype=jnp.int32)
    attention_mask = jnp.ones((BATCH, SEQ), jnp.float32).at[1, 6:].set(0.0)
    token_type_ids = jnp.zeros((BATCH, SEQ), jnp.int32)

    forward = jax.jit(my_bert_forward)
    logits = forward(params, input_ids, attention_mask, token_type_ids)
    logits = jax.block_until_ready(logits)

    assert logits.shape == (BATCH, N_LABELS)
    assert bool(jnp.all(jnp.isfinite(logits)))
    print("KERNEL_OK")
</pallas_src>

<mosaic_0001>
module attributes {stable_mosaic.version = 11 : i64} {
  func.func @_mybert_kernel(%arg0: i32, %arg1: i32, %arg2: memref<1x8x32xf32, #tpu.memory_space<vmem>>, %arg3: memref<1x1x8xf32, #tpu.memory_space<vmem>>, %arg4: memref<1x32xf32, #tpu.memory_space<vmem>>, %arg5: memref<1x32xf32, #tpu.memory_space<vmem>>, %arg6: memref<1x32x96xbf16, #tpu.memory_space<vmem>>, %arg7: memref<1x1x96xf32, #tpu.memory_space<vmem>>, %arg8: memref<1x32x32xbf16, #tpu.memory_space<vmem>>, %arg9: memref<1x1x32xf32, #tpu.memory_space<vmem>>, %arg10: memref<1x1x32xf32, #tpu.memory_space<vmem>>, %arg11: memref<1x1x32xf32, #tpu.memory_space<vmem>>, %arg12: memref<1x32x64xbf16, #tpu.memory_space<vmem>>, %arg13: memref<1x1x64xf32, #tpu.memory_space<vmem>>, %arg14: memref<1x64x32xbf16, #tpu.memory_space<vmem>>, %arg15: memref<1x1x32xf32, #tpu.memory_space<vmem>>, %arg16: memref<1x1x32xf32, #tpu.memory_space<vmem>>, %arg17: memref<1x1x32xf32, #tpu.memory_space<vmem>>, %arg18: memref<32x32xbf16, #tpu.memory_space<vmem>>, %arg19: memref<1x32xf32, #tpu.memory_space<vmem>>, %arg20: memref<32x256xbf16, #tpu.memory_space<vmem>>, %arg21: memref<1x256xf32, #tpu.memory_space<vmem>>, %arg22: memref<1x256xf32, #tpu.memory_space<vmem>>, %arg23: memref<1x256xf32, #tpu.memory_space<vmem>>, %arg24: memref<256x64xbf16, #tpu.memory_space<vmem>>, %arg25: memref<1x64xf32, #tpu.memory_space<vmem>>, %arg26: memref<1x64xf32, #tpu.memory_space<vmem>>, %arg27: memref<1x64xf32, #tpu.memory_space<vmem>>, %arg28: memref<64x128xbf16, #tpu.memory_space<vmem>>, %arg29: memref<1x128xf32, #tpu.memory_space<vmem>>, %arg30: memref<1x1x128xf32, #tpu.memory_space<vmem>>, %arg31: memref<8x32xbf16, #tpu.memory_space<vmem>>) attributes {dimension_semantics = [#tpu.dimension_semantics<parallel>, #tpu.dimension_semantics<arbitrary>], iteration_bounds = array<i64: 2, 2>, scalar_prefetch = 0 : i64, scratch_operands = 1 : i64, tpu.core_type = #tpu.core_type<tc>, window_params = [{transform_indices = @transform_0, window_bounds = array<i64: 1, 8, 32>}, {transform_indices = @transform_1, window_bounds = array<i64: 1, 1, 8>}, {pipeline_mode = #tpu.pipeline_mode<synchronous>, transform_indices = @transform_2, window_bounds = array<i64: 1, 32>}, {pipeline_mode = #tpu.pipeline_mode<synchronous>, transform_indices = @transform_3, window_bounds = array<i64: 1, 32>}, {transform_indices = @transform_4, window_bounds = array<i64: 1, 32, 96>}, {transform_indices = @transform_5, window_bounds = array<i64: 1, 1, 96>}, {transform_indices = @transform_6, window_bounds = array<i64: 1, 32, 32>}, {transform_indices = @transform_7, window_bounds = array<i64: 1, 1, 32>}, {transform_indices = @transform_8, window_bounds = array<i64: 1, 1, 32>}, {transform_indices = @transform_9, window_bounds = array<i64: 1, 1, 32>}, {transform_indices = @transform_10, window_bounds = array<i64: 1, 32, 64>}, {transform_indices = @transform_11, window_bounds = array<i64: 1, 1, 64>}, {transform_indices = @transform_12, window_bounds = array<i64: 1, 64, 32>}, {transform_indices = @transform_13, window_bounds = array<i64: 1, 1, 32>}, {transform_indices = @transform_14, window_bounds = array<i64: 1, 1, 32>}, {transform_indices = @transform_15, window_bounds = array<i64: 1, 1, 32>}, {pipeline_mode = #tpu.pipeline_mode<synchronous>, transform_indices = @transform_16, window_bounds = array<i64: 32, 32>}, {pipeline_mode = #tpu.pipeline_mode<synchronous>, transform_indices = @transform_17, window_bounds = array<i64: 1, 32>}, {pipeline_mode = #tpu.pipeline_mode<synchronous>, transform_indices = @transform_18, window_bounds = array<i64: 32, 256>}, {pipeline_mode = #tpu.pipeline_mode<synchronous>, transform_indices = @transform_19, window_bounds = array<i64: 1, 256>}, {pipeline_mode = #tpu.pipeline_mode<synchronous>, transform_indices = @transform_20, window_bounds = array<i64: 1, 256>}, {pipeline_mode = #tpu.pipeline_mode<synchronous>, transform_indices = @transform_21, window_bounds = array<i64: 1, 256>}, {pipeline_mode = #tpu.pipeline_mode<synchronous>, transform_indices = @transform_22, window_bounds = array<i64: 256, 64>}, {pipeline_mode = #tpu.pipeline_mode<synchronous>, transform_indices = @transform_23, window_bounds = array<i64: 1, 64>}, {pipeline_mode = #tpu.pipeline_mode<synchronous>, transform_indices = @transform_24, window_bounds = array<i64: 1, 64>}, {pipeline_mode = #tpu.pipeline_mode<synchronous>, transform_indices = @transform_25, window_bounds = array<i64: 1, 64>}, {pipeline_mode = #tpu.pipeline_mode<synchronous>, transform_indices = @transform_26, window_bounds = array<i64: 64, 128>}, {pipeline_mode = #tpu.pipeline_mode<synchronous>, transform_indices = @transform_27, window_bounds = array<i64: 1, 128>}, {transform_indices = @transform_28, window_bounds = array<i64: 1, 1, 128>}]} {
    %c0_i32 = arith.constant 0 : i32
    %0 = arith.cmpi eq, %arg1, %c0_i32 : i32
    %1 = arith.extui %0 : i1 to i32
    %c0_i32_0 = arith.constant 0 : i32
    %2 = arith.cmpi ne, %1, %c0_i32_0 : i32
    scf.if %2 {
      %c0_90 = arith.constant 0 : index
      %c0_91 = arith.constant 0 : index
      %c0_92 = arith.constant 0 : index
      %217 = vector.load %arg2[%c0_90, %c0_91, %c0_92] : memref<1x8x32xf32, #tpu.memory_space<vmem>>, vector<1x8x32xf32>
      %218 = vector.shape_cast %217 : vector<1x8x32xf32> to vector<8x32xf32>
      %c0_93 = arith.constant 0 : index
      %c0_94 = arith.constant 0 : index
      %219 = vector.load %arg4[%c0_93, %c0_94] : memref<1x32xf32, #tpu.memory_space<vmem>>, vector<1x32xf32>
      %c0_95 = arith.constant 0 : index
      %c0_96 = arith.constant 0 : index
      %220 = vector.load %arg5[%c0_95, %c0_96] : memref<1x32xf32, #tpu.memory_space<vmem>>, vector<1x32xf32>
      %cst_97 = arith.constant dense<0.000000e+00> : vector<8xf32>
      %221 = vector.multi_reduction <add>, %218, %cst_97 [1] : vector<8x32xf32> to vector<8xf32>
      %222 = vector.shape_cast %221 : vector<8xf32> to vector<8x1xf32>
      %cst_98 = arith.constant 3.200000e+01 : f32
      %223 = vector.broadcast %cst_98 : f32 to vector<8x1xf32>
      %224 = arith.divf %222, %223 : vector<8x1xf32>
      %225 = vector.broadcast %224 : vector<8x1xf32> to vector<8x32xf32>
      %226 = arith.subf %218, %225 : vector<8x32xf32>
      %227 = arith.mulf %226, %226 : vector<8x32xf32>
      %cst_99 = arith.constant dense<0.000000e+00> : vector<8xf32>
      %228 = vector.multi_reduction <add>, %227, %cst_99 [1] : vector<8x32xf32> to vector<8xf32>
      %229 = vector.shape_cast %228 : vector<8xf32> to vector<8x1xf32>
      %cst_100 = arith.constant 3.200000e+01 : f32
      %230 = vector.broadcast %cst_100 : f32 to vector<8x1xf32>
      %231 = arith.divf %229, %230 : vector<8x1xf32>
      %232 = vector.broadcast %224 : vector<8x1xf32> to vector<8x32xf32>
      %233 = arith.subf %218, %232 : vector<8x32xf32>
      %cst_101 = arith.constant 9.99999974E-6 : f32
      %234 = vector.broadcast %cst_101 : f32 to vector<8x1xf32>
      %235 = arith.addf %231, %234 : vector<8x1xf32>
      %236 = math.rsqrt %235 : vector<8x1xf32>
      %237 = vector.broadcast %236 : vector<8x1xf32> to vector<8x32xf32>
      %238 = arith.mulf %233, %237 : vector<8x32xf32>
      %239 = vector.broadcast %219 : vector<1x32xf32> to vector<8x32xf32>
      %240 = arith.mulf %238, %239 : vector<8x32xf32>
      %241 = vector.broadcast %220 : vector<1x32xf32> to vector<8x32xf32>
      %242 = arith.addf %240, %241 : vector<8x32xf32>
      %243 = arith.truncf %242 : vector<8x32xf32> to vector<8x32xbf16>
      %c0_102 = arith.constant 0 : index
      %c0_103 = arith.constant 0 : index
      %244 = vector.load %arg31[%c0_102, %c0_103] : memref<8x32xbf16, #tpu.memory_space<vmem>>, vector<8x32xbf16>
      tpu.vector_store %arg31[%c0_102, %c0_103], %243 {strides = array<i32>} : memref<8x32xbf16, #tpu.memory_space<vmem>>, vector<8x32xbf16>,
    } else {
    }
    %c0 = arith.constant 0 : index
    %c0_1 = arith.constant 0 : index
    %3 = vector.load %arg31[%c0, %c0_1] : memref<8x32xbf16, #tpu.memory_space<vmem>>, vector<8x32xbf16>
    %4 = arith.extf %3 : vector<8x32xbf16> to vector<8x32xf32>
    %c0_2 = arith.constant 0 : index
    %c0_3 = arith.constant 0 : index
    %c0_4 = arith.constant 0 : index
    %5 = vector.load %arg3[%c0_2, %c0_3, %c0_4] : memref<1x1x8xf32, #tpu.memory_space<vmem>>, vector<1x1x8xf32>
    %6 = vector.shape_cast %5 : vector<1x1x8xf32> to vector<1x8xf32>
    %c0_5 = arith.constant 0 : index
    %c0_6 = arith.constant 0 : index
    %c0_7 = arith.constant 0 : index
    %7 = vector.load %arg6[%c0_5, %c0_6, %c0_7] : memref<1x32x96xbf16, #tpu.memory_space<vmem>>, vector<1x32x96xbf16>
    %8 = vector.shape_cast %7 : vector<1x32x96xbf16> to vector<32x96xbf16>
    %c0_8 = arith.constant 0 : index
    %c0_9 = arith.constant 0 : index
    %c0_10 = arith.constant 0 : index
    %9 = vector.load %arg7[%c0_8, %c0_9, %c0_10] : memref<1x1x96xf32, #tpu.memory_space<vmem>>, vector<1x1x96xf32>
    %10 = vector.shape_cast %9 : vector<1x1x96xf32> to vector<1x96xf32>
    %cst = arith.constant dense<0.000000e+00> : vector<8x96xf32>
    %11 = tpu.matmul %3, %8, %cst {dimension_numbers = #tpu.dot_dimension_numbers<[1], [0], [0], [1], [0, 0, 1, 1], [], []>} : vector<8x32xbf16>, vector<32x96xbf16>, vector<8x96xf32> -> vector<8x96xf32>
    %12 = vector.broadcast %10 : vector<1x96xf32> to vector<8x96xf32>
    %13 = arith.addf %11, %12 : vector<8x96xf32>
    %14 = vector.extract_strided_slice %13 {offsets = [0, 0], sizes = [8, 8], strides = [1, 1]} : vector<8x96xf32> to vector<8x8xf32>
    %15 = vector.extract_strided_slice %13 {offsets = [0, 32], sizes = [8, 8], strides = [1, 1]} : vector<8x96xf32> to vector<8x8xf32>
    %16 = vector.extract_strided_slice %13 {offsets = [0, 64], sizes = [8, 8], strides = [1, 1]} : vector<8x96xf32> to vector<8x8xf32>
    %17 = arith.truncf %14 : vector<8x8xf32> to vector<8x8xbf16>
    %18 = arith.truncf %15 : vector<8x8xf32> to vector<8x8xbf16>
    %cst_11 = arith.constant dense<0.000000e+00> : vector<8x8xf32>
    %19 = tpu.matmul %17, %18, %cst_11 {dimension_numbers = #tpu.dot_dimension_numbers<[1], [1], [0], [0], [0, 0, 1, 0], [], []>} : vector<8x8xbf16>, vector<8x8xbf16>, vector<8x8xf32> -> vector<8x8xf32>
    %cst_12 = arith.constant 0.353553385 : f32
    %20 = vector.broadcast %cst_12 : f32 to vector<8x8xf32>
    %21 = arith.mulf %19, %20 : vector<8x8xf32>
    %22 = vector.broadcast %6 : vector<1x8xf32> to vector<8x8xf32>
    %23 = arith.addf %21, %22 : vector<8x8xf32>
    %cst_13 = arith.constant dense<0xFF800000> : vector<8xf32>
    %24 = vector.multi_reduction <maximumf>, %23, %cst_13 [1] : vector<8x8xf32> to vector<8xf32>
    %25 = vector.shape_cast %24 : vector<8xf32> to vector<8x1xf32>
    %26 = vector.broadcast %25 : vector<8x1xf32> to vector<8x8xf32>
    %27 = arith.subf %23, %26 : vector<8x8xf32>
    %28 = math.exp %27 : vector<8x8xf32>
    %cst_14 = arith.constant dense<0.000000e+00> : vector<8xf32>
    %29 = vector.multi_reduction <add>, %28, %cst_14 [1] : vector<8x8xf32> to vector<8xf32>
    %30 = vector.shape_cast %29 : vector<8xf32> to vector<8x1xf32>
    %31 = tpu.reciprocal %30 {approx = true} : vector<8x1xf32> -> vector<8x1xf32>
    %32 = vector.broadcast %31 : vector<8x1xf32> to vector<8x8xf32>
    %33 = arith.mulf %28, %32 : vector<8x8xf32>
    %34 = arith.truncf %33 : vector<8x8xf32> to vector<8x8xbf16>
    %35 = arith.truncf %16 : vector<8x8xf32> to vector<8x8xbf16>
    %cst_15 = arith.constant dense<0.000000e+00> : vector<8x8xf32>
    %36 = tpu.matmul %34, %35, %cst_15 {dimension_numbers = #tpu.dot_dimension_numbers<[1], [0], [0], [1], [0, 0, 1, 1], [], []>} : vector<8x8xbf16>, vector<8x8xbf16>, vector<8x8xf32> -> vector<8x8xf32>
    %37 = arith.truncf %36 : vector<8x8xf32> to vector<8x8xbf16>
    %c0_16 = arith.constant 0 : index
    %c0_17 = arith.constant 0 : index
    %c0_18 = arith.constant 0 : index
    %38 = vector.load %arg8[%c0_16, %c0_17, %c0_18] : memref<1x32x32xbf16, #tpu.memory_space<vmem>>, vector<1x8x32xbf16>
    %39 = vector.shape_cast %38 : vector<1x8x32xbf16> to vector<8x32xbf16>
    %cst_19 = arith.constant dense<0.000000e+00> : vector<8x32xf32>
    %40 = tpu.matmul %37, %39, %cst_19 {dimension_numbers = #tpu.dot_dimension_numbers<[1], [0], [0], [1], [0, 0, 1, 1], [], []>} : vector<8x8xbf16>, vector<8x32xbf16>, vector<8x32xf32> -> vector<8x32xf32>
    %41 = vector.extract_strided_slice %13 {offsets = [0, 8], sizes = [8, 8], strides = [1, 1]} : vector<8x96xf32> to vector<8x8xf32>
    %42 = vector.extract_strided_slice %13 {offsets = [0, 40], sizes = [8, 8], strides = [1, 1]} : vector<8x96xf32> to vector<8x8xf32>
    %43 = vector.extract_strided_slice %13 {offsets = [0, 72], sizes = [8, 8], strides = [1, 1]} : vector<8x96xf32> to vector<8x8xf32>
    %44 = arith.truncf %41 : vector<8x8xf32> to vector<8x8xbf16>
    %45 = arith.truncf %42 : vector<8x8xf32> to vector<8x8xbf16>
    %cst_20 = arith.constant dense<0.000000e+00> : vector<8x8xf32>
    %46 = tpu.matmul %44, %45, %cst_20 {dimension_numbers = #tpu.dot_dimension_numbers<[1], [1], [0], [0], [0, 0, 1, 0], [], []>} : vector<8x8xbf16>, vector<8x8xbf16>, vector<8x8xf32> -> vector<8x8xf32>
    %cst_21 = arith.constant 0.353553385 : f32
    %47 = vector.broadcast %cst_21 : f32 to vector<8x8xf32>
    %48 = arith.mulf %46, %47 : vector<8x8xf32>
    %49 = vector.broadcast %6 : vector<1x8xf32> to vector<8x8xf32>
    %50 = arith.addf %48, %49 : vector<8x8xf32>
    %cst_22 = arith.constant dense<0xFF800000> : vector<8xf32>
    %51 = vector.multi_reduction <maximumf>, %50, %cst_22 [1] : vector<8x8xf32> to vector<8xf32>
    %52 = vector.shape_cast %51 : vector<8xf32> to vector<8x1xf32>
    %53 = vector.broadcast %52 : vector<8x1xf32> to vector<8x8xf32>
    %54 = arith.subf %50, %53 : vector<8x8xf32>
    %55 = math.exp %54 : vector<8x8xf32>
    %cst_23 = arith.constant dense<0.000000e+00> : vector<8xf32>
    %56 = vector.multi_reduction <add>, %55, %cst_23 [1] : vector<8x8xf32> to vector<8xf32>
    %57 = vector.shape_cast %56 : vector<8xf32> to vector<8x1xf32>
    %58 = tpu.reciprocal %57 {approx = true} : vector<8x1xf32> -> vector<8x1xf32>
    %59 = vector.broadcast %58 : vector<8x1xf32> to vector<8x8xf32>
    %60 = arith.mulf %55, %59 : vector<8x8xf32>
    %61 = arith.truncf %60 : vector<8x8xf32> to vector<8x8xbf16>
    %62 = arith.truncf %43 : vector<8x8xf32> to vector<8x8xbf16>
    %cst_24 = arith.constant dense<0.000000e+00> : vector<8x8xf32>
    %63 = tpu.matmul %61, %62, %cst_24 {dimension_numbers = #tpu.dot_dimension_numbers<[1], [0], [0], [1], [0, 0, 1, 1], [], []>} : vector<8x8xbf16>, vector<8x8xbf16>, vector<8x8xf32> -> vector<8x8xf32>
    %64 = arith.truncf %63 : vector<8x8xf32> to vector<8x8xbf16>
    %c0_25 = arith.constant 0 : index
    %c8 = arith.constant 8 : index
    %c0_26 = arith.constant 0 : index
    %65 = vector.load %arg8[%c0_25, %c8, %c0_26] : memref<1x32x32xbf16, #tpu.memory_space<vmem>>, vector<1x8x32xbf16>
    %66 = vector.shape_cast %65 : vector<1x8x32xbf16> to vector<8x32xbf16>
    %cst_27 = arith.constant dense<0.000000e+00> : vector<8x32xf32>
    %67 = tpu.matmul %64, %66, %cst_27 {dimension_numbers = #tpu.dot_dimension_numbers<[1], [0], [0], [1], [0, 0, 1, 1], [], []>} : vector<8x8xbf16>, vector<8x32xbf16>, vector<8x32xf32> -> vector<8x32xf32>
    %68 = arith.addf %40, %67 : vector<8x32xf32>
    %69 = vector.extract_strided_slice %13 {offsets = [0, 16], sizes = [8, 8], strides = [1, 1]} : vector<8x96xf32> to vector<8x8xf32>
    %70 = vector.extract_strided_slice %13 {offsets = [0, 48], sizes = [8, 8], strides = [1, 1]} : vector<8x96xf32> to vector<8x8xf32>
    %71 = vector.extract_strided_slice %13 {offsets = [0, 80], sizes = [8, 8], strides = [1, 1]} : vector<8x96xf32> to vector<8x8xf32>
    %72 = arith.truncf %69 : vector<8x8xf32> to vector<8x8xbf16>
    %73 = arith.truncf %70 : vector<8x8xf32> to vector<8x8xbf16>
    %cst_28 = arith.constant dense<0.000000e+00> : vector<8x8xf32>
    %74 = tpu.matmul %72, %73, %cst_28 {dimension_numbers = #tpu.dot_dimension_numbers<[1], [1], [0], [0], [0, 0, 1, 0], [], []>} : vector<8x8xbf16>, vector<8x8xbf16>, vector<8x8xf32> -> vector<8x8xf32>
    %cst_29 = arith.constant 0.353553385 : f32
    %75 = vector.broadcast %cst_29 : f32 to vector<8x8xf32>
    %76 = arith.mulf %74, %75 : vector<8x8xf32>
    %77 = vector.broadcast %6 : vector<1x8xf32> to vector<8x8xf32>
    %78 = arith.addf %76, %77 : vector<8x8xf32>
    %cst_30 = arith.constant dense<0xFF800000> : vector<8xf32>
    %79 = vector.multi_reduction <maximumf>, %78, %cst_30 [1] : vector<8x8xf32> to vector<8xf32>
    %80 = vector.shape_cast %79 : vector<8xf32> to vector<8x1xf32>
    %81 = vector.broadcast %80 : vector<8x1xf32> to vector<8x8xf32>
    %82 = arith.subf %78, %81 : vector<8x8xf32>
    %83 = math.exp %82 : vector<8x8xf32>
    %cst_31 = arith.constant dense<0.000000e+00> : vector<8xf32>
    %84 = vector.multi_reduction <add>, %83, %cst_31 [1] : vector<8x8xf32> to vector<8xf32>
    %85 = vector.shape_cast %84 : vector<8xf32> to vector<8x1xf32>
    %86 = tpu.reciprocal %85 {approx = true} : vector<8x1xf32> -> vector<8x1xf32>
    %87 = vector.broadcast %86 : vector<8x1xf32> to vector<8x8xf32>
    %88 = arith.mulf %83, %87 : vector<8x8xf32>
    %89 = arith.truncf %88 : vector<8x8xf32> to vector<8x8xbf16>
    %90 = arith.truncf %71 : vector<8x8xf32> to vector<8x8xbf16>
    %cst_32 = arith.constant dense<0.000000e+00> : vector<8x8xf32>
    %91 = tpu.matmul %89, %90, %cst_32 {dimension_numbers = #tpu.dot_dimension_numbers<[1], [0], [0], [1], [0, 0, 1, 1], [], []>} : vector<8x8xbf16>, vector<8x8xbf16>, vector<8x8xf32> -> vector<8x8xf32>
    %92 = arith.truncf %91 : vector<8x8xf32> to vector<8x8xbf16>
    %c0_33 = arith.constant 0 : index
    %c16 = arith.constant 16 : index
    %c0_34 = arith.constant 0 : index
    %93 = vector.load %arg8[%c0_33, %c16, %c0_34] : memref<1x32x32xbf16, #tpu.memory_space<vmem>>, vector<1x8x32xbf16>
    %94 = vector.shape_cast %93 : vector<1x8x32xbf16> to vector<8x32xbf16>
    %cst_35 = arith.constant dense<0.000000e+00> : vector<8x32xf32>
    %95 = tpu.matmul %92, %94, %cst_35 {dimension_numbers = #tpu.dot_dimension_numbers<[1], [0], [0], [1], [0, 0, 1, 1], [], []>} : vector<8x8xbf16>, vector<8x32xbf16>, vector<8x32xf32> -> vector<8x32xf32>
    %96 = arith.addf %68, %95 : vector<8x32xf32>
    %97 = vector.extract_strided_slice %13 {offsets = [0, 24], sizes = [8, 8], strides = [1, 1]} : vector<8x96xf32> to vector<8x8xf32>
    %98 = vector.extract_strided_slice %13 {offsets = [0, 56], sizes = [8, 8], strides = [1, 1]} : vector<8x96xf32> to vector<8x8xf32>
    %99 = vector.extract_strided_slice %13 {offsets = [0, 88], sizes = [8, 8], strides = [1, 1]} : vector<8x96xf32> to vector<8x8xf32>
    %100 = arith.truncf %97 : vector<8x8xf32> to vector<8x8xbf16>
    %101 = arith.truncf %98 : vector<8x8xf32> to vector<8x8xbf16>
    %cst_36 = arith.constant dense<0.000000e+00> : vector<8x8xf32>
    %102 = tpu.matmul %100, %101, %cst_36 {dimension_numbers = #tpu.dot_dimension_numbers<[1], [1], [0], [0], [0, 0, 1, 0], [], []>} : vector<8x8xbf16>, vector<8x8xbf16>, vector<8x8xf32> -> vector<8x8xf32>
    %cst_37 = arith.constant 0.353553385 : f32
    %103 = vector.broadcast %cst_37 : f32 to vector<8x8xf32>
    %104 = arith.mulf %102, %103 : vector<8x8xf32>
    %105 = vector.broadcast %6 : vector<1x8xf32> to vector<8x8xf32>
    %106 = arith.addf %104, %105 : vector<8x8xf32>
    %cst_38 = arith.constant dense<0xFF800000> : vector<8xf32>
    %107 = vector.multi_reduction <maximumf>, %106, %cst_38 [1] : vector<8x8xf32> to vector<8xf32>
    %108 = vector.shape_cast %107 : vector<8xf32> to vector<8x1xf32>
    %109 = vector.broadcast %108 : vector<8x1xf32> to vector<8x8xf32>
    %110 = arith.subf %106, %109 : vector<8x8xf32>
    %111 = math.exp %110 : vector<8x8xf32>
    %cst_39 = arith.constant dense<0.000000e+00> : vector<8xf32>
    %112 = vector.multi_reduction <add>, %111, %cst_39 [1] : vector<8x8xf32> to vector<8xf32>
    %113 = vector.shape_cast %112 : vector<8xf32> to vector<8x1xf32>
    %114 = tpu.reciprocal %113 {approx = true} : vector<8x1xf32> -> vector<8x1xf32>
    %115 = vector.broadcast %114 : vector<8x1xf32> to vector<8x8xf32>
    %116 = arith.mulf %111, %115 : vector<8x8xf32>
    %117 = arith.truncf %116 : vector<8x8xf32> to vector<8x8xbf16>
    %118 = arith.truncf %99 : vector<8x8xf32> to vector<8x8xbf16>
    %cst_40 = arith.constant dense<0.000000e+00> : vector<8x8xf32>
    %119 = tpu.matmul %117, %118, %cst_40 {dimension_numbers = #tpu.dot_dimension_numbers<[1], [0], [0], [1], [0, 0, 1, 1], [], []>} : vector<8x8xbf16>, vector<8x8xbf16>, vector<8x8xf32> -> vector<8x8xf32>
    %120 = arith.truncf %119 : vector<8x8xf32> to vector<8x8xbf16>
    %c0_41 = arith.constant 0 : index
    %c24 = arith.constant 24 : index
    %c0_42 = arith.constant 0 : index
    %121 = vector.load %arg8[%c0_41, %c24, %c0_42] : memref<1x32x32xbf16, #tpu.memory_space<vmem>>, vector<1x8x32xbf16>
    %122 = vector.shape_cast %121 : vector<1x8x32xbf16> to vector<8x32xbf16>
    %cst_43 = arith.constant dense<0.000000e+00> : vector<8x32xf32>
    %123 = tpu.matmul %120, %122, %cst_43 {dimension_numbers = #tpu.dot_dimension_numbers<[1], [0], [0], [1], [0, 0, 1, 1], [], []>} : vector<8x8xbf16>, vector<8x32xbf16>, vector<8x32xf32> -> vector<8x32xf32>
    %124 = arith.addf %96, %123 : vector<8x32xf32>
    %c0_44 = arith.constant 0 : index
    %c0_45 = arith.constant 0 : index
    %c0_46 = arith.constant 0 : index
    %125 = vector.load %arg9[%c0_44, %c0_45, %c0_46] : memref<1x1x32xf32, #tpu.memory_space<vmem>>, vector<1x1x32xf32>
    %126 = vector.shape_cast %125 : vector<1x1x32xf32> to vector<1x32xf32>
    %127 = vector.broadcast %126 : vector<1x32xf32> to vector<8x32xf32>
    %128 = arith.addf %124, %127 : vector<8x32xf32>
    %129 = arith.addf %128, %4 : vector<8x32xf32>
    %c0_47 = arith.constant 0 : index
    %c0_48 = arith.constant 0 : index
    %c0_49 = arith.constant 0 : index
    %130 = vector.load %arg10[%c0_47, %c0_48, %c0_49] : memref<1x1x32xf32, #tpu.memory_space<vmem>>, vector<1x1x32xf32>
    %131 = vector.shape_cast %130 : vector<1x1x32xf32> to vector<1x32xf32>
    %c0_50 = arith.constant 0 : index
    %c0_51 = arith.constant 0 : index
    %c0_52 = arith.constant 0 : index
    %132 = vector.load %arg11[%c0_50, %c0_51, %c0_52] : memref<1x1x32xf32, #tpu.memory_space<vmem>>, vector<1x1x32xf32>
    %133 = vector.shape_cast %132 : vector<1x1x32xf32> to vector<1x32xf32>
    %cst_53 = arith.constant dense<0.000000e+00> : vector<8xf32>
    %134 = vector.multi_reduction <add>, %129, %cst_53 [1] : vector<8x32xf32> to vector<8xf32>
    %135 = vector.shape_cast %134 : vector<8xf32> to vector<8x1xf32>
    %cst_54 = arith.constant 3.200000e+01 : f32
    %136 = vector.broadcast %cst_54 : f32 to vector<8x1xf32>
    %137 = arith.divf %135, %136 : vector<8x1xf32>
    %138 = vector.broadcast %137 : vector<8x1xf32> to vector<8x32xf32>
    %139 = arith.subf %129, %138 : vector<8x32xf32>
    %140 = arith.mulf %139, %139 : vector<8x32xf32>
    %cst_55 = arith.constant dense<0.000000e+00> : vector<8xf32>
    %141 = vector.multi_reduction <add>, %140, %cst_55 [1] : vector<8x32xf32> to vector<8xf32>
    %142 = vector.shape_cast %141 : vector<8xf32> to vector<8x1xf32>
    %cst_56 = arith.constant 3.200000e+01 : f32
    %143 = vector.broadcast %cst_56 : f32 to vector<8x1xf32>
    %144 = arith.divf %142, %143 : vector<8x1xf32>
    %145 = vector.broadcast %137 : vector<8x1xf32> to vector<8x32xf32>
    %146 = arith.subf %129, %145 : vector<8x32xf32>
    %cst_57 = arith.constant 9.99999974E-6 : f32
    %147 = vector.broadcast %cst_57 : f32 to vector<8x1xf32>
    %148 = arith.addf %144, %147 : vector<8x1xf32>
    %149 = math.rsqrt %148 : vector<8x1xf32>
    %150 = vector.broadcast %149 : vector<8x1xf32> to vector<8x32xf32>
    %151 = arith.mulf %146, %150 : vector<8x32xf32>
    %152 = vector.broadcast %131 : vector<1x32xf32> to vector<8x32xf32>
    %153 = arith.mulf %151, %152 : vector<8x32xf32>
    %154 = vector.broadcast %133 : vector<1x32xf32> to vector<8x32xf32>
    %155 = arith.addf %153, %154 : vector<8x32xf32>
    %c0_58 = arith.constant 0 : index
    %c0_59 = arith.constant 0 : index
    %c0_60 = arith.constant 0 : index
    %156 = vector.load %arg12[%c0_58, %c0_59, %c0_60] : memref<1x32x64xbf16, #tpu.memory_space<vmem>>, vector<1x32x64xbf16>
    %157 = vector.shape_cast %156 : vector<1x32x64xbf16> to vector<32x64xbf16>
    %c0_61 = arith.constant 0 : index
    %c0_62 = arith.constant 0 : index
    %c0_63 = arith.constant 0 : index
    %158 = vector.load %arg13[%c0_61, %c0_62, %c0_63] : memref<1x1x64xf32, #tpu.memory_space<vmem>>, vector<1x1x64xf32>
    %159 = vector.shape_cast %158 : vector<1x1x64xf32> to vector<1x64xf32>
    %160 = arith.truncf %155 : vector<8x32xf32> to vector<8x32xbf16>
    %cst_64 = arith.constant dense<0.000000e+00> : vector<8x64xf32>
    %161 = tpu.matmul %160, %157, %cst_64 {dimension_numbers = #tpu.dot_dimension_numbers<[1], [0], [0], [1], [0, 0, 1, 1], [], []>} : vector<8x32xbf16>, vector<32x64xbf16>, vector<8x64xf32> -> vector<8x64xf32>
    %162 = vector.broadcast %159 : vector<1x64xf32> to vector<8x64xf32>
    %163 = arith.addf %161, %162 : vector<8x64xf32>
    %cst_65 = arith.constant 5.000000e-01 : f32
    %164 = vector.broadcast %cst_65 : f32 to vector<8x64xf32>
    %165 = arith.mulf %164, %163 : vector<8x64xf32>
    %cst_66 = arith.constant 4.471500e-02 : f32
    %166 = vector.broadcast %cst_66 : f32 to vector<8x64xf32>
    %167 = arith.mulf %166, %163 : vector<8x64xf32>
    %168 = arith.mulf %167, %163 : vector<8x64xf32>
    %169 = arith.mulf %168, %163 : vector<8x64xf32>
    %170 = arith.addf %163, %169 : vector<8x64xf32>
    %cst_67 = arith.constant 0.797884583 : f32
    %171 = vector.broadcast %cst_67 : f32 to vector<8x64xf32>
    %172 = arith.mulf %171, %170 : vector<8x64xf32>
    %173 = math.tanh %172 : vector<8x64xf32>
    %cst_68 = arith.constant 1.000000e+00 : f32
    %174 = vector.broadcast %cst_68 : f32 to vector<8x64xf32>
    %175 = arith.addf %174, %173 : vector<8x64xf32>
    %176 = arith.mulf %165, %175 : vector<8x64xf32>
    %c0_69 = arith.constant 0 : index
    %c0_70 = arith.constant 0 : index
    %c0_71 = arith.constant 0 : index
    %177 = vector.load %arg14[%c0_69, %c0_70, %c0_71] : memref<1x64x32xbf16, #tpu.memory_space<vmem>>, vector<1x64x32xbf16>
    %178 = vector.shape_cast %177 : vector<1x64x32xbf16> to vector<64x32xbf16>
    %c0_72 = arith.constant 0 : index
    %c0_73 = arith.constant 0 : index
    %c0_74 = arith.constant 0 : index
    %179 = vector.load %arg15[%c0_72, %c0_73, %c0_74] : memref<1x1x32xf32, #tpu.memory_space<vmem>>, vector<1x1x32xf32>
    %180 = vector.shape_cast %179 : vector<1x1x32xf32> to vector<1x32xf32>
    %181 = arith.truncf %176 : vector<8x64xf32> to vector<8x64xbf16>
    %cst_75 = arith.constant dense<0.000000e+00> : vector<8x32xf32>
    %182 = tpu.matmul %181, %178, %cst_75 {dimension_numbers = #tpu.dot_dimension_numbers<[1], [0], [0], [1], [0, 0, 1, 1], [], []>} : vector<8x64xbf16>, vector<64x32xbf16>, vector<8x32xf32> -> vector<8x32xf32>
    %183 = vector.broadcast %180 : vector<1x32xf32> to vector<8x32xf32>
    %184 = arith.addf %182, %183 : vector<8x32xf32>
    %185 = arith.addf %184, %155 : vector<8x32xf32>
    %c0_76 = arith.constant 0 : index
    %c0_77 = arith.constant 0 : index
    %c0_78 = arith.constant 0 : index
    %186 = vector.load %arg16[%c0_76, %c0_77, %c0_78] : memref<1x1x32xf32, #tpu.memory_space<vmem>>, vector<1x1x32xf32>
    %187 = vector.shape_cast %186 : vector<1x1x32xf32> to vector<1x32xf32>
    %c0_79 = arith.constant 0 : index
    %c0_80 = arith.constant 0 : index
    %c0_81 = arith.constant 0 : index
    %188 = vector.load %arg17[%c0_79, %c0_80, %c0_81] : memref<1x1x32xf32, #tpu.memory_space<vmem>>, vector<1x1x32xf32>
    %189 = vector.shape_cast %188 : vector<1x1x32xf32> to vector<1x32xf32>
    %cst_82 = arith.constant dense<0.000000e+00> : vector<8xf32>
    %190 = vector.multi_reduction <add>, %185, %cst_82 [1] : vector<8x32xf32> to vector<8xf32>
    %191 = vector.shape_cast %190 : vector<8xf32> to vector<8x1xf32>
    %cst_83 = arith.constant 3.200000e+01 : f32
    %192 = vector.broadcast %cst_83 : f32 to vector<8x1xf32>
    %193 = arith.divf %191, %192 : vector<8x1xf32>
    %194 = vector.broadcast %193 : vector<8x1xf32> to vector<8x32xf32>
    %195 = arith.subf %185, %194 : vector<8x32xf32>
    %196 = arith.mulf %195, %195 : vector<8x32xf32>
    %cst_84 = arith.constant dense<0.000000e+00> : vector<8xf32>
    %197 = vector.multi_reduction <add>, %196, %cst_84 [1] : vector<8x32xf32> to vector<8xf32>
    %198 = vector.shape_cast %197 : vector<8xf32> to vector<8x1xf32>
    %cst_85 = arith.constant 3.200000e+01 : f32
    %199 = vector.broadcast %cst_85 : f32 to vector<8x1xf32>
    %200 = arith.divf %198, %199 : vector<8x1xf32>
    %201 = vector.broadcast %193 : vector<8x1xf32> to vector<8x32xf32>
    %202 = arith.subf %185, %201 : vector<8x32xf32>
    %cst_86 = arith.constant 9.99999974E-6 : f32
    %203 = vector.broadcast %cst_86 : f32 to vector<8x1xf32>
    %204 = arith.addf %200, %203 : vector<8x1xf32>
    %205 = math.rsqrt %204 : vector<8x1xf32>
    %206 = vector.broadcast %205 : vector<8x1xf32> to vector<8x32xf32>
    %207 = arith.mulf %202, %206 : vector<8x32xf32>
    %208 = vector.broadcast %187 : vector<1x32xf32> to vector<8x32xf32>
    %209 = arith.mulf %207, %208 : vector<8x32xf32>
    %210 = vector.broadcast %189 : vector<1x32xf32> to vector<8x32xf32>
    %211 = arith.addf %209, %210 : vector<8x32xf32>
    %212 = arith.truncf %211 : vector<8x32xf32> to vector<8x32xbf16>
    %c0_87 = arith.constant 0 : index
    %c0_88 = arith.constant 0 : index
    %213 = vector.load %arg31[%c0_87, %c0_88] : memref<8x32xbf16, #tpu.memory_space<vmem>>, vector<8x32xbf16>
    tpu.vector_store %arg31[%c0_87, %c0_88], %212 {strides = array<i32>} : memref<8x32xbf16, #tpu.memory_space<vmem>>, vector<8x32xbf16>,
    %c1_i32 = arith.constant 1 : i32
    %214 = arith.cmpi eq, %arg1, %c1_i32 : i32
    %215 = arith.extui %214 : i1 to i32
    %c0_i32_89 = arith.constant 0 : i32
    %216 = arith.cmpi ne, %215, %c0_i32_89 : i32
    scf.if %216 {
      %217 = vector.extract_strided_slice %211 {offsets = [0, 0], sizes = [1, 32], strides = [1, 1]} : vector<8x32xf32> to vector<1x32xf32>
      %c0_90 = arith.constant 0 : index
      %c0_91 = arith.constant 0 : index
      %218 = vector.load %arg18[%c0_90, %c0_91] : memref<32x32xbf16, #tpu.memory_space<vmem>>, vector<32x32xbf16>
      %c0_92 = arith.constant 0 : index
      %c0_93 = arith.constant 0 : index
      %219 = vector.load %arg19[%c0_92, %c0_93] : memref<1x32xf32, #tpu.memory_space<vmem>>, vector<1x32xf32>
      %220 = arith.truncf %217 : vector<1x32xf32> to vector<1x32xbf16>
      %cst_94 = arith.constant dense<0.000000e+00> : vector<1x32xf32>
      %221 = tpu.matmul %220, %218, %cst_94 {dimension_numbers = #tpu.dot_dimension_numbers<[1], [0], [0], [1], [0, 0, 1, 1], [], []>} : vector<1x32xbf16>, vector<32x32xbf16>, vector<1x32xf32> -> vector<1x32xf32>
      %222 = arith.addf %221, %219 : vector<1x32xf32>
      %223 = math.tanh %222 : vector<1x32xf32>
      %c0_95 = arith.constant 0 : index
      %c0_96 = arith.constant 0 : index
      %224 = vector.load %arg20[%c0_95, %c0_96] : memref<32x256xbf16, #tpu.memory_space<vmem>>, vector<32x256xbf16>
      %c0_97 = arith.constant 0 : index
      %c0_98 = arith.constant 0 : index
      %225 = vector.load %arg21[%c0_97, %c0_98] : memref<1x256xf32, #tpu.memory_space<vmem>>, vector<1x256xf32>
      %226 = arith.truncf %223 : vector<1x32xf32> to vector<1x32xbf16>
      %cst_99 = arith.constant dense<0.000000e+00> : vector<1x256xf32>
      %227 = tpu.matmul %226, %224, %cst_99 {dimension_numbers = #tpu.dot_dimension_numbers<[1], [0], [0], [1], [0, 0, 1, 1], [], []>} : vector<1x32xbf16>, vector<32x256xbf16>, vector<1x256xf32> -> vector<1x256xf32>
      %228 = arith.addf %227, %225 : vector<1x256xf32>
      %cst_100 = arith.constant 0.000000e+00 : f32
      %229 = vector.broadcast %cst_100 : f32 to vector<1x256xf32>
      %230 = arith.maximumf %228, %229 : vector<1x256xf32>
      %231 = vector.broadcast %cst_100 : f32 to vector<1x256xf32>
      %232 = arith.subf %228, %231 : vector<1x256xf32>
      %233 = arith.cmpf one, %232, %232 : vector<1x256xf32>
      %234 = vector.broadcast %cst_100 : f32 to vector<1x256xf32>
      %235 = arith.addf %228, %234 : vector<1x256xf32>
      %236 = math.absf %232 : vector<1x256xf32>
      %cst_101 = arith.constant 0.000000e+00 : f32
      %237 = vector.broadcast %cst_101 : f32 to vector<1x256xf32>
      %238 = arith.subf %237, %236 : vector<1x256xf32>
      %239 = math.exp %238 : vector<1x256xf32>
      %240 = math.log1p %239 : vector<1x256xf32>
      %241 = arith.addf %230, %240 : vector<1x256xf32>
      %242 = arith.select %233, %235, %241 : vector<1x256xi1>, vector<1x256xf32>
      %243 = math.tanh %242 : vector<1x256xf32>
      %244 = arith.mulf %228, %243 : vector<1x256xf32>
      %c0_102 = arith.constant 0 : index
      %c0_103 = arith.constant 0 : index
      %245 = vector.load %arg22[%c0_102, %c0_103] : memref<1x256xf32, #tpu.memory_space<vmem>>, vector<1x256xf32>
      %246 = arith.mulf %244, %245 : vector<1x256xf32>
      %c0_104 = arith.constant 0 : index
      %c0_105 = arith.constant 0 : index
      %247 = vector.load %arg23[%c0_104, %c0_105] : memref<1x256xf32, #tpu.memory_space<vmem>>, vector<1x256xf32>
      %248 = arith.addf %246, %247 : vector<1x256xf32>
      %c0_106 = arith.constant 0 : index
      %c0_107 = arith.constant 0 : index
      %249 = vector.load %arg24[%c0_106, %c0_107] : memref<256x64xbf16, #tpu.memory_space<vmem>>, vector<256x64xbf16>
      %c0_108 = arith.constant 0 : index
      %c0_109 = arith.constant 0 : index
      %250 = vector.load %arg25[%c0_108, %c0_109] : memref<1x64xf32, #tpu.memory_space<vmem>>, vector<1x64xf32>
      %251 = arith.truncf %248 : vector<1x256xf32> to vector<1x256xbf16>
      %cst_110 = arith.constant dense<0.000000e+00> : vector<1x64xf32>
      %252 = tpu.matmul %251, %249, %cst_110 {dimension_numbers = #tpu.dot_dimension_numbers<[1], [0], [0], [1], [0, 0, 1, 1], [], []>} : vector<1x256xbf16>, vector<256x64xbf16>, vector<1x64xf32> -> vector<1x64xf32>
      %253 = arith.addf %252, %250 : vector<1x64xf32>
      %cst_111 = arith.constant 0.000000e+00 : f32
      %254 = vector.broadcast %cst_111 : f32 to vector<1x64xf32>
      %255 = arith.maximumf %253, %254 : vector<1x64xf32>
      %256 = vector.broadcast %cst_111 : f32 to vector<1x64xf32>
      %257 = arith.subf %253, %256 : vector<1x64xf32>
      %258 = arith.cmpf one, %257, %257 : vector<1x64xf32>
      %259 = vector.broadcast %cst_111 : f32 to vector<1x64xf32>
      %260 = arith.addf %253, %259 : vector<1x64xf32>
      %261 = math.absf %257 : vector<1x64xf32>
      %cst_112 = arith.constant 0.000000e+00 : f32
      %262 = vector.broadcast %cst_112 : f32 to vector<1x64xf32>
      %263 = arith.subf %262, %261 : vector<1x64xf32>
      %264 = math.exp %263 : vector<1x64xf32>
      %265 = math.log1p %264 : vector<1x64xf32>
      %266 = arith.addf %255, %265 : vector<1x64xf32>
      %267 = arith.select %258, %260, %266 : vector<1x64xi1>, vector<1x64xf32>
      %268 = math.tanh %267 : vector<1x64xf32>
      %269 = arith.mulf %253, %268 : vector<1x64xf32>
      %c0_113 = arith.constant 0 : index
      %c0_114 = arith.constant 0 : index
      %270 = vector.load %arg26[%c0_113, %c0_114] : memref<1x64xf32, #tpu.memory_space<vmem>>, vector<1x64xf32>
      %271 = arith.mulf %269, %270 : vector<1x64xf32>
      %c0_115 = arith.constant 0 : index
      %c0_116 = arith.constant 0 : index
      %272 = vector.load %arg27[%c0_115, %c0_116] : memref<1x64xf32, #tpu.memory_space<vmem>>, vector<1x64xf32>
      %273 = arith.addf %271, %272 : vector<1x64xf32>
      %c0_117 = arith.constant 0 : index
      %c0_118 = arith.constant 0 : index
      %274 = vector.load %arg28[%c0_117, %c0_118] : memref<64x128xbf16, #tpu.memory_space<vmem>>, vector<64x128xbf16>
      %c0_119 = arith.constant 0 : index
      %c0_120 = arith.constant 0 : index
      %275 = vector.load %arg29[%c0_119, %c0_120] : memref<1x128xf32, #tpu.memory_space<vmem>>, vector<1x128xf32>
      %276 = arith.truncf %273 : vector<1x64xf32> to vector<1x64xbf16>
      %cst_121 = arith.constant dense<0.000000e+00> : vector<1x128xf32>
      %277 = tpu.matmul %276, %274, %cst_121 {dimension_numbers = #tpu.dot_dimension_numbers<[1], [0], [0], [1], [0, 0, 1, 1], [], []>} : vector<1x64xbf16>, vector<64x128xbf16>, vector<1x128xf32> -> vector<1x128xf32>
      %278 = arith.addf %277, %275 : vector<1x128xf32>
      %c0_122 = arith.constant 0 : index
      %c0_123 = arith.constant 0 : index
      %c0_124 = arith.constant 0 : index
      %279 = vector.load %arg30[%c0_122, %c0_123, %c0_124] : memref<1x1x128xf32, #tpu.memory_space<vmem>>, vector<1x1x128xf32>
      %280 = vector.shape_cast %279 : vector<1x1x128xf32> to vector<1x128xf32>
      %281 = vector.shape_cast %278 : vector<1x128xf32> to vector<1x1x128xf32>
      tpu.vector_store %arg30[%c0_122, %c0_123, %c0_124], %281 {strides = array<i32>} : memref<1x1x128xf32, #tpu.memory_space<vmem>>, vector<1x1x128xf32>,
    } else {
    }
    return
  }
  func.func @transform_0(%arg0: i32, %arg1: i32) -> (i32, i32, i32) {
    %c0_i32 = arith.constant 0 : i32
    %c0_i32_0 = arith.constant 0 : i32
    %c0_i32_1 = arith.constant 0 : i32
    return %arg0, %c0_i32, %c0_i32_0 : i32, i32, i32
  }
  func.func @transform_1(%arg0: i32, %arg1: i32) -> (i32, i32, i32) {
    %c0_i32 = arith.constant 0 : i32
    %c0_i32_0 = arith.constant 0 : i32
    %c0_i32_1 = arith.constant 0 : i32
    return %arg0, %c0_i32, %c0_i32_0 : i32, i32, i32
  }
  func.func @transform_2(%arg0: i32, %arg1: i32) -> (i32, i32) {
    %c0_i32 = arith.constant 0 : i32
    %c0_i32_0 = arith.constant 0 : i32
    %c0_i32_1 = arith.constant 0 : i32
    return %c0_i32, %c0_i32_0 : i32, i32
  }
  func.func @transform_3(%arg0: i32, %arg1: i32) -> (i32, i32) {
    %c0_i32 = arith.constant 0 : i32
    %c0_i32_0 = arith.constant 0 : i32
    %c0_i32_1 = arith.constant 0 : i32
    return %c0_i32, %c0_i32_0 : i32, i32
  }
  func.func @transform_4(%arg0: i32, %arg1: i32) -> (i32, i32, i32) {
    %c0_i32 = arith.constant 0 : i32
    %c0_i32_0 = arith.constant 0 : i32
    %c0_i32_1 = arith.constant 0 : i32
    return %arg1, %c0_i32, %c0_i32_0 : i32, i32, i32
  }
  func.func @transform_5(%arg0: i32, %arg1: i32) -> (i32, i32, i32) {
    %c0_i32 = arith.constant 0 : i32
    %c0_i32_0 = arith.constant 0 : i32
    %c0_i32_1 = arith.constant 0 : i32
    return %arg1, %c0_i32, %c0_i32_0 : i32, i32, i32
  }
  func.func @transform_6(%arg0: i32, %arg1: i32) -> (i32, i32, i32) {
    %c0_i32 = arith.constant 0 : i32
    %c0_i32_0 = arith.constant 0 : i32
    %c0_i32_1 = arith.constant 0 : i32
    return %arg1, %c0_i32, %c0_i32_0 : i32, i32, i32
  }
  func.func @transform_7(%arg0: i32, %arg1: i32) -> (i32, i32, i32) {
    %c0_i32 = arith.constant 0 : i32
    %c0_i32_0 = arith.constant 0 : i32
    %c0_i32_1 = arith.constant 0 : i32
    return %arg1, %c0_i32, %c0_i32_0 : i32, i32, i32
  }
  func.func @transform_8(%arg0: i32, %arg1: i32) -> (i32, i32, i32) {
    %c0_i32 = arith.constant 0 : i32
    %c0_i32_0 = arith.constant 0 : i32
    %c0_i32_1 = arith.constant 0 : i32
    return %arg1, %c0_i32, %c0_i32_0 : i32, i32, i32
  }
  func.func @transform_9(%arg0: i32, %arg1: i32) -> (i32, i32, i32) {
    %c0_i32 = arith.constant 0 : i32
    %c0_i32_0 = arith.constant 0 : i32
    %c0_i32_1 = arith.constant 0 : i32
    return %arg1, %c0_i32, %c0_i32_0 : i32, i32, i32
  }
  func.func @transform_10(%arg0: i32, %arg1: i32) -> (i32, i32, i32) {
    %c0_i32 = arith.constant 0 : i32
    %c0_i32_0 = arith.constant 0 : i32
    %c0_i32_1 = arith.constant 0 : i32
    return %arg1, %c0_i32, %c0_i32_0 : i32, i32, i32
  }
  func.func @transform_11(%arg0: i32, %arg1: i32) -> (i32, i32, i32) {
    %c0_i32 = arith.constant 0 : i32
    %c0_i32_0 = arith.constant 0 : i32
    %c0_i32_1 = arith.constant 0 : i32
    return %arg1, %c0_i32, %c0_i32_0 : i32, i32, i32
  }
  func.func @transform_12(%arg0: i32, %arg1: i32) -> (i32, i32, i32) {
    %c0_i32 = arith.constant 0 : i32
    %c0_i32_0 = arith.constant 0 : i32
    %c0_i32_1 = arith.constant 0 : i32
    return %arg1, %c0_i32, %c0_i32_0 : i32, i32, i32
  }
  func.func @transform_13(%arg0: i32, %arg1: i32) -> (i32, i32, i32) {
    %c0_i32 = arith.constant 0 : i32
    %c0_i32_0 = arith.constant 0 : i32
    %c0_i32_1 = arith.constant 0 : i32
    return %arg1, %c0_i32, %c0_i32_0 : i32, i32, i32
  }
  func.func @transform_14(%arg0: i32, %arg1: i32) -> (i32, i32, i32) {
    %c0_i32 = arith.constant 0 : i32
    %c0_i32_0 = arith.constant 0 : i32
    %c0_i32_1 = arith.constant 0 : i32
    return %arg1, %c0_i32, %c0_i32_0 : i32, i32, i32
  }
  func.func @transform_15(%arg0: i32, %arg1: i32) -> (i32, i32, i32) {
    %c0_i32 = arith.constant 0 : i32
    %c0_i32_0 = arith.constant 0 : i32
    %c0_i32_1 = arith.constant 0 : i32
    return %arg1, %c0_i32, %c0_i32_0 : i32, i32, i32
  }
  func.func @transform_16(%arg0: i32, %arg1: i32) -> (i32, i32) {
    %c0_i32 = arith.constant 0 : i32
    %c0_i32_0 = arith.constant 0 : i32
    %c0_i32_1 = arith.constant 0 : i32
    return %c0_i32, %c0_i32_0 : i32, i32
  }
  func.func @transform_17(%arg0: i32, %arg1: i32) -> (i32, i32) {
    %c0_i32 = arith.constant 0 : i32
    %c0_i32_0 = arith.constant 0 : i32
    %c0_i32_1 = arith.constant 0 : i32
    return %c0_i32, %c0_i32_0 : i32, i32
  }
  func.func @transform_18(%arg0: i32, %arg1: i32) -> (i32, i32) {
    %c0_i32 = arith.constant 0 : i32
    %c0_i32_0 = arith.constant 0 : i32
    %c0_i32_1 = arith.constant 0 : i32
    return %c0_i32, %c0_i32_0 : i32, i32
  }
  func.func @transform_19(%arg0: i32, %arg1: i32) -> (i32, i32) {
    %c0_i32 = arith.constant 0 : i32
    %c0_i32_0 = arith.constant 0 : i32
    %c0_i32_1 = arith.constant 0 : i32
    return %c0_i32, %c0_i32_0 : i32, i32
  }
  func.func @transform_20(%arg0: i32, %arg1: i32) -> (i32, i32) {
    %c0_i32 = arith.constant 0 : i32
    %c0_i32_0 = arith.constant 0 : i32
    %c0_i32_1 = arith.constant 0 : i32
    return %c0_i32, %c0_i32_0 : i32, i32
  }
  func.func @transform_21(%arg0: i32, %arg1: i32) -> (i32, i32) {
    %c0_i32 = arith.constant 0 : i32
    %c0_i32_0 = arith.constant 0 : i32
    %c0_i32_1 = arith.constant 0 : i32
    return %c0_i32, %c0_i32_0 : i32, i32
  }
  func.func @transform_22(%arg0: i32, %arg1: i32) -> (i32, i32) {
    %c0_i32 = arith.constant 0 : i32
    %c0_i32_0 = arith.constant 0 : i32
    %c0_i32_1 = arith.constant 0 : i32
    return %c0_i32, %c0_i32_0 : i32, i32
  }
  func.func @transform_23(%arg0: i32, %arg1: i32) -> (i32, i32) {
    %c0_i32 = arith.constant 0 : i32
    %c0_i32_0 = arith.constant 0 : i32
    %c0_i32_1 = arith.constant 0 : i32
    return %c0_i32, %c0_i32_0 : i32, i32
  }
  func.func @transform_24(%arg0: i32, %arg1: i32) -> (i32, i32) {
    %c0_i32 = arith.constant 0 : i32
    %c0_i32_0 = arith.constant 0 : i32
    %c0_i32_1 = arith.constant 0 : i32
    return %c0_i32, %c0_i32_0 : i32, i32
  }
  func.func @transform_25(%arg0: i32, %arg1: i32) -> (i32, i32) {
    %c0_i32 = arith.constant 0 : i32
    %c0_i32_0 = arith.constant 0 : i32
    %c0_i32_1 = arith.constant 0 : i32
    return %c0_i32, %c0_i32_0 : i32, i32
  }
  func.func @transform_26(%arg0: i32, %arg1: i32) -> (i32, i32) {
    %c0_i32 = arith.constant 0 : i32
    %c0_i32_0 = arith.constant 0 : i32
    %c0_i32_1 = arith.constant 0 : i32
    return %c0_i32, %c0_i32_0 : i32, i32
  }
  func.func @transform_27(%arg0: i32, %arg1: i32) -> (i32, i32) {
    %c0_i32 = arith.constant 0 : i32
    %c0_i32_0 = arith.constant 0 : i32
    %c0_i32_1 = arith.constant 0 : i32
    return %c0_i32, %c0_i32_0 : i32, i32
  }
  func.func @transform_28(%arg0: i32, %arg1: i32) -> (i32, i32, i32) {
    %c0_i32 = arith.constant 0 : i32
    %c0_i32_0 = arith.constant 0 : i32
    %c0_i32_1 = arith.constant 0 : i32
    return %arg0, %c0_i32, %c0_i32_0 : i32, i32, i32
  }
}

</mosaic_0001>

<llo_original>
// kernel: my_bert_forward.1
$region0: #{my_bert_forward.1}
  #allocation0 [shape = 'u32[]', space=smem, size = 0x4, offset = 0x4, fixed_abs, tag = 'smem constant byte address 0x4 - core index']
  #allocation1 [shape = 'u32[144,128]{1,0:T(1,128)}', space=vmem, size = 0x12000, scoped, tag = 'internal scratch']
  #allocation2 [shape = 'bf16[8,32]{1,0:T(8,128)(2,1)}', space=vmem, size = 0x800, scoped, tag = 'scratch operand']
  %s0 = inlined_call_operand.vmem [shape: f32[2,8,32], index: 0, kind: input, shape index: {}]
  %s1 = inlined_call_operand.vmem [shape: f32[2,1,8], index: 1, kind: input, shape index: {}]
  %s2 = inlined_call_operand.vmem [shape: f32[1,32], index: 2, kind: input, shape index: {}]
  %s3 = inlined_call_operand.vmem [shape: f32[1,32], index: 3, kind: input, shape index: {}]
  %s4 = inlined_call_operand.vmem [shape: bf16[2,32,96], index: 4, kind: input, shape index: {}]
  %s5 = inlined_call_operand.vmem [shape: f32[2,1,96], index: 5, kind: input, shape index: {}]
  %s6 = inlined_call_operand.vmem [shape: bf16[2,32,32], index: 6, kind: input, shape index: {}]
  %s7 = inlined_call_operand.vmem [shape: f32[2,1,32], index: 7, kind: input, shape index: {}]
  %s8 = inlined_call_operand.vmem [shape: f32[2,1,32], index: 8, kind: input, shape index: {}]
  %s9 = inlined_call_operand.vmem [shape: f32[2,1,32], index: 9, kind: input, shape index: {}]
  %s10 = inlined_call_operand.vmem [shape: bf16[2,32,64], index: 10, kind: input, shape index: {}]
  %s11 = inlined_call_operand.vmem [shape: f32[2,1,64], index: 11, kind: input, shape index: {}]
  %s12 = inlined_call_operand.vmem [shape: bf16[2,64,32], index: 12, kind: input, shape index: {}]
  %s13 = inlined_call_operand.vmem [shape: f32[2,1,32], index: 13, kind: input, shape index: {}]
  %s14 = inlined_call_operand.vmem [shape: f32[2,1,32], index: 14, kind: input, shape index: {}]
  %s15 = inlined_call_operand.vmem [shape: f32[2,1,32], index: 15, kind: input, shape index: {}]
  %s16 = inlined_call_operand.vmem [shape: bf16[32,32], index: 16, kind: input, shape index: {}]
  %s17 = inlined_call_operand.vmem [shape: f32[1,32], index: 17, kind: input, shape index: {}]
  %s18 = inlined_call_operand.vmem [shape: bf16[32,256], index: 18, kind: input, shape index: {}]
  %s19 = inlined_call_operand.vmem [shape: f32[1,256], index: 19, kind: input, shape index: {}]
  %s20 = inlined_call_operand.vmem [shape: f32[1,256], index: 20, kind: input, shape index: {}]
  %s21 = inlined_call_operand.vmem [shape: f32[1,256], index: 21, kind: input, shape index: {}]
  %s22 = inlined_call_operand.vmem [shape: bf16[256,64], index: 22, kind: input, shape index: {}]
  %s23 = inlined_call_operand.vmem [shape: f32[1,64], index: 23, kind: input, shape index: {}]
  %s24 = inlined_call_operand.vmem [shape: f32[1,64], index: 24, kind: input, shape index: {}]
  %s25 = inlined_call_operand.vmem [shape: f32[1,64], index: 25, kind: input, shape index: {}]
  %s26 = inlined_call_operand.vmem [shape: bf16[64,128], index: 26, kind: input, shape index: {}]
  %s27 = inlined_call_operand.vmem [shape: f32[1,128], index: 27, kind: input, shape index: {}]
  %s28 = inlined_call_operand.hbm [shape: f32[2,1,128], index: 28, kind: output, shape index: {}]
  %s29 = sld [smem:[#allocation0]]
  $region153: #{my_bert_forward.1} parent=0
    _
  %s31 = ssub.s32 1, %s29
  %s32 = scalar_select 0, %s31, %s29
  $region1: #{my_bert_forward.1} parent=0
    #allocation3 [shape = 'u8[1024]{0}', space=vmem, size = 0x400, scoped, tag = 'output window, operand 0']
    #allocation4 [shape = 's32[2]{0}', space=sflag, size = 0x8, scoped, tag = 'scoped memory for my_bert_forward.1']
    %33 = vsyncpa [#allocation4], 0
    %s34 = scalar_lea.sflag [#allocation4], 1
    %35 = vsyncpa %s34, 0
    loop: start=0, step=1, limit=6
    $region2: #{my_bert_forward.1} parent=1 // loop_pre_header
      _
    $region3: #{my_bert_forward.1} parent=1 // loop_header
      %s37 = sphi 0, %s41
      %p38 = scmp.ge.s32.totalorder %s37, 6
      %s44 = sphi 0, %s56
      %s45 = sphi 0, %s52
      %s46 = sphi 0, %s44
      %s47 = sphi 0, %s45
      %s48 = sphi 0, %s46
      %s49 = sphi 0, %s47
      %s59 = sphi 0, %s61
      %s62 = sphi 0, %s59
      %s63 = sphi 0, %s62
      %s79 = sphi 0, %s63
      %s85 = sphi 0, %s87
      %s88 = sphi 0, %s85
      %s89 = sphi 0, %s88
      %s105 = sphi 0, %s89
      %s109 = sphi 0, %s109
      %s111 = sphi 0, %s109
      %s112 = sphi 0, %s111
      %s126 = sphi 0, %s112
      %s130 = sphi 0, %s130
      %s132 = sphi 0, %s130
      %s133 = sphi 0, %s132
      %s147 = sphi 0, %s133
      %s153 = sphi 0, %s155
      %s156 = sphi 0, %s153
      %s157 = sphi 0, %s156
      %s173 = sphi 0, %s157
      %s179 = sphi 0, %s181
      %s182 = sphi 0, %s179
      %s183 = sphi 0, %s182
      %s199 = sphi 0, %s183
      %s205 = sphi 0, %s207
      %s208 = sphi 0, %s205
      %s209 = sphi 0, %s208
      %s225 = sphi 0, %s209
      %s231 = sphi 0, %s233
      %s234 = sphi 0, %s231
      %s235 = sphi 0, %s234
      %s251 = sphi 0, %s235
      %s257 = sphi 0, %s259
      %s260 = sphi 0, %s257
      %s261 = sphi 0, %s260
      %s277 = sphi 0, %s261
      %s283 = sphi 0, %s285
      %s286 = sphi 0, %s283
      %s287 = sphi 0, %s286
      %s303 = sphi 0, %s287
      %s309 = sphi 0, %s311
      %s312 = sphi 0, %s309
      %s313 = sphi 0, %s312
      %s329 = sphi 0, %s313
      %s335 = sphi 0, %s337
      %s338 = sphi 0, %s335
      %s339 = sphi 0, %s338
      %s355 = sphi 0, %s339
      %s361 = sphi 0, %s363
      %s364 = sphi 0, %s361
      %s365 = sphi 0, %s364
      %s381 = sphi 0, %s365
      %s387 = sphi 0, %s389
      %s390 = sphi 0, %s387
      %s391 = sphi 0, %s390
      %s407 = sphi 0, %s391
      %s413 = sphi 0, %s415
      %s416 = sphi 0, %s413
      %s417 = sphi 0, %s416
      %s433 = sphi 0, %s417
      %s439 = sphi 0, %s441
      %s442 = sphi 0, %s439
      %s443 = sphi 0, %s442
      %s459 = sphi 0, %s443
      %s463 = sphi 0, %s463
      %s465 = sphi 0, %s463
      %s466 = sphi 0, %s465
      %s480 = sphi 0, %s466
      %s484 = sphi 0, %s484
      %s486 = sphi 0, %s484
      %s487 = sphi 0, %s486
      %s501 = sphi 0, %s487
      %s505 = sphi 0, %s505
      %s507 = sphi 0, %s505
      %s508 = sphi 0, %s507
      %s522 = sphi 0, %s508
      %s526 = sphi 0, %s526
      %s528 = sphi 0, %s526
      %s529 = sphi 0, %s528
      %s543 = sphi 0, %s529
      %s547 = sphi 0, %s547
      %s549 = sphi 0, %s547
      %s550 = sphi 0, %s549
      %s564 = sphi 0, %s550
      %s568 = sphi 0, %s568
      %s570 = sphi 0, %s568
      %s571 = sphi 0, %s570
      %s585 = sphi 0, %s571
      %s589 = sphi 0, %s589
      %s591 = sphi 0, %s589
      %s592 = sphi 0, %s591
      %s606 = sphi 0, %s592
      %s610 = sphi 0, %s610
      %s612 = sphi 0, %s610
      %s613 = sphi 0, %s612
      %s627 = sphi 0, %s613
      %s631 = sphi 0, %s631
      %s633 = sphi 0, %s631
      %s634 = sphi 0, %s633
      %s648 = sphi 0, %s634
      %s652 = sphi 0, %s652
      %s654 = sphi 0, %s652
      %s655 = sphi 0, %s654
      %s669 = sphi 0, %s655
      %s673 = sphi 0, %s673
      %s675 = sphi 0, %s673
      %s676 = sphi 0, %s675
      %s690 = sphi 0, %s676
      %s694 = sphi 0, %s694
      %s696 = sphi 0, %s694
      %s697 = sphi 0, %s696
      %s711 = sphi 0, %s697
      %s717 = sphi 0, %s719
      %s720 = sphi 0, %s717
      %s721 = sphi 0, %s720
      %s737 = sphi 0, %s721
    $region4: #{my_bert_forward.1} parent=1 // loop_header_branch
      %40 = sbr.rel (%p38) target = $region8
    $region5: #{my_bert_forward.1} parent=1 // loop_body
      %s42 = ssub.s32 %s37, 1
      %s43 = ssub.s32 %s37, 2
      %s50 = sadd.s32 1, %s45
      %p51 = scmp.ge.s32.totalorder %s50, 2
      %s52 = scalar_select %p51, 0, %s50
      %s53 = sadd.s32 1, %s44
      %s54 = scalar_select %p51, %s53, %s44
      %p55 = scmp.ge.s32.totalorder %s54, 2
      %s56 = scalar_select %p55, 0, %s54
      %s57 = ssub.s32 %s44, %s56
      %p58 = scmp.eq.s32.totalorder %s57, 0
      %s60 = sadd.s32 %s59, 1
      %s61 = scalar_select %p58, %s59, %s60
      %p64 = pneg %p58
      %p65 = scmp.eq.s32.totalorder %s37, 3
      %p66 = por %p64, %p65
      %p67 = scmp.ne.s32.totalorder %s59, %s62
      %p68 = scmp.eq.s32.totalorder %s37, 0
      %p69 = por %p67, %p68
      %p70 = scmp.ne.s32.totalorder %s59, %s62
      %p71 = scmp.eq.s32.totalorder %s42, 3
      %p72 = por %p70, %p71
      %p73 = scmp.ne.s32.totalorder %s62, %s63
      %p74 = scmp.eq.s32.totalorder %s42, 0
      %p75 = por %p73, %p74
      %p76 = scmp.ne.s32.totalorder %s62, %s63
      %p77 = scmp.eq.s32.totalorder %s43, 3
      %p78 = por %p76, %p77
      %p80 = scmp.ne.s32.totalorder %s63, %s79
      %p81 = scmp.eq.s32.totalorder %s43, 0
      %p82 = por %p80, %p81
      %s83 = ssub.s32 %s44, %s56
      %p84 = scmp.eq.s32.totalorder %s83, 0
      %s86 = sadd.s32 %s85, 1
      %s87 = scalar_select %p84, %s85, %s86
      %p90 = pneg %p84
      %p91 = scmp.eq.s32.totalorder %s37, 3
      %p92 = por %p90, %p91
      %p93 = scmp.ne.s32.totalorder %s85, %s88
      %p94 = scmp.eq.s32.totalorder %s37, 0
      %p95 = por %p93, %p94
      %p96 = scmp.ne.s32.totalorder %s85, %s88
      %p97 = scmp.eq.s32.totalorder %s42, 3
      %p98 = por %p96, %p97
      %p99 = scmp.ne.s32.totalorder %s88, %s89
      %p100 = scmp.eq.s32.totalorder %s42, 0
      %p101 = por %p99, %p100
      %p102 = scmp.ne.s32.totalorder %s88, %s89
      %p103 = scmp.eq.s32.totalorder %s43, 3
      %p104 = por %p102, %p103
      %p106 = scmp.ne.s32.totalorder %s89, %s105
      %p107 = scmp.eq.s32.totalorder %s43, 0
      %p108 = por %p106, %p107
      %s110 = sadd.s32 %s109, 1
      %p113 = scmp.eq.s32.totalorder %s37, 3
      %p114 = scmp.ne.s32.totalorder %s109, %s111
      %p115 = scmp.eq.s32.totalorder %s37, 0
      %p116 = por %p114, %p115
      %p117 = scmp.ne.s32.totalorder %s109, %s111
      %p118 = scmp.eq.s32.totalorder %s42, 3
      %p119 = por %p117, %p118
      %p120 = scmp.ne.s32.totalorder %s111, %s112
      %p121 = scmp.eq.s32.totalorder %s42, 0
      %p122 = por %p120, %p121
      %p123 = scmp.ne.s32.totalorder %s111, %s112
      %p124 = scmp.eq.s32.totalorder %s43, 3
      %p125 = por %p123, %p124
      %p127 = scmp.ne.s32.totalorder %s112, %s126
      %p128 = scmp.eq.s32.totalorder %s43, 0
      %p129 = por %p127, %p128
      %s131 = sadd.s32 %s130, 1
      %p134 = scmp.eq.s32.totalorder %s37, 3
      %p135 = scmp.ne.s32.totalorder %s130, %s132
      %p136 = scmp.eq.s32.totalorder %s37, 0
      %p137 = por %p135, %p136
      %p138 = scmp.ne.s32.totalorder %s130, %s132
      %p139 = scmp.eq.s32.totalorder %s42, 3
      %p140 = por %p138, %p139
      %p141 = scmp.ne.s32.totalorder %s132, %s133
      %p142 = scmp.eq.s32.totalorder %s42, 0
      %p143 = por %p141, %p142
      %p144 = scmp.ne.s32.totalorder %s132, %s133
      %p145 = scmp.eq.s32.totalorder %s43, 3
      %p146 = por %p144, %p145
      %p148 = scmp.ne.s32.totalorder %s133, %s147
      %p149 = scmp.eq.s32.totalorder %s43, 0
      %p150 = por %p148, %p149
      %s151 = ssub.s32 %s45, %s52
      %p152 = scmp.eq.s32.totalorder %s151, 0
      %s154 = sadd.s32 %s153, 1
      %s155 = scalar_select %p152, %s153, %s154
      %p158 = pneg %p152
      %p159 = scmp.eq.s32.totalorder %s37, 3
      %p160 = por %p158, %p159
      %p161 = scmp.ne.s32.totalorder %s153, %s156
      %p162 = scmp.eq.s32.totalorder %s37, 0
      %p163 = por %p161, %p162
      %p164 = scmp.ne.s32.totalorder %s153, %s156
      %p165 = scmp.eq.s32.totalorder %s42, 3
      %p166 = por %p164, %p165
      %p167 = scmp.ne.s32.totalorder %s156, %s157
      %p168 = scmp.eq.s32.totalorder %s42, 0
      %p169 = por %p167, %p168
      %p170 = scmp.ne.s32.totalorder %s156, %s157
      %p171 = scmp.eq.s32.totalorder %s43, 3
      %p172 = por %p170, %p171
      %p174 = scmp.ne.s32.totalorder %s157, %s173
      %p175 = scmp.eq.s32.totalorder %s43, 0
      %p176 = por %p174, %p175
      %s177 = ssub.s32 %s45, %s52
      %p178 = scmp.eq.s32.totalorder %s177, 0
      %s180 = sadd.s32 %s179, 1
      %s181 = scalar_select %p178, %s179, %s180
      %p184 = pneg %p178
      %p185 = scmp.eq.s32.totalorder %s37, 3
      %p186 = por %p184, %p185
      %p187 = scmp.ne.s32.totalorder %s179, %s182
      %p188 = scmp.eq.s32.totalorder %s37, 0
      %p189 = por %p187, %p188
      %p190 = scmp.ne.s32.totalorder %s179, %s182
      %p191 = scmp.eq.s32.totalorder %s42, 3
      %p192 = por %p190, %p191
      %p193 = scmp.ne.s32.totalorder %s182, %s183
      %p194 = scmp.eq.s32.totalorder %s42, 0
      %p195 = por %p193, %p194
      %p196 = scmp.ne.s32.totalorder %s182, %s183
      %p197 = scmp.eq.s32.totalorder %s43, 3
      %p198 = por %p196, %p197
      %p200 = scmp.ne.s32.totalorder %s183, %s199
      %p201 = scmp.eq.s32.totalorder %s43, 0
      %p202 = por %p200, %p201
      %s203 = ssub.s32 %s45, %s52
      %p204 = scmp.eq.s32.totalorder %s203, 0
      %s206 = sadd.s32 %s205, 1
      %s207 = scalar_select %p204, %s205, %s206
      %p210 = pneg %p204
      %p211 = scmp.eq.s32.totalorder %s37, 3
      %p212 = por %p210, %p211
      %p213 = scmp.ne.s32.totalorder %s205, %s208
      %p214 = scmp.eq.s32.totalorder %s37, 0
      %p215 = por %p213, %p214
      %p216 = scmp.ne.s32.totalorder %s205, %s208
      %p217 = scmp.eq.s32.totalorder %s42, 3
      %p218 = por %p216, %p217
      %p219 = scmp.ne.s32.totalorder %s208, %s209
      %p220 = scmp.eq.s32.totalorder %s42, 0
      %p221 = por %p219, %p220
      %p222 = scmp.ne.s32.totalorder %s208, %s209
      %p223 = scmp.eq.s32.totalorder %s43, 3
      %p224 = por %p222, %p223
      %p226 = scmp.ne.s32.totalorder %s209, %s225
      %p227 = scmp.eq.s32.totalorder %s43, 0
      %p228 = por %p226, %p227
      %s229 = ssub.s32 %s45, %s52
      %p230 = scmp.eq.s32.totalorder %s229, 0
      %s232 = sadd.s32 %s231, 1
      %s233 = scalar_select %p230, %s231, %s232
      %p236 = pneg %p230
      %p237 = scmp.eq.s32.totalorder %s37, 3
      %p238 = por %p236, %p237
      %p239 = scmp.ne.s32.totalorder %s231, %s234
      %p240 = scmp.eq.s32.totalorder %s37, 0
      %p241 = por %p239, %p240
      %p242 = scmp.ne.s32.totalorder %s231, %s234
      %p243 = scmp.eq.s32.totalorder %s42, 3
      %p244 = por %p242, %p243
      %p245 = scmp.ne.s32.totalorder %s234, %s235
      %p246 = scmp.eq.s32.totalorder %s42, 0
      %p247 = por %p245, %p246
      %p248 = scmp.ne.s32.totalorder %s234, %s235
      %p249 = scmp.eq.s32.totalorder %s43, 3
      %p250 = por %p248, %p249
      %p252 = scmp.ne.s32.totalorder %s235, %s251
      %p253 = scmp.eq.s32.totalorder %s43, 0
      %p254 = por %p252, %p253
      %s255 = ssub.s32 %s45, %s52
      %p256 = scmp.eq.s32.totalorder %s255, 0
      %s258 = sadd.s32 %s257, 1
      %s259 = scalar_select %p256, %s257, %s258
      %p262 = pneg %p256
      %p263 = scmp.eq.s32.totalorder %s37, 3
      %p264 = por %p262, %p263
      %p265 = scmp.ne.s32.totalorder %s257, %s260
      %p266 = scmp.eq.s32.totalorder %s37, 0
      %p267 = por %p265, %p266
      %p268 = scmp.ne.s32.totalorder %s257, %s260
      %p269 = scmp.eq.s32.totalorder %s42, 3
      %p270 = por %p268, %p269
      %p271 = scmp.ne.s32.totalorder %s260, %s261
      %p272 = scmp.eq.s32.totalorder %s42, 0
      %p273 = por %p271, %p272
      %p274 = scmp.ne.s32.totalorder %s260, %s261
      %p275 = scmp.eq.s32.totalorder %s43, 3
      %p276 = por %p274, %p275
      %p278 = scmp.ne.s32.totalorder %s261, %s277
      %p279 = scmp.eq.s32.totalorder %s43, 0
      %p280 = por %p278, %p279
      %s281 = ssub.s32 %s45, %s52
      %p282 = scmp.eq.s32.totalorder %s281, 0
      %s284 = sadd.s32 %s283, 1
      %s285 = scalar_select %p282, %s283, %s284
      %p288 = pneg %p282
      %p289 = scmp.eq.s32.totalorder %s37, 3
      %p290 = por %p288, %p289
      %p291 = scmp.ne.s32.totalorder %s283, %s286
      %p292 = scmp.eq.s32.totalorder %s37, 0
      %p293 = por %p291, %p292
      %p294 = scmp.ne.s32.totalorder %s283, %s286
      %p295 = scmp.eq.s32.totalorder %s42, 3
      %p296 = por %p294, %p295
      %p297 = scmp.ne.s32.totalorder %s286, %s287
      %p298 = scmp.eq.s32.totalorder %s42, 0
      %p299 = por %p297, %p298
      %p300 = scmp.ne.s32.totalorder %s286, %s287
      %p301 = scmp.eq.s32.totalorder %s43, 3
      %p302 = por %p300, %p301
      %p304 = scmp.ne.s32.totalorder %s287, %s303
      %p305 = scmp.eq.s32.totalorder %s43, 0
      %p306 = por %p304, %p305
      %s307 = ssub.s32 %s45, %s52
      %p308 = scmp.eq.s32.totalorder %s307, 0
      %s310 = sadd.s32 %s309, 1
      %s311 = scalar_select %p308, %s309, %s310
      %p314 = pneg %p308
      %p315 = scmp.eq.s32.totalorder %s37, 3
      %p316 = por %p314, %p315
      %p317 = scmp.ne.s32.totalorder %s309, %s312
      %p318 = scmp.eq.s32.totalorder %s37, 0
      %p319 = por %p317, %p318
      %p320 = scmp.ne.s32.totalorder %s309, %s312
      %p321 = scmp.eq.s32.totalorder %s42, 3
      %p322 = por %p320, %p321
      %p323 = scmp.ne.s32.totalorder %s312, %s313
      %p324 = scmp.eq.s32.totalorder %s42, 0
      %p325 = por %p323, %p324
      %p326 = scmp.ne.s32.totalorder %s312, %s313
      %p327 = scmp.eq.s32.totalorder %s43, 3
      %p328 = por %p326, %p327
      %p330 = scmp.ne.s32.totalorder %s313, %s329
      %p331 = scmp.eq.s32.totalorder %s43, 0
      %p332 = por %p330, %p331
      %s333 = ssub.s32 %s45, %s52
      %p334 = scmp.eq.s32.totalorder %s333, 0
      %s336 = sadd.s32 %s335, 1
      %s337 = scalar_select %p334, %s335, %s336
      %p340 = pneg %p334
      %p341 = scmp.eq.s32.totalorder %s37, 3
      %p342 = por %p340, %p341
      %p343 = scmp.ne.s32.totalorder %s335, %s338
      %p344 = scmp.eq.s32.totalorder %s37, 0
      %p345 = por %p343, %p344
      %p346 = scmp.ne.s32.totalorder %s335, %s338
      %p347 = scmp.eq.s32.totalorder %s42, 3
      %p348 = por %p346, %p347
      %p349 = scmp.ne.s32.totalorder %s338, %s339
      %p350 = scmp.eq.s32.totalorder %s42, 0
      %p351 = por %p349, %p350
      %p352 = scmp.ne.s32.totalorder %s338, %s339
      %p353 = scmp.eq.s32.totalorder %s43, 3
      %p354 = por %p352, %p353
      %p356 = scmp.ne.s32.totalorder %s339, %s355
      %p357 = scmp.eq.s32.totalorder %s43, 0
      %p358 = por %p356, %p357
      %s359 = ssub.s32 %s45, %s52
      %p360 = scmp.eq.s32.totalorder %s359, 0
      %s362 = sadd.s32 %s361, 1
      %s363 = scalar_select %p360, %s361, %s362
      %p366 = pneg %p360
      %p367 = scmp.eq.s32.totalorder %s37, 3
      %p368 = por %p366, %p367
      %p369 = scmp.ne.s32.totalorder %s361, %s364
      %p370 = scmp.eq.s32.totalorder %s37, 0
      %p371 = por %p369, %p370
      %p372 = scmp.ne.s32.totalorder %s361, %s364
      %p373 = scmp.eq.s32.totalorder %s42, 3
      %p374 = por %p372, %p373
      %p375 = scmp.ne.s32.totalorder %s364, %s365
      %p376 = scmp.eq.s32.totalorder %s42, 0
      %p377 = por %p375, %p376
      %p378 = scmp.ne.s32.totalorder %s364, %s365
      %p379 = scmp.eq.s32.totalorder %s43, 3
      %p380 = por %p378, %p379
      %p382 = scmp.ne.s32.totalorder %s365, %s381
      %p383 = scmp.eq.s32.totalorder %s43, 0
      %p384 = por %p382, %p383
      %s385 = ssub.s32 %s45, %s52
      %p386 = scmp.eq.s32.totalorder %s385, 0
      %s388 = sadd.s32 %s387, 1
      %s389 = scalar_select %p386, %s387, %s388
      %p392 = pneg %p386
      %p393 = scmp.eq.s32.totalorder %s37, 3
      %p394 = por %p392, %p393
      %p395 = scmp.ne.s32.totalorder %s387, %s390
      %p396 = scmp.eq.s32.totalorder %s37, 0
      %p397 = por %p395, %p396
      %p398 = scmp.ne.s32.totalorder %s387, %s390
      %p399 = scmp.eq.s32.totalorder %s42, 3
      %p400 = por %p398, %p399
      %p401 = scmp.ne.s32.totalorder %s390, %s391
      %p402 = scmp.eq.s32.totalorder %s42, 0
      %p403 = por %p401, %p402
      %p404 = scmp.ne.s32.totalorder %s390, %s391
      %p405 = scmp.eq.s32.totalorder %s43, 3
      %p406 = por %p404, %p405
      %p408 = scmp.ne.s32.totalorder %s391, %s407
      %p409 = scmp.eq.s32.totalorder %s43, 0
      %p410 = por %p408, %p409
      %s411 = ssub.s32 %s45, %s52
      %p412 = scmp.eq.s32.totalorder %s411, 0
      %s414 = sadd.s32 %s413, 1
      %s415 = scalar_select %p412, %s413, %s414
      %p418 = pneg %p412
      %p419 = scmp.eq.s32.totalorder %s37, 3
      %p420 = por %p418, %p419
      %p421 = scmp.ne.s32.totalorder %s413, %s416
      %p422 = scmp.eq.s32.totalorder %s37, 0
      %p423 = por %p421, %p422
      %p424 = scmp.ne.s32.totalorder %s413, %s416
      %p425 = scmp.eq.s32.totalorder %s42, 3
      %p426 = por %p424, %p425
      %p427 = scmp.ne.s32.totalorder %s416, %s417
      %p428 = scmp.eq.s32.totalorder %s42, 0
      %p429 = por %p427, %p428
      %p430 = scmp.ne.s32.totalorder %s416, %s417
      %p431 = scmp.eq.s32.totalorder %s43, 3
      %p432 = por %p430, %p431
      %p434 = scmp.ne.s32.totalorder %s417, %s433
      %p435 = scmp.eq.s32.totalorder %s43, 0
      %p436 = por %p434, %p435
      %s437 = ssub.s32 %s45, %s52
      %p438 = scmp.eq.s32.totalorder %s437, 0
      %s440 = sadd.s32 %s439, 1
      %s441 = scalar_select %p438, %s439, %s440
      %p444 = pneg %p438
      %p445 = scmp.eq.s32.totalorder %s37, 3
      %p446 = por %p444, %p445
      %p447 = scmp.ne.s32.totalorder %s439, %s442
      %p448 = scmp.eq.s32.totalorder %s37, 0
      %p449 = por %p447, %p448
      %p450 = scmp.ne.s32.totalorder %s439, %s442
      %p451 = scmp.eq.s32.totalorder %s42, 3
      %p452 = por %p450, %p451
      %p453 = scmp.ne.s32.totalorder %s442, %s443
      %p454 = scmp.eq.s32.totalorder %s42, 0
      %p455 = por %p453, %p454
      %p456 = scmp.ne.s32.totalorder %s442, %s443
      %p457 = scmp.eq.s32.totalorder %s43, 3
      %p458 = por %p456, %p457
      %p460 = scmp.ne.s32.totalorder %s443, %s459
      %p461 = scmp.eq.s32.totalorder %s43, 0
      %p462 = por %p460, %p461
      %s464 = sadd.s32 %s463, 1
      %p467 = scmp.eq.s32.totalorder %s37, 3
      %p468 = scmp.ne.s32.totalorder %s463, %s465
      %p469 = scmp.eq.s32.totalorder %s37, 0
      %p470 = por %p468, %p469
      %p471 = scmp.ne.s32.totalorder %s463, %s465
      %p472 = scmp.eq.s32.totalorder %s42, 3
      %p473 = por %p471, %p472
      %p474 = scmp.ne.s32.totalorder %s465, %s466
      %p475 = scmp.eq.s32.totalorder %s42, 0
      %p476 = por %p474, %p475
      %p477 = scmp.ne.s32.totalorder %s465, %s466
      %p478 = scmp.eq.s32.totalorder %s43, 3
      %p479 = por %p477, %p478
      %p481 = scmp.ne.s32.totalorder %s466, %s480
      %p482 = scmp.eq.s32.totalorder %s43, 0
      %p483 = por %p481, %p482
      %s485 = sadd.s32 %s484, 1
      %p488 = scmp.eq.s32.totalorder %s37, 3
      %p489 = scmp.ne.s32.totalorder %s484, %s486
      %p490 = scmp.eq.s32.totalorder %s37, 0
      %p491 = por %p489, %p490
      %p492 = scmp.ne.s32.totalorder %s484, %s486
      %p493 = scmp.eq.s32.totalorder %s42, 3
      %p494 = por %p492, %p493
      %p495 = scmp.ne.s32.totalorder %s486, %s487
      %p496 = scmp.eq.s32.totalorder %s42, 0
      %p497 = por %p495, %p496
      %p498 = scmp.ne.s32.totalorder %s486, %s487
      %p499 = scmp.eq.s32.totalorder %s43, 3
      %p500 = por %p498, %p499
      %p502 = scmp.ne.s32.totalorder %s487, %s501
      %p503 = scmp.eq.s32.totalorder %s43, 0
      %p504 = por %p502, %p503
      %s506 = sadd.s32 %s505, 1
      %p509 = scmp.eq.s32.totalorder %s37, 3
      %p510 = scmp.ne.s32.totalorder %s505, %s507
      %p511 = scmp.eq.s32.totalorder %s37, 0
      %p512 = por %p510, %p511
      %p513 = scmp.ne.s32.totalorder %s505, %s507
      %p514 = scmp.eq.s32.totalorder %s42, 3
      %p515 = por %p513, %p514
      %p516 = scmp.ne.s32.totalorder %s507, %s508
      %p517 = scmp.eq.s32.totalorder %s42, 0
      %p518 = por %p516, %p517
      %p519 = scmp.ne.s32.totalorder %s507, %s508
      %p520 = scmp.eq.s32.totalorder %s43, 3
      %p521 = por %p519, %p520
      %p523 = scmp.ne.s32.totalorder %s508, %s522
      %p524 = scmp.eq.s32.totalorder %s43, 0
      %p525 = por %p523, %p524
      %s527 = sadd.s32 %s526, 1
      %p530 = scmp.eq.s32.totalorder %s37, 3
      %p531 = scmp.ne.s32.totalorder %s526, %s528
      %p532 = scmp.eq.s32.totalorder %s37, 0
      %p533 = por %p531, %p532
      %p534 = scmp.ne.s32.totalorder %s526, %s528
      %p535 = scmp.eq.s32.totalorder %s42, 3
      %p536 = por %p534, %p535
      %p537 = scmp.ne.s32.totalorder %s528, %s529
      %p538 = scmp.eq.s32.totalorder %s42, 0
      %p539 = por %p537, %p538
      %p540 = scmp.ne.s32.totalorder %s528, %s529
      %p541 = scmp.eq.s32.totalorder %s43, 3
      %p542 = por %p540, %p541
      %p544 = scmp.ne.s32.totalorder %s529, %s543
      %p545 = scmp.eq.s32.totalorder %s43, 0
      %p546 = por %p544, %p545
      %s548 = sadd.s32 %s547, 1
      %p551 = scmp.eq.s32.totalorder %s37, 3
      %p552 = scmp.ne.s32.totalorder %s547, %s549
      %p553 = scmp.eq.s32.totalorder %s37, 0
      %p554 = por %p552, %p553
      %p555 = scmp.ne.s32.totalorder %s547, %s549
      %p556 = scmp.eq.s32.totalorder %s42, 3
      %p557 = por %p555, %p556
      %p558 = scmp.ne.s32.totalorder %s549, %s550
      %p559 = scmp.eq.s32.totalorder %s42, 0
      %p560 = por %p558, %p559
      %p561 = scmp.ne.s32.totalorder %s549, %s550
      %p562 = scmp.eq.s32.totalorder %s43, 3
      %p563 = por %p561, %p562
      %p565 = scmp.ne.s32.totalorder %s550, %s564
      %p566 = scmp.eq.s32.totalorder %s43, 0
      %p567 = por %p565, %p566
      %s569 = sadd.s32 %s568, 1
      %p572 = scmp.eq.s32.totalorder %s37, 3
      %p573 = scmp.ne.s32.totalorder %s568, %s570
      %p574 = scmp.eq.s32.totalorder %s37, 0
      %p575 = por %p573, %p574
      %p576 = scmp.ne.s32.totalorder %s568, %s570
      %p577 = scmp.eq.s32.totalorder %s42, 3
      %p578 = por %p576, %p577
      %p579 = scmp.ne.s32.totalorder %s570, %s571
      %p580 = scmp.eq.s32.totalorder %s42, 0
      %p581 = por %p579, %p580
      %p582 = scmp.ne.s32.totalorder %s570, %s571
      %p583 = scmp.eq.s32.totalorder %s43, 3
      %p584 = por %p582, %p583
      %p586 = scmp.ne.s32.totalorder %s571, %s585
      %p587 = scmp.eq.s32.totalorder %s43, 0
      %p588 = por %p586, %p587
      %s590 = sadd.s32 %s589, 1
      %p593 = scmp.eq.s32.totalorder %s37, 3
      %p594 = scmp.ne.s32.totalorder %s589, %s591
      %p595 = scmp.eq.s32.totalorder %s37, 0
      %p596 = por %p594, %p595
      %p597 = scmp.ne.s32.totalorder %s589, %s591
      %p598 = scmp.eq.s32.totalorder %s42, 3
      %p599 = por %p597, %p598
      %p600 = scmp.ne.s32.totalorder %s591, %s592
      %p601 = scmp.eq.s32.totalorder %s42, 0
      %p602 = por %p600, %p601
      %p603 = scmp.ne.s32.totalorder %s591, %s592
      %p604 = scmp.eq.s32.totalorder %s43, 3
      %p605 = por %p603, %p604
      %p607 = scmp.ne.s32.totalorder %s592, %s606
      %p608 = scmp.eq.s32.totalorder %s43, 0
      %p609 = por %p607, %p608
      %s611 = sadd.s32 %s610, 1
      %p614 = scmp.eq.s32.totalorder %s37, 3
      %p615 = scmp.ne.s32.totalorder %s610, %s612
      %p616 = scmp.eq.s32.totalorder %s37, 0
      %p617 = por %p615, %p616
      %p618 = scmp.ne.s32.totalorder %s610, %s612
      %p619 = scmp.eq.s32.totalorder %s42, 3
      %p620 = por %p618, %p619
      %p621 = scmp.ne.s32.totalorder %s612, %s613
      %p622 = scmp.eq.s32.totalorder %s42, 0
      %p623 = por %p621, %p622
      %p624 = scmp.ne.s32.totalorder %s612, %s613
      %p625 = scmp.eq.s32.totalorder %s43, 3
      %p626 = por %p624, %p625
      %p628 = scmp.ne.s32.totalorder %s613, %s627
      %p629 = scmp.eq.s32.totalorder %s43, 0
      %p630 = por %p628, %p629
      %s632 = sadd.s32 %s631, 1
      %p635 = scmp.eq.s32.totalorder %s37, 3
      %p636 = scmp.ne.s32.totalorder %s631, %s633
      %p637 = scmp.eq.s32.totalorder %s37, 0
      %p638 = por %p636, %p637
      %p639 = scmp.ne.s32.totalorder %s631, %s633
      %p640 = scmp.eq.s32.totalorder %s42, 3
      %p641 = por %p639, %p640
      %p642 = scmp.ne.s32.totalorder %s633, %s634
      %p643 = scmp.eq.s32.totalorder %s42, 0
      %p644 = por %p642, %p643
      %p645 = scmp.ne.s32.totalorder %s633, %s634
      %p646 = scmp.eq.s32.totalorder %s43, 3
      %p647 = por %p645, %p646
      %p649 = scmp.ne.s32.totalorder %s634, %s648
      %p650 = scmp.eq.s32.totalorder %s43, 0
      %p651 = por %p649, %p650
      %s653 = sadd.s32 %s652, 1
      %p656 = scmp.eq.s32.totalorder %s37, 3
      %p657 = scmp.ne.s32.totalorder %s652, %s654
      %p658 = scmp.eq.s32.totalorder %s37, 0
      %p659 = por %p657, %p658
      %p660 = scmp.ne.s32.totalorder %s652, %s654
      %p661 = scmp.eq.s32.totalorder %s42, 3
      %p662 = por %p660, %p661
      %p663 = scmp.ne.s32.totalorder %s654, %s655
      %p664 = scmp.eq.s32.totalorder %s42, 0
      %p665 = por %p663, %p664
      %p666 = scmp.ne.s32.totalorder %s654, %s655
      %p667 = scmp.eq.s32.totalorder %s43, 3
      %p668 = por %p666, %p667
      %p670 = scmp.ne.s32.totalorder %s655, %s669
      %p671 = scmp.eq.s32.totalorder %s43, 0
      %p672 = por %p670, %p671
      %s674 = sadd.s32 %s673, 1
      %p677 = scmp.eq.s32.totalorder %s37, 3
      %p678 = scmp.ne.s32.totalorder %s673, %s675
      %p679 = scmp.eq.s32.totalorder %s37, 0
      %p680 = por %p678, %p679
      %p681 = scmp.ne.s32.totalorder %s673, %s675
      %p682 = scmp.eq.s32.totalorder %s42, 3
      %p683 = por %p681, %p682
      %p684 = scmp.ne.s32.totalorder %s675, %s676
      %p685 = scmp.eq.s32.totalorder %s42, 0
      %p686 = por %p684, %p685
      %p687 = scmp.ne.s32.totalorder %s675, %s676
      %p688 = scmp.eq.s32.totalorder %s43, 3
      %p689 = por %p687, %p688
      %p691 = scmp.ne.s32.totalorder %s676, %s690
      %p692 = scmp.eq.s32.totalorder %s43, 0
      %p693 = por %p691, %p692
      %s695 = sadd.s32 %s694, 1
      %p698 = scmp.eq.s32.totalorder %s37, 3
      %p699 = scmp.ne.s32.totalorder %s694, %s696
      %p700 = scmp.eq.s32.totalorder %s37, 0
      %p701 = por %p699, %p700
      %p702 = scmp.ne.s32.totalorder %s694, %s696
      %p703 = scmp.eq.s32.totalorder %s42, 3
      %p704 = por %p702, %p703
      %p705 = scmp.ne.s32.totalorder %s696, %s697
      %p706 = scmp.eq.s32.totalorder %s42, 0
      %p707 = por %p705, %p706
      %p708 = scmp.ne.s32.totalorder %s696, %s697
      %p709 = scmp.eq.s32.totalorder %s43, 3
      %p710 = por %p708, %p709
      %p712 = scmp.ne.s32.totalorder %s697, %s711
      %p713 = scmp.eq.s32.totalorder %s43, 0
      %p714 = por %p712, %p713
      %s715 = ssub.s32 %s44, %s56
      %p716 = scmp.eq.s32.totalorder %s715, 0
      %s718 = sadd.s32 %s717, 1
      %s719 = scalar_select %p716, %s717, %s718
      %p722 = pneg %p716
      %p723 = scmp.eq.s32.totalorder %s37, 3
      %p724 = por %p722, %p723
      %p725 = scmp.ne.s32.totalorder %s717, %s720
      %p726 = scmp.eq.s32.totalorder %s37, 0
      %p727 = por %p725, %p726
      %p728 = scmp.ne.s32.totalorder %s717, %s720
      %p729 = scmp.eq.s32.totalorder %s42, 3
      %p730 = por %p728, %p729
      %p731 = scmp.ne.s32.totalorder %s720, %s721
      %p732 = scmp.eq.s32.totalorder %s42, 0
      %p733 = por %p731, %p732
      %p734 = scmp.ne.s32.totalorder %s720, %s721
      %p735 = scmp.eq.s32.totalorder %s43, 3
      %p736 = por %p734, %p735
      %p738 = scmp.ne.s32.totalorder %s721, %s737
      %p739 = scmp.eq.s32.totalorder %s43, 0
      %p740 = por %p738, %p739
      %p741 = scmp.le.s32.totalorder 1, %s37
      %p742 = scmp.lt.s32.totalorder %s37, 5
      %p743 = pnand %p741, %p742
      %p744 = pneg %p743
      // Predicated region
      $region9: #{my_bert_forward.1} parent=5 // pred_check
        _
      $region10: #{my_bert_forward.1} parent=5 // pred_check_branch
        %746 = sbr.rel (%p743) target = $region12
      $region11: #{my_bert_forward.1} parent=5 // pred_region
        %s747 = ssub.s32 %s37, 1
        // Predicated region
        $region13: #{my_bert_forward.1} parent=11 // pred_check
          %p748 = pneg %p122
        $region14: #{my_bert_forward.1} parent=11 // pred_check_branch
          %750 = sbr.rel (%p748) target = $region16
        $region15: #{my_bert_forward.1} parent=11 // pred_region
          _
        $region16: #{my_bert_forward.1} parent=11 // pred_fallthru
          _
        // Predicated region
        $region17: #{my_bert_forward.1} parent=11 // pred_check
          %p751 = pneg %p143
        $region18: #{my_bert_forward.1} parent=11 // pred_check_branch
          %753 = sbr.rel (%p751) target = $region20
        $region19: #{my_bert_forward.1} parent=11 // pred_region
          _
        $region20: #{my_bert_forward.1} parent=11 // pred_fallthru
          _
        // Predicated region
        $region21: #{my_bert_forward.1} parent=11 // pred_check
          %p754 = pneg %p476
        $region22: #{my_bert_forward.1} parent=11 // pred_check_branch
          %756 = sbr.rel (%p754) target = $region24
        $region23: #{my_bert_forward.1} parent=11 // pred_region
          _
        $region24: #{my_bert_forward.1} parent=11 // pred_fallthru
          _
        // Predicated region
        $region25: #{my_bert_forward.1} parent=11 // pred_check
          %p757 = pneg %p497
        $region26: #{my_bert_forward.1} parent=11 // pred_check_branch
          %759 = sbr.rel (%p757) target = $region28
        $region27: #{my_bert_forward.1} parent=11 // pred_region
          _
        $region28: #{my_bert_forward.1} parent=11 // pred_fallthru
          _
        // Predicated region
        $region29: #{my_bert_forward.1} parent=11 // pred_check
          %p760 = pneg %p518
        $region30: #{my_bert_forward.1} parent=11 // pred_check_branch
          %762 = sbr.rel (%p760) target = $region32
        $region31: #{my_bert_forward.1} parent=11 // pred_region
          _
        $region32: #{my_bert_forward.1} parent=11 // pred_fallthru
          _
        // Predicated region
        $region33: #{my_bert_forward.1} parent=11 // pred_check
          %p763 = pneg %p539
        $region34: #{my_bert_forward.1} parent=11 // pred_check_branch
          %765 = sbr.rel (%p763) target = $region36
        $region35: #{my_bert_forward.1} parent=11 // pred_region
          _
        $region36: #{my_bert_forward.1} parent=11 // pred_fallthru
          _
        // Predicated region
        $region37: #{my_bert_forward.1} parent=11 // pred_check
          %p766 = pneg %p560
        $region38: #{my_bert_forward.1} parent=11 // pred_check_branch
          %768 = sbr.rel (%p766) target = $region40
        $region39: #{my_bert_forward.1} parent=11 // pred_region
          _
        $region40: #{my_bert_forward.1} parent=11 // pred_fallthru
          _
        // Predicated region
        $region41: #{my_bert_forward.1} parent=11 // pred_check
          %p769 = pneg %p581
        $region42: #{my_bert_forward.1} parent=11 // pred_check_branch
          %771 = sbr.rel (%p769) target = $region44
        $region43: #{my_bert_forward.1} parent=11 // pred_region
          _
        $region44: #{my_bert_forward.1} parent=11 // pred_fallthru
          _
        // Predicated region
        $region45: #{my_bert_forward.1} parent=11 // pred_check
          %p772 = pneg %p602
        $region46: #{my_bert_forward.1} parent=11 // pred_check_branch
          %774 = sbr.rel (%p772) target = $region48
        $region47: #{my_bert_forward.1} parent=11 // pred_region
          _
        $region48: #{my_bert_forward.1} parent=11 // pred_fallthru
          _
        // Predicated region
        $region49: #{my_bert_forward.1} parent=11 // pred_check
          %p775 = pneg %p623
        $region50: #{my_bert_forward.1} parent=11 // pred_check_branch
          %777 = sbr.rel (%p775) target = $region52
        $region51: #{my_bert_forward.1} parent=11 // pred_region
          _
        $region52: #{my_bert_forward.1} parent=11 // pred_fallthru
          _
        // Predicated region
        $region53: #{my_bert_forward.1} parent=11 // pred_check
          %p778 = pneg %p644
        $region54: #{my_bert_forward.1} parent=11 // pred_check_branch
          %780 = sbr.rel (%p778) target = $region56
        $region55: #{my_bert_forward.1} parent=11 // pred_region
          _
        $region56: #{my_bert_forward.1} parent=11 // pred_fallthru
          _
        // Predicated region
        $region57: #{my_bert_forward.1} parent=11 // pred_check
          %p781 = pneg %p665
        $region58: #{my_bert_forward.1} parent=11 // pred_check_branch
          %783 = sbr.rel (%p781) target = $region60
        $region59: #{my_bert_forward.1} parent=11 // pred_region
          _
        $region60: #{my_bert_forward.1} parent=11 // pred_fallthru
          _
        // Predicated region
        $region61: #{my_bert_forward.1} parent=11 // pred_check
          %p784 = pneg %p686
        $region62: #{my_bert_forward.1} parent=11 // pred_check_branch
          %786 = sbr.rel (%p784) target = $region64
        $region63: #{my_bert_forward.1} parent=11 // pred_region
          _
        $region64: #{my_bert_forward.1} parent=11 // pred_fallthru
          _
        // Predicated region
        $region65: #{my_bert_forward.1} parent=11 // pred_check
          %p787 = pneg %p707
        $region66: #{my_bert_forward.1} parent=11 // pred_check_branch
          %789 = sbr.rel (%p787) target = $region68
        $region67: #{my_bert_forward.1} parent=11 // pred_region
          _
        $region68: #{my_bert_forward.1} parent=11 // pred_fallthru
          _
      $region12: #{my_bert_forward.1} parent=5 // pred_fallthru
        _
      %p790 = scmp.lt.s32.totalorder %s37, 4
      // Predicated region
      $region69: #{my_bert_forward.1} parent=5 // pred_check
        %p791 = pneg %p790
      $region70: #{my_bert_forward.1} parent=5 // pred_check_branch
        %793 = sbr.rel (%p791) target = $region72
      $region71: #{my_bert_forward.1} parent=5 // pred_region
        // Predicated region
        $region73: #{my_bert_forward.1} parent=71 // pred_check
          %p794 = pneg %p69
        $region74: #{my_bert_forward.1} parent=71 // pred_check_branch
          %796 = sbr.rel (%p794) target = $region76
        $region75: #{my_bert_forward.1} parent=71 // pred_region
          %p797 = scmp.lt.s32.totalorder %s44, 1
          %s798 = scalar_select %p797, %s44, 1
          %s799 = smul.addr %s798, 8
          %s800 = scalar_lea.vmem %s0, %s799
        $region76: #{my_bert_forward.1} parent=71 // pred_fallthru
          _
        // Predicated region
        $region77: #{my_bert_forward.1} parent=71 // pred_check
          %p801 = pneg %p95
        $region78: #{my_bert_forward.1} parent=71 // pred_check_branch
          %803 = sbr.rel (%p801) target = $region80
        $region79: #{my_bert_forward.1} parent=71 // pred_region
          %p804 = scmp.lt.s32.totalorder %s44, 1
          %s805 = scalar_select %p804, %s44, 1
          %s806 = scalar_lea.vmem %s1, %s805
        $region80: #{my_bert_forward.1} parent=71 // pred_fallthru
          _
        // Predicated region
        $region81: #{my_bert_forward.1} parent=71 // pred_check
          %p807 = pneg %p163
        $region82: #{my_bert_forward.1} parent=71 // pred_check_branch
          %809 = sbr.rel (%p807) target = $region84
        $region83: #{my_bert_forward.1} parent=71 // pred_region
          %p810 = scmp.lt.s32.totalorder %s45, 1
          %s811 = scalar_select %p810, %s45, 1
          %s812 = smul.addr %s811, 4
          %s813 = smul.addr %s812, 4
          %s814 = scalar_lea.vmem %s4, %s813
        $region84: #{my_bert_forward.1} parent=71 // pred_fallthru
          _
        // Predicated region
        $region85: #{my_bert_forward.1} parent=71 // pred_check
          %p815 = pneg %p189
        $region86: #{my_bert_forward.1} parent=71 // pred_check_branch
          %817 = sbr.rel (%p815) target = $region88
        $region87: #{my_bert_forward.1} parent=71 // pred_region
          %p818 = scmp.lt.s32.totalorder %s45, 1
          %s819 = scalar_select %p818, %s45, 1
          %s820 = scalar_lea.vmem %s5, %s819
        $region88: #{my_bert_forward.1} parent=71 // pred_fallthru
          _
        // Predicated region
        $region89: #{my_bert_forward.1} parent=71 // pred_check
          %p821 = pneg %p215
        $region90: #{my_bert_forward.1} parent=71 // pred_check_branch
          %823 = sbr.rel (%p821) target = $region92
        $region91: #{my_bert_forward.1} parent=71 // pred_region
          %p824 = scmp.lt.s32.totalorder %s45, 1
          %s825 = scalar_select %p824, %s45, 1
          %s826 = smul.addr %s825, 4
          %s827 = smul.addr %s826, 4
          %s828 = scalar_lea.vmem %s6, %s827
        $region92: #{my_bert_forward.1} parent=71 // pred_fallthru
          _
        // Predicated region
        $region93: #{my_bert_forward.1} parent=71 // pred_check
          %p829 = pneg %p241
        $region94: #{my_bert_forward.1} parent=71 // pred_check_branch
          %831 = sbr.rel (%p829) target = $region96
        $region95: #{my_bert_forward.1} parent=71 // pred_region
          %p832 = scmp.lt.s32.totalorder %s45, 1
          %s833 = scalar_select %p832, %s45, 1
          %s834 = scalar_lea.vmem %s7, %s833
        $region96: #{my_bert_forward.1} parent=71 // pred_fallthru
          _
        // Predicated region
        $region97: #{my_bert_forward.1} parent=71 // pred_check
          %p835 = pneg %p267
        $region98: #{my_bert_forward.1} parent=71 // pred_check_branch
          %837 = sbr.rel (%p835) target = $region100
        $region99: #{my_bert_forward.1} parent=71 // pred_region
          %p838 = scmp.lt.s32.totalorder %s45, 1
          %s839 = scalar_select %p838, %s45, 1
          %s840 = scalar_lea.vmem %s8, %s839
        $region100: #{my_bert_forward.1} parent=71 // pred_fallthru
          _
        // Predicated region
        $region101: #{my_bert_forward.1} parent=71 // pred_check
          %p841 = pneg %p293
        $region102: #{my_bert_forward.1} parent=71 // pred_check_branch
          %843 = sbr.rel (%p841) target = $region104
        $region103: #{my_bert_forward.1} parent=71 // pred_region
          %p844 = scmp.lt.s32.totalorder %s45, 1
          %s845 = scalar_select %p844, %s45, 1
          %s846 = scalar_lea.vmem %s9, %s845
        $region104: #{my_bert_forward.1} parent=71 // pred_fallthru
          _
        // Predicated region
        $region105: #{my_bert_forward.1} parent=71 // pred_check
          %p847 = pneg %p319
        $region106: #{my_bert_forward.1} parent=71 // pred_check_branch
          %849 = sbr.rel (%p847) target = $region108
        $region107: #{my_bert_forward.1} parent=71 // pred_region
          %p850 = scmp.lt.s32.totalorder %s45, 1
          %s851 = scalar_select %p850, %s45, 1
          %s852 = smul.addr %s851, 4
          %s853 = smul.addr %s852, 4
          %s854 = scalar_lea.vmem %s10, %s853
        $region108: #{my_bert_forward.1} parent=71 // pred_fallthru
          _
        // Predicated region
        $region109: #{my_bert_forward.1} parent=71 // pred_check
          %p855 = pneg %p345
        $region110: #{my_bert_forward.1} parent=71 // pred_check_branch
          %857 = sbr.rel (%p855) target = $region112
        $region111: #{my_bert_forward.1} parent=71 // pred_region
          %p858 = scmp.lt.s32.totalorder %s45, 1
          %s859 = scalar_select %p858, %s45, 1
          %s860 = scalar_lea.vmem %s11, %s859
        $region112: #{my_bert_forward.1} parent=71 // pred_fallthru
          _
        // Predicated region
        $region113: #{my_bert_forward.1} parent=71 // pred_check
          %p861 = pneg %p371
        $region114: #{my_bert_forward.1} parent=71 // pred_check_branch
          %863 = sbr.rel (%p861) target = $region116
        $region115: #{my_bert_forward.1} parent=71 // pred_region
          %p864 = scmp.lt.s32.totalorder %s45, 1
          %s865 = scalar_select %p864, %s45, 1
          %s866 = smul.addr %s865, 8
          %s867 = smul.addr %s866, 4
          %s868 = scalar_lea.vmem %s12, %s867
        $region116: #{my_bert_forward.1} parent=71 // pred_fallthru
          _
        // Predicated region
        $region117: #{my_bert_forward.1} parent=71 // pred_check
          %p869 = pneg %p397
        $region118: #{my_bert_forward.1} parent=71 // pred_check_branch
          %871 = sbr.rel (%p869) target = $region120
        $region119: #{my_bert_forward.1} parent=71 // pred_region
          %p872 = scmp.lt.s32.totalorder %s45, 1
          %s873 = scalar_select %p872, %s45, 1
          %s874 = scalar_lea.vmem %s13, %s873
        $region120: #{my_bert_forward.1} parent=71 // pred_fallthru
          _
        // Predicated region
        $region121: #{my_bert_forward.1} parent=71 // pred_check
          %p875 = pneg %p423
        $region122: #{my_bert_forward.1} parent=71 // pred_check_branch
          %877 = sbr.rel (%p875) target = $region124
        $region123: #{my_bert_forward.1} parent=71 // pred_region
          %p878 = scmp.lt.s32.totalorder %s45, 1
          %s879 = scalar_select %p878, %s45, 1
          %s880 = scalar_lea.vmem %s14, %s879
        $region124: #{my_bert_forward.1} parent=71 // pred_fallthru
          _
        // Predicated region
        $region125: #{my_bert_forward.1} parent=71 // pred_check
          %p881 = pneg %p449
        $region126: #{my_bert_forward.1} parent=71 // pred_check_branch
          %883 = sbr.rel (%p881) target = $region128
        $region127: #{my_bert_forward.1} parent=71 // pred_region
          %p884 = scmp.lt.s32.totalorder %s45, 1
          %s885 = scalar_select %p884, %s45, 1
          %s886 = scalar_lea.vmem %s15, %s885
        $region128: #{my_bert_forward.1} parent=71 // pred_fallthru
          _
      $region72: #{my_bert_forward.1} parent=5 // pred_fallthru
        _
      %p887 = scmp.le.s32.totalorder 1, %s37
      %p888 = scmp.lt.s32.totalorder %s37, 5
      %p889 = pnand %p887, %p888
      %p890 = pneg %p889
      // Predicated region
      $region129: #{my_bert_forward.1} parent=5 // pred_check
        _
      $region130: #{my_bert_forward.1} parent=5 // pred_check_branch
        %892 = sbr.rel (%p889) target = $region132
      $region131: #{my_bert_forward.1} parent=5 // pred_region
        %s893 = ssub.s32 %s37, 1
        %p894 = scmp.lt.s32.totalorder %s46, 1
        %s895 = scalar_select %p894, %s46, 1
        %s896 = smul.addr %s895, 8
        %s897 = scalar_lea.vmem %s0, %s896
        %p898 = pneg %p75
        %p899 = pneg %p72
        %p900 = scmp.lt.s32.totalorder %s46, 1
        %s901 = scalar_select %p900, %s46, 1
        %s902 = scalar_lea.vmem %s1, %s901
        %p903 = pneg %p101
        %p904 = pneg %p98
        %p905 = pneg %p122
        %p906 = pneg %p119
        %p907 = pneg %p143
        %p908 = pneg %p140
        %p909 = scmp.lt.s32.totalorder %s47, 1
        %s910 = scalar_select %p909, %s47, 1
        %s911 = smul.addr %s910, 4
        %s912 = smul.addr %s911, 4
        %s913 = scalar_lea.vmem %s4, %s912
        %p914 = pneg %p169
        %p915 = pneg %p166
        %p916 = scmp.lt.s32.totalorder %s47, 1
        %s917 = scalar_select %p916, %s47, 1
        %s918 = scalar_lea.vmem %s5, %s917
        %p919 = pneg %p195
        %p920 = pneg %p192
        %p921 = scmp.lt.s32.totalorder %s47, 1
        %s922 = scalar_select %p921, %s47, 1
        %s923 = smul.addr %s922, 4
        %s924 = smul.addr %s923, 4
        %s925 = scalar_lea.vmem %s6, %s924
        %p926 = pneg %p221
        %p927 = pneg %p218
        %p928 = scmp.lt.s32.totalorder %s47, 1
        %s929 = scalar_select %p928, %s47, 1
        %s930 = scalar_lea.vmem %s7, %s929
        %p931 = pneg %p247
        %p932 = pneg %p244
        %p933 = scmp.lt.s32.totalorder %s47, 1
        %s934 = scalar_select %p933, %s47, 1
        %s935 = scalar_lea.vmem %s8, %s934
        %p936 = pneg %p273
        %p937 = pneg %p270
        %p938 = scmp.lt.s32.totalorder %s47, 1
        %s939 = scalar_select %p938, %s47, 1
        %s940 = scalar_lea.vmem %s9, %s939
        %p941 = pneg %p299
        %p942 = pneg %p296
        %p943 = scmp.lt.s32.totalorder %s47, 1
        %s944 = scalar_select %p943, %s47, 1
        %s945 = smul.addr %s944, 4
        %s946 = smul.addr %s945, 4
        %s947 = scalar_lea.vmem %s10, %s946
        %p948 = pneg %p325
        %p949 = pneg %p322
        %p950 = scmp.lt.s32.totalorder %s47, 1
        %s951 = scalar_select %p950, %s47, 1
        %s952 = scalar_lea.vmem %s11, %s951
        %p953 = pneg %p351
        %p954 = pneg %p348
        %p955 = scmp.lt.s32.totalorder %s47, 1
        %s956 = scalar_select %p955, %s47, 1
        %s957 = smul.addr %s956, 8
        %s958 = smul.addr %s957, 4
        %s959 = scalar_lea.vmem %s12, %s958
        %p960 = pneg %p377
        %p961 = pneg %p374
        %p962 = scmp.lt.s32.totalorder %s47, 1
        %s963 = scalar_select %p962, %s47, 1
        %s964 = scalar_lea.vmem %s13, %s963
        %p965 = pneg %p403
        %p966 = pneg %p400
        %p967 = scmp.lt.s32.totalorder %s47, 1
        %s968 = scalar_select %p967, %s47, 1
        %s969 = scalar_lea.vmem %s14, %s968
        %p970 = pneg %p429
        %p971 = pneg %p426
        %p972 = scmp.lt.s32.totalorder %s47, 1
        %s973 = scalar_select %p972, %s47, 1
        %s974 = scalar_lea.vmem %s15, %s973
        %p975 = pneg %p455
        %p976 = pneg %p452
        %p977 = pneg %p476
        %p978 = pneg %p473
        %p979 = pneg %p497
        %p980 = pneg %p494
        %p981 = pneg %p518
        %p982 = pneg %p515
        %p983 = pneg %p539
        %p984 = pneg %p536
        %p985 = pneg %p560
        %p986 = pneg %p557
        %p987 = pneg %p581
        %p988 = pneg %p578
        %p989 = pneg %p602
        %p990 = pneg %p599
        %p991 = pneg %p623
        %p992 = pneg %p620
        %p993 = pneg %p644
        %p994 = pneg %p641
        %p995 = pneg %p665
        %p996 = pneg %p662
        %p997 = pneg %p686
        %p998 = pneg %p683
        %p999 = pneg %p707
        %p1000 = pneg %p704
        %p1001 = pneg %p733
        %p1002 = pneg %p730
        %s1003 = sand.u32 %s720, 1
        %s1004 = scalar_lea.sflag [#allocation4], %s1003
        %s1005 = sand.u32 %s720, 1
        %s1006 = scalar_lea.vmem [#allocation3], %s1005
        %p1007 = scmp.lt.s32.totalorder %s46, 1
        %s1008 = scalar_select %p1007, %s46, 1
        %s1009 = smul.addr %s1008, 8
        %s1010 = scalar_lea.vmem %s0, %s1009
        %p1011 = scmp.lt.s32.totalorder %s46, 1
        %s1012 = scalar_select %p1011, %s46, 1
        %s1013 = scalar_lea.vmem %s1, %s1012
        %p1014 = scmp.lt.s32.totalorder %s47, 1
        %s1015 = scalar_select %p1014, %s47, 1
        %s1016 = smul.addr %s1015, 4
        %s1017 = smul.addr %s1016, 4
        %s1018 = scalar_lea.vmem %s4, %s1017
        %p1019 = scmp.lt.s32.totalorder %s47, 1
        %s1020 = scalar_select %p1019, %s47, 1
        %s1021 = scalar_lea.vmem %s5, %s1020
        %p1022 = scmp.lt.s32.totalorder %s47, 1
        %s1023 = scalar_select %p1022, %s47, 1
        %s1024 = smul.addr %s1023, 4
        %s1025 = smul.addr %s1024, 4
        %s1026 = scalar_lea.vmem %s6, %s1025
        %p1027 = scmp.lt.s32.totalorder %s47, 1
        %s1028 = scalar_select %p1027, %s47, 1
        %s1029 = scalar_lea.vmem %s7, %s1028
        %p1030 = scmp.lt.s32.totalorder %s47, 1
        %s1031 = scalar_select %p1030, %s47, 1
        %s1032 = scalar_lea.vmem %s8, %s1031
        %p1033 = scmp.lt.s32.totalorder %s47, 1
        %s1034 = scalar_select %p1033, %s47, 1
        %s1035 = scalar_lea.vmem %s9, %s1034
        %p1036 = scmp.lt.s32.totalorder %s47, 1
        %s1037 = scalar_select %p1036, %s47, 1
        %s1038 = smul.addr %s1037, 4
        %s1039 = smul.addr %s1038, 4
        %s1040 = scalar_lea.vmem %s10, %s1039
        %p1041 = scmp.lt.s32.totalorder %s47, 1
        %s1042 = scalar_select %p1041, %s47, 1
        %s1043 = scalar_lea.vmem %s11, %s1042
        %p1044 = scmp.lt.s32.totalorder %s47, 1
        %s1045 = scalar_select %p1044, %s47, 1
        %s1046 = smul.addr %s1045, 8
        %s1047 = smul.addr %s1046, 4
        %s1048 = scalar_lea.vmem %s12, %s1047
        %p1049 = scmp.lt.s32.totalorder %s47, 1
        %s1050 = scalar_select %p1049, %s47, 1
        %s1051 = scalar_lea.vmem %s13, %s1050
        %p1052 = scmp.lt.s32.totalorder %s47, 1
        %s1053 = scalar_select %p1052, %s47, 1
        %s1054 = scalar_lea.vmem %s14, %s1053
        %p1055 = scmp.lt.s32.totalorder %s47, 1
        %s1056 = scalar_select %p1055, %s47, 1
        %s1057 = scalar_lea.vmem %s15, %s1056
        %p1059 = scmp.eq.s32.totalorder %s47, 0
        // Predicated region
        $region133: #{my_bert_forward.1} parent=131 // pred_check
          %p1060 = pneg %p1059
        $region134: #{my_bert_forward.1} parent=131 // pred_check_branch
          %1062 = sbr.rel (%p1060) target = $region136
        $region135: #{my_bert_forward.1} parent=131 // pred_region
          %v1063 = vld [vmem:[%s1010] sm:$0xff]
          %v1064 = vld [vmem:[%s2] sm:$0x1]
          %v1065 = vld [vmem:[%s3] sm:$0x1]
          %vm1066 = vcmask 261120
          %v1067 = vsel %vm1066, %v1063, 0.0
          %1068 = vadd.xlane.f32.xlu0 %v1067
          %v1069 = vpop.xlane.xlu0 %1068
          %v1070 = vrcp.pop 32.0
          %v1071 = vmul.f32 %v1069, %v1070
          %v1072 = vsub.f32 %v1063, %v1071
          %v1073 = vmul.f32 %v1072, %v1072
          %v1074 = vsel %vm1066, %v1073, 0.0
          %1075 = vadd.xlane.f32.xlu0 %v1074
          %v1076 = vpop.xlane.xlu0 %1075
          %v1077 = vmul.f32 %v1076, %v1070
          %v1078 = vadd.f32 %v1077, 1e-05
          %v1079 = vrsqrt.pop %v1078
          %v1080 = vmul.f32 %v1072, %v1079
          %v1082 = vlaneseq
          %v1083 = vshrl.u32 %v1082, 7
          %v1084 = vsub.s32 0, %v1083
          %v1085 = vrot.slane %v1064, %v1084
          %v1087 = vmul.f32 %v1080, %v1085
          %v1089 = vlaneseq
          %v1090 = vshrl.u32 %v1089, 7
          %v1091 = vsub.s32 0, %v1090
          %v1092 = vrot.slane %v1065, %v1091
          %v1094 = vadd.f32 %v1087, %v1092
          %v1095 = vpack.c.bf16 %v1094, %v1094
          %vm1096 = vcmask 257024
          %1097 = vst.msk [vmem:[#allocation2] sm:$0xf] %vm1096, %v1095
        $region136: #{my_bert_forward.1} parent=131 // pred_fallthru
          _
        %v1098 = vld [vmem:[#allocation2] sm:$0xf]
        %v1099 = vunpack.c.l.bf16 %v1098
        %v1100 = vld [vmem:[%s1013] sm:$0x1]
        %v1101 = vld [vmem:[%s1018] sm:$0xf]
        %v1102 = vld [vmem:[%s1018 + $0x4] sm:$0xf]
        %v1103 = vld [vmem:[%s1018 + $0x8] sm:$0xf]
        %v1104 = vld [vmem:[%s1018 + $0xc] sm:$0xf]
        %v1105 = vld [vmem:[%s1021] sm:$0x1]
        %v1107 = vlaneseq
        %v1108 = vshrl.u32 %v1107, 7
        %v1109 = vsub.s32 0, %v1108
        %v1110 = vrot.slane %v1105, %v1109
        %v1116 = vunpack.c.l.b16 %v1101
        %v1117 = vunpack.c.l.b16 %v1102
        %v1118 = vunpack.c.l.b16 %v1103
        %v1119 = vunpack.c.l.b16 %v1104
        %v1120 = vpack.c.b16 %v1117, %v1116
        %v1121 = vpack.c.b16 %v1119, %v1118
        %vm1124 = vcmask 261120
        %v1126 = vsel %vm1124, %v1098, 0
        %1128 = vmatprep.subr.bf16.mxu0 0
        %1129 = vmatpush1.bf16.msra.mxu0 %v1120
        %1130 = vmatprep.subr.bf16.mxu0 0
        %1131 = vmatpush1.bf16.msra.mxu0 %v1121
        %1132 = vmatprep.subr.bf16.mxu0 0
        %1133 = vmatpush1.bf16.msra.mxu0 0
        %1134 = vmatprep.subr.bf16.mxu0 0
        %1135 = vmatpush1.bf16.msra.mxu0 0
        %1136 = vmatprep.subr.bf16.mxu0 0
        %1137 = vmatpush1.bf16.msra.mxu0 0
        %1138 = vmatprep.subr.bf16.mxu0 0
        %1139 = vmatpush1.bf16.msra.mxu0 0
        %1140 = vmatprep.subr.bf16.mxu0 0
        %1141 = vmatpush1.bf16.msra.mxu0 0
        %1142 = vmatprep.subr.bf16.mxu0 0
        %1143 = vmatpush1.bf16.msra.mxu0 0
        %1144 = vmatprep.subr.bf16.mxu0 0
        %1145 = vmatpush1.bf16.msra.mxu0 0
        %1146 = vmatprep.subr.bf16.mxu0 0
        %1147 = vmatpush1.bf16.msra.mxu0 0
        %1148 = vmatprep.subr.bf16.mxu0 0
        %1149 = vmatpush1.bf16.msra.mxu0 0
        %1150 = vmatprep.subr.bf16.mxu0 0
        %1151 = vmatpush1.bf16.msra.mxu0 0
        %1152 = vmatprep.subr.bf16.mxu0 0
        %1153 = vmatpush1.bf16.msra.mxu0 0
        %1154 = vmatprep.subr.bf16.mxu0 0
        %1155 = vmatpush1.bf16.msra.mxu0 0
        %1156 = vmatprep.subr.bf16.mxu0 0
        %1157 = vmatpush1.bf16.msra.mxu0 0
        %1158 = vmatprep.subr.bf16.mxu0 0
        %1159 = vmatpush1.bf16.msra.mxu0 0
        %1160 = vmatprep.mubr.bf16.mxu0 0
        %1161 = vmatmul.mubr.bf16.gmra.mrb[0].mxu0 %v1126
        %v1162 = vpop.f32.mrb[0].mxu0
        %v1163 = vadd.f32 %v1110, %v1162
        %v1164 = vpop.f32.mrb[0].mxu0
        %v1165 = vpop.f32.mrb[0].mxu0
        %v1166 = vpop.f32.mrb[0].mxu0
        %1167 = vdwg.mxu0
        %v1168 = vpack.c.bf16 %v1163, %v1163
        %1170 = vrot.lane.b32.xlu0 %v1168, 96
        %v1171 = vpop.permute.xlu0 %1170
        %vm1172 = vcmask 64512
        %v1174 = vsel %vm1172, %v1168, 0
        %v1177 = vsel %vm1172, %v1171, 0
        %1179 = vmatprep.subr.bf16.mxu0 0
        %1180 = vmatpush1.bf16.xpose.msra.mxu0 %v1177
        %1181 = vmatprep.subr.bf16.mxu0 0
        %1182 = vmatpush1.bf16.xpose.msra.mxu0 0
        %1183 = vmatprep.subr.bf16.mxu0 0
        %1184 = vmatpush1.bf16.xpose.msra.mxu0 0
        %1185 = vmatprep.subr.bf16.mxu0 0
        %1186 = vmatpush1.bf16.xpose.msra.mxu0 0
        %1187 = vmatprep.subr.bf16.mxu0 0
        %1188 = vmatpush1.bf16.xpose.msra.mxu0 0
        %1189 = vmatprep.subr.bf16.mxu0 0
        %1190 = vmatpush1.bf16.xpose.msra.mxu0 0
        %1191 = vmatprep.subr.bf16.mxu0 0
        %1192 = vmatpush1.bf16.xpose.msra.mxu0 0
        %1193 = vmatprep.subr.bf16.mxu0 0
        %1194 = vmatpush1.bf16.xpose.msra.mxu0 0
        %1195 = vmatprep.subr.bf16.mxu0 0
        %1196 = vmatpush1.bf16.xpose.msra.mxu0 0
        %1197 = vmatprep.subr.bf16.mxu0 0
        %1198 = vmatpush1.bf16.xpose.msra.mxu0 0
        %1199 = vmatprep.subr.bf16.mxu0 0
        %1200 = vmatpush1.bf16.xpose.msra.mxu0 0
        %1201 = vmatprep.subr.bf16.mxu0 0
        %1202 = vmatpush1.bf16.xpose.msra.mxu0 0
        %1203 = vmatprep.subr.bf16.mxu0 0
        %1204 = vmatpush1.bf16.xpose.msra.mxu0 0
        %1205 = vmatprep.subr.bf16.mxu0 0
        %1206 = vmatpush1.bf16.xpose.msra.mxu0 0
        %1207 = vmatprep.subr.bf16.mxu0 0
        %1208 = vmatpush1.bf16.xpose.msra.mxu0 0
        %1209 = vmatprep.subr.bf16.mxu0 0
        %1210 = vmatpush1.bf16.xpose.msra.mxu0 0
        %1211 = vmatprep.mubr.bf16.mxu0 0
        %1212 = vmatmul.mubr.bf16.gmra.mrb[0].mxu0 %v1174
        %v1213 = vpop.f32.mrb[0].mxu0
        %v1214 = vadd.f32 0.0, %v1213
        %v1215 = vpop.f32.mrb[0].mxu0
        %v1216 = vpop.f32.mrb[0].mxu0
        %v1217 = vpop.f32.mrb[0].mxu0
        %1218 = vdwg.mxu0
        %v1219 = vmul.f32 %v1214, 0.35355338
        %v1221 = vlaneseq
        %v1222 = vshrl.u32 %v1221, 7
        %v1223 = vsub.s32 0, %v1222
        %v1224 = vrot.slane %v1100, %v1223
        %v1226 = vadd.f32 %v1219, %v1224
        %v1227 = vsel %vm1172, %v1226, -inf
        %1228 = vmax.xlane.f32.xlu0 %v1227
        %v1229 = vpop.xlane.xlu0 %1228
        %v1230 = vsub.f32 %v1226, %v1229
        %v1231 = vmul.f32 %v1230, 1.442695
        %v1232 = vpow.pop %v1231
        %v1233 = vsel %vm1172, %v1232, 0.0
        %1234 = vadd.xlane.f32.xlu0 %v1233
        %v1235 = vpop.xlane.xlu0 %1234
        %v1236 = vrcp.pop %v1235
        %v1237 = vmul.f32 %v1232, %v1236
        %v1238 = vpack.c.bf16 %v1237, %v1237
        %1239 = vrot.lane.b32.xlu0 %v1168, 64
        %v1240 = vpop.permute.xlu0 %1239
        %v1242 = vsel %vm1172, %v1238, 0
        %vm1244 = vcmask 1043456
        %v1246 = vsel %vm1244, %v1240, 0
        %1248 = vmatprep.subr.bf16.mxu0 0
        %1249 = vmatpush1.bf16.msra.mxu0 %v1246
        %1250 = vmatprep.subr.bf16.mxu0 0
        %1251 = vmatpush1.bf16.msra.mxu0 0
        %1252 = vmatprep.subr.bf16.mxu0 0
        %1253 = vmatpush1.bf16.msra.mxu0 0
        %1254 = vmatprep.subr.bf16.mxu0 0
        %1255 = vmatpush1.bf16.msra.mxu0 0
        %1256 = vmatprep.subr.bf16.mxu0 0
        %1257 = vmatpush1.bf16.msra.mxu0 0
        %1258 = vmatprep.subr.bf16.mxu0 0
        %1259 = vmatpush1.bf16.msra.mxu0 0
        %1260 = vmatprep.subr.bf16.mxu0 0
        %1261 = vmatpush1.bf16.msra.mxu0 0
        %1262 = vmatprep.subr.bf16.mxu0 0
        %1263 = vmatpush1.bf16.msra.mxu0 0
        %1264 = vmatprep.subr.bf16.mxu0 0
        %1265 = vmatpush1.bf16.msra.mxu0 0
        %1266 = vmatprep.subr.bf16.mxu0 0
        %1267 = vmatpush1.bf16.msra.mxu0 0
        %1268 = vmatprep.subr.bf16.mxu0 0
        %1269 = vmatpush1.bf16.msra.mxu0 0
        %1270 = vmatprep.subr.bf16.mxu0 0
        %1271 = vmatpush1.bf16.msra.mxu0 0
        %1272 = vmatprep.subr.bf16.mxu0 0
        %1273 = vmatpush1.bf16.msra.mxu0 0
        %1274 = vmatprep.subr.bf16.mxu0 0
        %1275 = vmatpush1.bf16.msra.mxu0 0
        %1276 = vmatprep.subr.bf16.mxu0 0
        %1277 = vmatpush1.bf16.msra.mxu0 0
        %1278 = vmatprep.subr.bf16.mxu0 0
        %1279 = vmatpush1.bf16.msra.mxu0 0
        %1280 = vmatprep.mubr.bf16.mxu0 0
        %1281 = vmatmul.mubr.bf16.gmra.mrb[0].mxu0 %v1242
        %v1282 = vpop.f32.mrb[0].mxu0
        %v1283 = vadd.f32 0.0, %v1282
        %v1284 = vpop.f32.mrb[0].mxu0
        %v1285 = vpop.f32.mrb[0].mxu0
        %v1286 = vpop.f32.mrb[0].mxu0
        %1287 = vdwg.mxu0
        %v1288 = vpack.c.bf16 %v1283, %v1283
        %v1289 = vld [vmem:[%s1026] sm:$0xf]
        %1290 = vrot.lane.b32.xlu0 %v1168, 120
        %v1291 = vpop.permute.xlu0 %1290
        %1292 = vrot.lane.b32.xlu0 %v1168, 88
        %v1293 = vpop.permute.xlu0 %1292
        %v1295 = vsel %vm1172, %v1291, 0
        %v1298 = vsel %vm1172, %v1293, 0
        %1300 = vmatprep.subr.bf16.mxu0 0
        %1301 = vmatpush1.bf16.xpose.msra.mxu0 %v1298
        %1302 = vmatprep.subr.bf16.mxu0 0
        %1303 = vmatpush1.bf16.xpose.msra.mxu0 0
        %1304 = vmatprep.subr.bf16.mxu0 0
        %1305 = vmatpush1.bf16.xpose.msra.mxu0 0
        %1306 = vmatprep.subr.bf16.mxu0 0
        %1307 = vmatpush1.bf16.xpose.msra.mxu0 0
        %1308 = vmatprep.subr.bf16.mxu0 0
        %1309 = vmatpush1.bf16.xpose.msra.mxu0 0
        %1310 = vmatprep.subr.bf16.mxu0 0
        %1311 = vmatpush1.bf16.xpose.msra.mxu0 0
        %1312 = vmatprep.subr.bf16.mxu0 0
        %1313 = vmatpush1.bf16.xpose.msra.mxu0 0
        %1314 = vmatprep.subr.bf16.mxu0 0
        %1315 = vmatpush1.bf16.xpose.msra.mxu0 0
        %1316 = vmatprep.subr.bf16.mxu0 0
        %1317 = vmatpush1.bf16.xpose.msra.mxu0 0
        %1318 = vmatprep.subr.bf16.mxu0 0
        %1319 = vmatpush1.bf16.xpose.msra.mxu0 0
        %1320 = vmatprep.subr.bf16.mxu0 0
        %1321 = vmatpush1.bf16.xpose.msra.mxu0 0
        %1322 = vmatprep.subr.bf16.mxu0 0
        %1323 = vmatpush1.bf16.xpose.msra.mxu0 0
        %1324 = vmatprep.subr.bf16.mxu0 0
        %1325 = vmatpush1.bf16.xpose.msra.mxu0 0
        %1326 = vmatprep.subr.bf16.mxu0 0
        %1327 = vmatpush1.bf16.xpose.msra.mxu0 0
        %1328 = vmatprep.subr.bf16.mxu0 0
        %1329 = vmatpush1.bf16.xpose.msra.mxu0 0
        %1330 = vmatprep.subr.bf16.mxu0 0
        %1331 = vmatpush1.bf16.xpose.msra.mxu0 0
        %1332 = vmatprep.mubr.bf16.mxu0 0
        %1333 = vmatmul.mubr.bf16.gmra.mrb[0].mxu0 %v1295
        %v1334 = vpop.f32.mrb[0].mxu0
        %v1335 = vadd.f32 0.0, %v1334
        %v1336 = vpop.f32.mrb[0].mxu0
        %v1337 = vpop.f32.mrb[0].mxu0
        %v1338 = vpop.f32.mrb[0].mxu0
        %1339 = vdwg.mxu0
        %v1340 = vmul.f32 %v1335, 0.35355338
        %v1341 = vadd.f32 %v1340, %v1224
        %v1342 = vsel %vm1172, %v1341, -inf
        %1343 = vmax.xlane.f32.xlu0 %v1342
        %v1344 = vpop.xlane.xlu0 %1343
        %v1345 = vsub.f32 %v1341, %v1344
        %v1346 = vmul.f32 %v1345, 1.442695
        %v1347 = vpow.pop %v1346
        %v1348 = vsel %vm1172, %v1347, 0.0
        %1349 = vadd.xlane.f32.xlu0 %v1348
        %v1350 = vpop.xlane.xlu0 %1349
        %v1351 = vrcp.pop %v1350
        %v1352 = vmul.f32 %v1347, %v1351
        %v1353 = vpack.c.bf16 %v1352, %v1352
        %1354 = vrot.lane.b32.xlu0 %v1168, 56
        %v1355 = vpop.permute.xlu0 %1354
        %v1357 = vsel %vm1172, %v1353, 0
        %v1360 = vsel %vm1244, %v1355, 0
        %1362 = vmatprep.subr.bf16.mxu0 0
        %1363 = vmatpush1.bf16.msra.mxu0 %v1360
        %1364 = vmatprep.subr.bf16.mxu0 0
        %1365 = vmatpush1.bf16.msra.mxu0 0
        %1366 = vmatprep.subr.bf16.mxu0 0
        %1367 = vmatpush1.bf16.msra.mxu0 0
        %1368 = vmatprep.subr.bf16.mxu0 0
        %1369 = vmatpush1.bf16.msra.mxu0 0
        %1370 = vmatprep.subr.bf16.mxu0 0
        %1371 = vmatpush1.bf16.msra.mxu0 0
        %1372 = vmatprep.subr.bf16.mxu0 0
        %1373 = vmatpush1.bf16.msra.mxu0 0
        %1374 = vmatprep.subr.bf16.mxu0 0
        %1375 = vmatpush1.bf16.msra.mxu0 0
        %1376 = vmatprep.subr.bf16.mxu0 0
        %1377 = vmatpush1.bf16.msra.mxu0 0
        %1378 = vmatprep.subr.bf16.mxu0 0
        %1379 = vmatpush1.bf16.msra.mxu0 0
        %1380 = vmatprep.subr.bf16.mxu0 0
        %1381 = vmatpush1.bf16.msra.mxu0 0
        %1382 = vmatprep.subr.bf16.mxu0 0
        %1383 = vmatpush1.bf16.msra.mxu0 0
        %1384 = vmatprep.subr.bf16.mxu0 0
        %1385 = vmatpush1.bf16.msra.mxu0 0
        %1386 = vmatprep.subr.bf16.mxu0 0
        %1387 = vmatpush1.bf16.msra.mxu0 0
        %1388 = vmatprep.subr.bf16.mxu0 0
        %1389 = vmatpush1.bf16.msra.mxu0 0
        %1390 = vmatprep.subr.bf16.mxu0 0
        %1391 = vmatpush1.bf16.msra.mxu0 0
        %1392 = vmatprep.subr.bf16.mxu0 0
        %1393 = vmatpush1.bf16.msra.mxu0 0
        %1394 = vmatprep.mubr.bf16.mxu0 0
        %1395 = vmatmul.mubr.bf16.gmra.mrb[0].mxu0 %v1357
        %v1396 = vpop.f32.mrb[0].mxu0
        %v1397 = vadd.f32 0.0, %v1396
        %v1398 = vpop.f32.mrb[0].mxu0
        %v1399 = vpop.f32.mrb[0].mxu0
        %v1400 = vpop.f32.mrb[0].mxu0
        %1401 = vdwg.mxu0
        %v1402 = vpack.c.bf16 %v1397, %v1397
        %v1403 = vld [vmem:[%s1026 + $0x4] sm:$0xf]
        %v1405 = vsel %vm1172, %v1402, 0
        %v1408 = vsel %vm1244, %v1403, 0
        %1410 = vmatprep.subr.bf16.mxu0 0
        %1411 = vmatpush1.bf16.msra.mxu0 %v1408
        %1412 = vmatprep.subr.bf16.mxu0 0
        %1413 = vmatpush1.bf16.msra.mxu0 0
        %1414 = vmatprep.subr.bf16.mxu0 0
        %1415 = vmatpush1.bf16.msra.mxu0 0
        %1416 = vmatprep.subr.bf16.mxu0 0
        %1417 = vmatpush1.bf16.msra.mxu0 0
        %1418 = vmatprep.subr.bf16.mxu0 0
        %1419 = vmatpush1.bf16.msra.mxu0 0
        %1420 = vmatprep.subr.bf16.mxu0 0
        %1421 = vmatpush1.bf16.msra.mxu0 0
        %1422 = vmatprep.subr.bf16.mxu0 0
        %1423 = vmatpush1.bf16.msra.mxu0 0
        %1424 = vmatprep.subr.bf16.mxu0 0
        %1425 = vmatpush1.bf16.msra.mxu0 0
        %1426 = vmatprep.subr.bf16.mxu0 0
        %1427 = vmatpush1.bf16.msra.mxu0 0
        %1428 = vmatprep.subr.bf16.mxu0 0
        %1429 = vmatpush1.bf16.msra.mxu0 0
        %1430 = vmatprep.subr.bf16.mxu0 0
        %1431 = vmatpush1.bf16.msra.mxu0 0
        %1432 = vmatprep.subr.bf16.mxu0 0
        %1433 = vmatpush1.bf16.msra.mxu0 0
        %1434 = vmatprep.subr.bf16.mxu0 0
        %1435 = vmatpush1.bf16.msra.mxu0 0
        %1436 = vmatprep.subr.bf16.mxu0 0
        %1437 = vmatpush1.bf16.msra.mxu0 0
        %1438 = vmatprep.subr.bf16.mxu0 0
        %1439 = vmatpush1.bf16.msra.mxu0 0
        %1440 = vmatprep.subr.bf16.mxu0 0
        %1441 = vmatpush1.bf16.msra.mxu0 0
        %1442 = vmatprep.mubr.bf16.mxu0 0
        %1443 = vmatmul.mubr.bf16.gmra.mrb[0].mxu0 %v1405
        %v1444 = vpop.f32.mrb[0].mxu0
        %v1445 = vadd.f32 0.0, %v1444
        %v1446 = vpop.f32.mrb[0].mxu0
        %v1447 = vpop.f32.mrb[0].mxu0
        %v1448 = vpop.f32.mrb[0].mxu0
        %1449 = vdwg.mxu0
        %v1451 = vsel %vm1172, %v1288, 0
        %v1454 = vsel %vm1244, %v1289, 0
        %1456 = vmatprep.subr.bf16.mxu0 0
        %1457 = vmatpush1.bf16.msra.mxu0 %v1454
        %1458 = vmatprep.subr.bf16.mxu0 0
        %1459 = vmatpush1.bf16.msra.mxu0 0
        %1460 = vmatprep.subr.bf16.mxu0 0
        %1461 = vmatpush1.bf16.msra.mxu0 0
        %1462 = vmatprep.subr.bf16.mxu0 0
        %1463 = vmatpush1.bf16.msra.mxu0 0
        %1464 = vmatprep.subr.bf16.mxu0 0
        %1465 = vmatpush1.bf16.msra.mxu0 0
        %1466 = vmatprep.subr.bf16.mxu0 0
        %1467 = vmatpush1.bf16.msra.mxu0 0
        %1468 = vmatprep.subr.bf16.mxu0 0
        %1469 = vmatpush1.bf16.msra.mxu0 0
        %1470 = vmatprep.subr.bf16.mxu0 0
        %1471 = vmatpush1.bf16.msra.mxu0 0
        %1472 = vmatprep.subr.bf16.mxu0 0
        %1473 = vmatpush1.bf16.msra.mxu0 0
        %1474 = vmatprep.subr.bf16.mxu0 0
        %1475 = vmatpush1.bf16.msra.mxu0 0
        %1476 = vmatprep.subr.bf16.mxu0 0
        %1477 = vmatpush1.bf16.msra.mxu0 0
        %1478 = vmatprep.subr.bf16.mxu0 0
        %1479 = vmatpush1.bf16.msra.mxu0 0
        %1480 = vmatprep.subr.bf16.mxu0 0
        %1481 = vmatpush1.bf16.msra.mxu0 0
        %1482 = vmatprep.subr.bf16.mxu0 0
        %1483 = vmatpush1.bf16.msra.mxu0 0
        %1484 = vmatprep.subr.bf16.mxu0 0
        %1485 = vmatpush1.bf16.msra.mxu0 0
        %1486 = vmatprep.subr.bf16.mxu0 0
        %1487 = vmatpush1.bf16.msra.mxu0 0
        %1488 = vmatprep.mubr.bf16.mxu0 0
        %1489 = vmatmul.mubr.bf16.gmra.mrb[0].mxu0 %v1451
        %v1490 = vpop.f32.mrb[0].mxu0
        %v1491 = vadd.f32 %v1445, %v1490
        %v1492 = vpop.f32.mrb[0].mxu0
        %v1493 = vpop.f32.mrb[0].mxu0
        %v1494 = vpop.f32.mrb[0].mxu0
        %1495 = vdwg.mxu0
        %1496 = vrot.lane.b32.xlu0 %v1168, 112
        %v1497 = vpop.permute.xlu0 %1496
        %1498 = vrot.lane.b32.xlu0 %v1168, 80
        %v1499 = vpop.permute.xlu0 %1498
        %v1501 = vsel %vm1172, %v1497, 0
        %v1504 = vsel %vm1172, %v1499, 0
        %1506 = vmatprep.subr.bf16.mxu0 0
        %1507 = vmatpush1.bf16.xpose.msra.mxu0 %v1504
        %1508 = vmatprep.subr.bf16.mxu0 0
        %1509 = vmatpush1.bf16.xpose.msra.mxu0 0
        %1510 = vmatprep.subr.bf16.mxu0 0
        %1511 = vmatpush1.bf16.xpose.msra.mxu0 0
        %1512 = vmatprep.subr.bf16.mxu0 0
        %1513 = vmatpush1.bf16.xpose.msra.mxu0 0
        %1514 = vmatprep.subr.bf16.mxu0 0
        %1515 = vmatpush1.bf16.xpose.msra.mxu0 0
        %1516 = vmatprep.subr.bf16.mxu0 0
        %1517 = vmatpush1.bf16.xpose.msra.mxu0 0
        %1518 = vmatprep.subr.bf16.mxu0 0
        %1519 = vmatpush1.bf16.xpose.msra.mxu0 0
        %1520 = vmatprep.subr.bf16.mxu0 0
        %1521 = vmatpush1.bf16.xpose.msra.mxu0 0
        %1522 = vmatprep.subr.bf16.mxu0 0
        %1523 = vmatpush1.bf16.xpose.msra.mxu0 0
        %1524 = vmatprep.subr.bf16.mxu0 0
        %1525 = vmatpush1.bf16.xpose.msra.mxu0 0
        %1526 = vmatprep.subr.bf16.mxu0 0
        %1527 = vmatpush1.bf16.xpose.msra.mxu0 0
        %1528 = vmatprep.subr.bf16.mxu0 0
        %1529 = vmatpush1.bf16.xpose.msra.mxu0 0
        %1530 = vmatprep.subr.bf16.mxu0 0
        %1531 = vmatpush1.bf16.xpose.msra.mxu0 0
        %1532 = vmatprep.subr.bf16.mxu0 0
        %1533 = vmatpush1.bf16.xpose.msra.mxu0 0
        %1534 = vmatprep.subr.bf16.mxu0 0
        %1535 = vmatpush1.bf16.xpose.msra.mxu0 0
        %1536 = vmatprep.subr.bf16.mxu0 0
        %1537 = vmatpush1.bf16.xpose.msra.mxu0 0
        %1538 = vmatprep.mubr.bf16.mxu0 0
        %1539 = vmatmul.mubr.bf16.gmra.mrb[0].mxu0 %v1501
        %v1540 = vpop.f32.mrb[0].mxu0
        %v1541 = vadd.f32 0.0, %v1540
        %v1542 = vpop.f32.mrb[0].mxu0
        %v1543 = vpop.f32.mrb[0].mxu0
        %v1544 = vpop.f32.mrb[0].mxu0
        %1545 = vdwg.mxu0
        %v1546 = vmul.f32 %v1541, 0.35355338
        %v1547 = vadd.f32 %v1546, %v1224
        %v1548 = vsel %vm1172, %v1547, -inf
        %1549 = vmax.xlane.f32.xlu0 %v1548
        %v1550 = vpop.xlane.xlu0 %1549
        %v1551 = vsub.f32 %v1547, %v1550
        %v1552 = vmul.f32 %v1551, 1.442695
        %v1553 = vpow.pop %v1552
        %v1554 = vsel %vm1172, %v1553, 0.0
        %1555 = vadd.xlane.f32.xlu0 %v1554
        %v1556 = vpop.xlane.xlu0 %1555
        %v1557 = vrcp.pop %v1556
        %v1558 = vmul.f32 %v1553, %v1557
        %v1559 = vpack.c.bf16 %v1558, %v1558
        %1560 = vrot.lane.b32.xlu0 %v1168, 48
        %v1561 = vpop.permute.xlu0 %1560
        %v1563 = vsel %vm1172, %v1559, 0
        %v1566 = vsel %vm1244, %v1561, 0
        %1568 = vmatprep.subr.bf16.mxu0 0
        %1569 = vmatpush1.bf16.msra.mxu0 %v1566
        %1570 = vmatprep.subr.bf16.mxu0 0
        %1571 = vmatpush1.bf16.msra.mxu0 0
        %1572 = vmatprep.subr.bf16.mxu0 0
        %1573 = vmatpush1.bf16.msra.mxu0 0
        %1574 = vmatprep.subr.bf16.mxu0 0
        %1575 = vmatpush1.bf16.msra.mxu0 0
        %1576 = vmatprep.subr.bf16.mxu0 0
        %1577 = vmatpush1.bf16.msra.mxu0 0
        %1578 = vmatprep.subr.bf16.mxu0 0
        %1579 = vmatpush1.bf16.msra.mxu0 0
        %1580 = vmatprep.subr.bf16.mxu0 0
        %1581 = vmatpush1.bf16.msra.mxu0 0
        %1582 = vmatprep.subr.bf16.mxu0 0
        %1583 = vmatpush1.bf16.msra.mxu0 0
        %1584 = vmatprep.subr.bf16.mxu0 0
        %1585 = vmatpush1.bf16.msra.mxu0 0
        %1586 = vmatprep.subr.bf16.mxu0 0
        %1587 = vmatpush1.bf16.msra.mxu0 0
        %1588 = vmatprep.subr.bf16.mxu0 0
        %1589 = vmatpush1.bf16.msra.mxu0 0
        %1590 = vmatprep.subr.bf16.mxu0 0
        %1591 = vmatpush1.bf16.msra.mxu0 0
        %1592 = vmatprep.subr.bf16.mxu0 0
        %1593 = vmatpush1.bf16.msra.mxu0 0
        %1594 = vmatprep.subr.bf16.mxu0 0
        %1595 = vmatpush1.bf16.msra.mxu0 0
        %1596 = vmatprep.subr.bf16.mxu0 0
        %1597 = vmatpush1.bf16.msra.mxu0 0
        %1598 = vmatprep.subr.bf16.mxu0 0
        %1599 = vmatpush1.bf16.msra.mxu0 0
        %1600 = vmatprep.mubr.bf16.mxu0 0
        %1601 = vmatmul.mubr.bf16.gmra.mrb[0].mxu0 %v1563
        %v1602 = vpop.f32.mrb[0].mxu0
        %v1603 = vadd.f32 0.0, %v1602
        %v1604 = vpop.f32.mrb[0].mxu0
        %v1605 = vpop.f32.mrb[0].mxu0
        %v1606 = vpop.f32.mrb[0].mxu0
        %1607 = vdwg.mxu0
        %v1608 = vpack.c.bf16 %v1603, %v1603
        %v1609 = vld [vmem:[%s1026 + $0x8] sm:$0xf]
        %v1611 = vsel %vm1172, %v1608, 0
        %v1614 = vsel %vm1244, %v1609, 0
        %1616 = vmatprep.subr.bf16.mxu0 0
        %1617 = vmatpush1.bf16.msra.mxu0 %v1614
        %1618 = vmatprep.subr.bf16.mxu0 0
        %1619 = vmatpush1.bf16.msra.mxu0 0
        %1620 = vmatprep.subr.bf16.mxu0 0
        %1621 = vmatpush1.bf16.msra.mxu0 0
        %1622 = vmatprep.subr.bf16.mxu0 0
        %1623 = vmatpush1.bf16.msra.mxu0 0
        %1624 = vmatprep.subr.bf16.mxu0 0
        %1625 = vmatpush1.bf16.msra.mxu0 0
        %1626 = vmatprep.subr.bf16.mxu0 0
        %1627 = vmatpush1.bf16.msra.mxu0 0
        %1628 = vmatprep.subr.bf16.mxu0 0
        %1629 = vmatpush1.bf16.msra.mxu0 0
        %1630 = vmatprep.subr.bf16.mxu0 0
        %1631 = vmatpush1.bf16.msra.mxu0 0
        %1632 = vmatprep.subr.bf16.mxu0 0
        %1633 = vmatpush1.bf16.msra.mxu0 0
        %1634 = vmatprep.subr.bf16.mxu0 0
        %1635 = vmatpush1.bf16.msra.mxu0 0
        %1636 = vmatprep.subr.bf16.mxu0 0
        %1637 = vmatpush1.bf16.msra.mxu0 0
        %1638 = vmatprep.subr.bf16.mxu0 0
        %1639 = vmatpush1.bf16.msra.mxu0 0
        %1640 = vmatprep.subr.bf16.mxu0 0
        %1641 = vmatpush1.bf16.msra.mxu0 0
        %1642 = vmatprep.subr.bf16.mxu0 0
        %1643 = vmatpush1.bf16.msra.mxu0 0
        %1644 = vmatprep.subr.bf16.mxu0 0
        %1645 = vmatpush1.bf16.msra.mxu0 0
        %1646 = vmatprep.subr.bf16.mxu0 0
        %1647 = vmatpush1.bf16.msra.mxu0 0
        %1648 = vmatprep.mubr.bf16.mxu0 0
        %1649 = vmatmul.mubr.bf16.gmra.mrb[0].mxu0 %v1611
        %v1650 = vpop.f32.mrb[0].mxu0
        %v1651 = vadd.f32 0.0, %v1650
        %v1652 = vpop.f32.mrb[0].mxu0
        %v1653 = vpop.f32.mrb[0].mxu0
        %v1654 = vpop.f32.mrb[0].mxu0
        %1655 = vdwg.mxu0
        %v1656 = vadd.f32 %v1491, %v1651
        %1657 = vrot.lane.b32.xlu0 %v1168, 104
        %v1658 = vpop.permute.xlu0 %1657
        %1659 = vrot.lane.b32.xlu0 %v1168, 72
        %v1660 = vpop.permute.xlu0 %1659
        %v1662 = vsel %vm1172, %v1658, 0
        %v1665 = vsel %vm1172, %v1660, 0
        %1667 = vmatprep.subr.bf16.mxu0 0
        %1668 = vmatpush1.bf16.xpose.msra.mxu0 %v1665
        %1669 = vmatprep.subr.bf16.mxu0 0
        %1670 = vmatpush1.bf16.xpose.msra.mxu0 0
        %1671 = vmatprep.subr.bf16.mxu0 0
        %1672 = vmatpush1.bf16.xpose.msra.mxu0 0
        %1673 = vmatprep.subr.bf16.mxu0 0
        %1674 = vmatpush1.bf16.xpose.msra.mxu0 0
        %1675 = vmatprep.subr.bf16.mxu0 0
        %1676 = vmatpush1.bf16.xpose.msra.mxu0 0
        %1677 = vmatprep.subr.bf16.mxu0 0
        %1678 = vmatpush1.bf16.xpose.msra.mxu0 0
        %1679 = vmatprep.subr.bf16.mxu0 0
        %1680 = vmatpush1.bf16.xpose.msra.mxu0 0
        %1681 = vmatprep.subr.bf16.mxu0 0
        %1682 = vmatpush1.bf16.xpose.msra.mxu0 0
        %1683 = vmatprep.subr.bf16.mxu0 0
        %1684 = vmatpush1.bf16.xpose.msra.mxu0 0
        %1685 = vmatprep.subr.bf16.mxu0 0
        %1686 = vmatpush1.bf16.xpose.msra.mxu0 0
        %1687 = vmatprep.subr.bf16.mxu0 0
        %1688 = vmatpush1.bf16.xpose.msra.mxu0 0
        %1689 = vmatprep.subr.bf16.mxu0 0
        %1690 = vmatpush1.bf16.xpose.msra.mxu0 0
        %1691 = vmatprep.subr.bf16.mxu0 0
        %1692 = vmatpush1.bf16.xpose.msra.mxu0 0
        %1693 = vmatprep.subr.bf16.mxu0 0
        %1694 = vmatpush1.bf16.xpose.msra.mxu0 0
        %1695 = vmatprep.subr.bf16.mxu0 0
        %1696 = vmatpush1.bf16.xpose.msra.mxu0 0
        %1697 = vmatprep.subr.bf16.mxu0 0
        %1698 = vmatpush1.bf16.xpose.msra.mxu0 0
        %1699 = vmatprep.mubr.bf16.mxu0 0
        %1700 = vmatmul.mubr.bf16.gmra.mrb[0].mxu0 %v1662
        %v1701 = vpop.f32.mrb[0].mxu0
        %v1702 = vadd.f32 0.0, %v1701
        %v1703 = vpop.f32.mrb[0].mxu0
        %v1704 = vpop.f32.mrb[0].mxu0
        %v1705 = vpop.f32.mrb[0].mxu0
        %1706 = vdwg.mxu0
        %v1707 = vmul.f32 %v1702, 0.35355338
        %v1708 = vadd.f32 %v1707, %v1224
        %v1709 = vsel %vm1172, %v1708, -inf
        %1710 = vmax.xlane.f32.xlu0 %v1709
        %v1711 = vpop.xlane.xlu0 %1710
        %v1712 = vsub.f32 %v1708, %v1711
        %v1713 = vmul.f32 %v1712, 1.442695
        %v1714 = vpow.pop %v1713
        %v1715 = vsel %vm1172, %v1714, 0.0
        %1716 = vadd.xlane.f32.xlu0 %v1715
        %v1717 = vpop.xlane.xlu0 %1716
        %v1718 = vrcp.pop %v1717
        %v1719 = vmul.f32 %v1714, %v1718
        %v1720 = vpack.c.bf16 %v1719, %v1719
        %1721 = vrot.lane.b32.xlu0 %v1168, 40
        %v1722 = vpop.permute.xlu0 %1721
        %v1724 = vsel %vm1172, %v1720, 0
        %v1727 = vsel %vm1244, %v1722, 0
        %1729 = vmatprep.subr.bf16.mxu0 0
        %1730 = vmatpush1.bf16.msra.mxu0 %v1727
        %1731 = vmatprep.subr.bf16.mxu0 0
        %1732 = vmatpush1.bf16.msra.mxu0 0
        %1733 = vmatprep.subr.bf16.mxu0 0
        %1734 = vmatpush1.bf16.msra.mxu0 0
        %1735 = vmatprep.subr.bf16.mxu0 0
        %1736 = vmatpush1.bf16.msra.mxu0 0
        %1737 = vmatprep.subr.bf16.mxu0 0
        %1738 = vmatpush1.bf16.msra.mxu0 0
        %1739 = vmatprep.subr.bf16.mxu0 0
        %1740 = vmatpush1.bf16.msra.mxu0 0
        %1741 = vmatprep.subr.bf16.mxu0 0
        %1742 = vmatpush1.bf16.msra.mxu0 0
        %1743 = vmatprep.subr.bf16.mxu0 0
        %1744 = vmatpush1.bf16.msra.mxu0 0
        %1745 = vmatprep.subr.bf16.mxu0 0
        %1746 = vmatpush1.bf16.msra.mxu0 0
        %1747 = vmatprep.subr.bf16.mxu0 0
        %1748 = vmatpush1.bf16.msra.mxu0 0
        %1749 = vmatprep.subr.bf16.mxu0 0
        %1750 = vmatpush1.bf16.msra.mxu0 0
        %1751 = vmatprep.subr.bf16.mxu0 0
        %1752 = vmatpush1.bf16.msra.mxu0 0
        %1753 = vmatprep.subr.bf16.mxu0 0
        %1754 = vmatpush1.bf16.msra.mxu0 0
        %1755 = vmatprep.subr.bf16.mxu0 0
        %1756 = vmatpush1.bf16.msra.mxu0 0
        %1757 = vmatprep.subr.bf16.mxu0 0
        %1758 = vmatpush1.bf16.msra.mxu0 0
        %1759 = vmatprep.subr.bf16.mxu0 0
        %1760 = vmatpush1.bf16.msra.mxu0 0
        %1761 = vmatprep.mubr.bf16.mxu0 0
        %1762 = vmatmul.mubr.bf16.gmra.mrb[0].mxu0 %v1724
        %v1763 = vpop.f32.mrb[0].mxu0
        %v1764 = vadd.f32 0.0, %v1763
        %v1765 = vpop.f32.mrb[0].mxu0
        %v1766 = vpop.f32.mrb[0].mxu0
        %v1767 = vpop.f32.mrb[0].mxu0
        %1768 = vdwg.mxu0
        %v1769 = vpack.c.bf16 %v1764, %v1764
        %v1770 = vld [vmem:[%s1026 + $0xc] sm:$0xf]
        %v1772 = vsel %vm1172, %v1769, 0
        %v1775 = vsel %vm1244, %v1770, 0
        %1777 = vmatprep.subr.bf16.mxu0 0
        %1778 = vmatpush1.bf16.msra.mxu0 %v1775
        %1779 = vmatprep.subr.bf16.mxu0 0
        %1780 = vmatpush1.bf16.msra.mxu0 0
        %1781 = vmatprep.subr.bf16.mxu0 0
        %1782 = vmatpush1.bf16.msra.mxu0 0
        %1783 = vmatprep.subr.bf16.mxu0 0
        %1784 = vmatpush1.bf16.msra.mxu0 0
        %1785 = vmatprep.subr.bf16.mxu0 0
        %1786 = vmatpush1.bf16.msra.mxu0 0
        %1787 = vmatprep.subr.bf16.mxu0 0
        %1788 = vmatpush1.bf16.msra.mxu0 0
        %1789 = vmatprep.subr.bf16.mxu0 0
        %1790 = vmatpush1.bf16.msra.mxu0 0
        %1791 = vmatprep.subr.bf16.mxu0 0
        %1792 = vmatpush1.bf16.msra.mxu0 0
        %1793 = vmatprep.subr.bf16.mxu0 0
        %1794 = vmatpush1.bf16.msra.mxu0 0
        %1795 = vmatprep.subr.bf16.mxu0 0
        %1796 = vmatpush1.bf16.msra.mxu0 0
        %1797 = vmatprep.subr.bf16.mxu0 0
        %1798 = vmatpush1.bf16.msra.mxu0 0
        %1799 = vmatprep.subr.bf16.mxu0 0
        %1800 = vmatpush1.bf16.msra.mxu0 0
        %1801 = vmatprep.subr.bf16.mxu0 0
        %1802 = vmatpush1.bf16.msra.mxu0 0
        %1803 = vmatprep.subr.bf16.mxu0 0
        %1804 = vmatpush1.bf16.msra.mxu0 0
        %1805 = vmatprep.subr.bf16.mxu0 0
        %1806 = vmatpush1.bf16.msra.mxu0 0
        %1807 = vmatprep.subr.bf16.mxu0 0
        %1808 = vmatpush1.bf16.msra.mxu0 0
        %1809 = vmatprep.mubr.bf16.mxu0 0
        %1810 = vmatmul.mubr.bf16.gmra.mrb[0].mxu0 %v1772
        %v1811 = vpop.f32.mrb[0].mxu0
        %v1812 = vadd.f32 0.0, %v1811
        %v1813 = vpop.f32.mrb[0].mxu0
        %v1814 = vpop.f32.mrb[0].mxu0
        %v1815 = vpop.f32.mrb[0].mxu0
        %1816 = vdwg.mxu0
        %v1817 = vadd.f32 %v1656, %v1812
        %v1818 = vld [vmem:[%s1029] sm:$0x1]
        %v1820 = vlaneseq
        %v1821 = vshrl.u32 %v1820, 7
        %v1822 = vsub.s32 0, %v1821
        %v1823 = vrot.slane %v1818, %v1822
        %v1825 = vadd.f32 %v1817, %v1823
        %v1826 = vadd.f32 %v1825, %v1099
        %v1827 = vld [vmem:[%s1032] sm:$0x1]
        %v1828 = vld [vmem:[%s1035] sm:$0x1]
        %v1829 = vsel %vm1124, %v1826, 0.0
        %1830 = vadd.xlane.f32.xlu0 %v1829
        %v1831 = vpop.xlane.xlu0 %1830
        %v1832 = vrcp.pop 32.0
        %v1833 = vmul.f32 %v1831, %v1832
        %v1834 = vsub.f32 %v1826, %v1833
        %v1835 = vmul.f32 %v1834, %v1834
        %v1836 = vsel %vm1124, %v1835, 0.0
        %1837 = vadd.xlane.f32.xlu0 %v1836
        %v1838 = vpop.xlane.xlu0 %1837
        %v1839 = vmul.f32 %v1838, %v1832
        %v1840 = vadd.f32 %v1839, 1e-05
        %v1841 = vrsqrt.pop %v1840
        %v1842 = vmul.f32 %v1834, %v1841
        %v1844 = vlaneseq
        %v1845 = vshrl.u32 %v1844, 7
        %v1846 = vsub.s32 0, %v1845
        %v1847 = vrot.slane %v1827, %v1846
        %v1849 = vmul.f32 %v1842, %v1847
        %v1851 = vlaneseq
        %v1852 = vshrl.u32 %v1851, 7
        %v1853 = vsub.s32 0, %v1852
        %v1854 = vrot.slane %v1828, %v1853
        %v1856 = vadd.f32 %v1849, %v1854
        %v1857 = vld [vmem:[%s1040] sm:$0xf]
        %v1858 = vld [vmem:[%s1040 + $0x4] sm:$0xf]
        %v1859 = vld [vmem:[%s1040 + $0x8] sm:$0xf]
        %v1860 = vld [vmem:[%s1040 + $0xc] sm:$0xf]
        %v1861 = vld [vmem:[%s1043] sm:$0x1]
        %v1862 = vpack.c.bf16 %v1856, %v1856
        %v1864 = vlaneseq
        %v1865 = vshrl.u32 %v1864, 7
        %v1866 = vsub.s32 0, %v1865
        %v1867 = vrot.slane %v1861, %v1866
        %v1873 = vunpack.c.l.b16 %v1857
        %v1874 = vunpack.c.l.b16 %v1858
        %v1875 = vunpack.c.l.b16 %v1859
        %v1876 = vunpack.c.l.b16 %v1860
        %v1877 = vpack.c.b16 %v1874, %v1873
        %v1878 = vpack.c.b16 %v1876, %v1875
        %v1882 = vsel %vm1124, %v1862, 0
        %1884 = vmatprep.subr.bf16.mxu0 0
        %1885 = vmatpush1.bf16.msra.mxu0 %v1877
        %1886 = vmatprep.subr.bf16.mxu0 0
        %1887 = vmatpush1.bf16.msra.mxu0 %v1878
        %1888 = vmatprep.subr.bf16.mxu0 0
        %1889 = vmatpush1.bf16.msra.mxu0 0
        %1890 = vmatprep.subr.bf16.mxu0 0
        %1891 = vmatpush1.bf16.msra.mxu0 0
        %1892 = vmatprep.subr.bf16.mxu0 0
        %1893 = vmatpush1.bf16.msra.mxu0 0
        %1894 = vmatprep.subr.bf16.mxu0 0
        %1895 = vmatpush1.bf16.msra.mxu0 0
        %1896 = vmatprep.subr.bf16.mxu0 0
        %1897 = vmatpush1.bf16.msra.mxu0 0
        %1898 = vmatprep.subr.bf16.mxu0 0
        %1899 = vmatpush1.bf16.msra.mxu0 0
        %1900 = vmatprep.subr.bf16.mxu0 0
        %1901 = vmatpush1.bf16.msra.mxu0 0
        %1902 = vmatprep.subr.bf16.mxu0 0
        %1903 = vmatpush1.bf16.msra.mxu0 0
        %1904 = vmatprep.subr.bf16.mxu0 0
        %1905 = vmatpush1.bf16.msra.mxu0 0
        %1906 = vmatprep.subr.bf16.mxu0 0
        %1907 = vmatpush1.bf16.msra.mxu0 0
        %1908 = vmatprep.subr.bf16.mxu0 0
        %1909 = vmatpush1.bf16.msra.mxu0 0
        %1910 = vmatprep.subr.bf16.mxu0 0
        %1911 = vmatpush1.bf16.msra.mxu0 0
        %1912 = vmatprep.subr.bf16.mxu0 0
        %1913 = vmatpush1.bf16.msra.mxu0 0
        %1914 = vmatprep.subr.bf16.mxu0 0
        %1915 = vmatpush1.bf16.msra.mxu0 0
        %1916 = vmatprep.mubr.bf16.mxu0 0
        %1917 = vmatmul.mubr.bf16.gmra.mrb[0].mxu0 %v1882
        %v1918 = vpop.f32.mrb[0].mxu0
        %v1919 = vadd.f32 %v1867, %v1918
        %v1920 = vpop.f32.mrb[0].mxu0
        %v1921 = vpop.f32.mrb[0].mxu0
        %v1922 = vpop.f32.mrb[0].mxu0
        %1923 = vdwg.mxu0
        %v1924 = vmul.f32 %v1919, 0.5
        %v1925 = vmul.f32 %v1919, 0.044715
        %v1926 = vmul.f32 %v1925, %v1919
        %v1927 = vmul.f32 %v1926, %v1919
        %v1928 = vadd.f32 %v1919, %v1927
        %v1929 = vmul.f32 %v1928, 0.7978846
        %v1930 = vtanh.pop %v1929
        %v1931 = vadd.f32 %v1930, 1.0
        %v1932 = vmul.f32 %v1924, %v1931
        %v1933 = vld [vmem:[%s1048] sm:$0xf]
        %v1934 = vld [vmem:[%s1048 + $0x4] sm:$0xf]
        %v1935 = vld [vmem:[%s1048 + $0x8] sm:$0xf]
        %v1936 = vld [vmem:[%s1048 + $0xc] sm:$0xf]
        %v1937 = vld [vmem:[%s1048 + $0x10] sm:$0xf]
        %v1938 = vld [vmem:[%s1048 + $0x14] sm:$0xf]
        %v1939 = vld [vmem:[%s1048 + $0x18] sm:$0xf]
        %v1940 = vld [vmem:[%s1048 + $0x1c] sm:$0xf]
        %v1941 = vld [vmem:[%s1051] sm:$0x1]
        %v1942 = vpack.c.bf16 %v1932, %v1932
        %v1944 = vlaneseq
        %v1945 = vshrl.u32 %v1944, 7
        %v1946 = vsub.s32 0, %v1945
        %v1947 = vrot.slane %v1941, %v1946
        %v1957 = vunpack.c.l.b16 %v1933
        %v1958 = vunpack.c.l.b16 %v1934
        %v1959 = vunpack.c.l.b16 %v1935
        %v1960 = vunpack.c.l.b16 %v1936
        %v1961 = vunpack.c.l.b16 %v1937
        %v1962 = vunpack.c.l.b16 %v1938
        %v1963 = vunpack.c.l.b16 %v1939
        %v1964 = vunpack.c.l.b16 %v1940
        %v1965 = vpack.c.b16 %v1958, %v1957
        %v1966 = vpack.c.b16 %v1960, %v1959
        %v1967 = vpack.c.b16 %v1962, %v1961
        %v1968 = vpack.c.b16 %v1964, %v1963
        %vm1973 = vcmask 523264
        %v1975 = vsel %vm1973, %v1942, 0
        %1977 = vmatprep.subr.bf16.mxu0 0
        %1978 = vmatpush1.bf16.msra.mxu0 %v1965
        %1979 = vmatprep.subr.bf16.mxu0 0
        %1980 = vmatpush1.bf16.msra.mxu0 %v1966
        %1981 = vmatprep.subr.bf16.mxu0 0
        %1982 = vmatpush1.bf16.msra.mxu0 %v1967
        %1983 = vmatprep.subr.bf16.mxu0 0
        %1984 = vmatpush1.bf16.msra.mxu0 %v1968
        %1985 = vmatprep.subr.bf16.mxu0 0
        %1986 = vmatpush1.bf16.msra.mxu0 0
        %1987 = vmatprep.subr.bf16.mxu0 0
        %1988 = vmatpush1.bf16.msra.mxu0 0
        %1989 = vmatprep.subr.bf16.mxu0 0
        %1990 = vmatpush1.bf16.msra.mxu0 0
        %1991 = vmatprep.subr.bf16.mxu0 0
        %1992 = vmatpush1.bf16.msra.mxu0 0
        %1993 = vmatprep.subr.bf16.mxu0 0
        %1994 = vmatpush1.bf16.msra.mxu0 0
        %1995 = vmatprep.subr.bf16.mxu0 0
        %1996 = vmatpush1.bf16.msra.mxu0 0
        %1997 = vmatprep.subr.bf16.mxu0 0
        %1998 = vmatpush1.bf16.msra.mxu0 0
        %1999 = vmatprep.subr.bf16.mxu0 0
        %2000 = vmatpush1.bf16.msra.mxu0 0
        %2001 = vmatprep.subr.bf16.mxu0 0
        %2002 = vmatpush1.bf16.msra.mxu0 0
        %2003 = vmatprep.subr.bf16.mxu0 0
        %2004 = vmatpush1.bf16.msra.mxu0 0
        %2005 = vmatprep.subr.bf16.mxu0 0
        %2006 = vmatpush1.bf16.msra.mxu0 0
        %2007 = vmatprep.subr.bf16.mxu0 0
        %2008 = vmatpush1.bf16.msra.mxu0 0
        %2009 = vmatprep.mubr.bf16.mxu0 0
        %2010 = vmatmul.mubr.bf16.gmra.mrb[0].mxu0 %v1975
        %v2011 = vpop.f32.mrb[0].mxu0
        %v2012 = vadd.f32 %v1947, %v2011
        %v2013 = vpop.f32.mrb[0].mxu0
        %v2014 = vpop.f32.mrb[0].mxu0
        %v2015 = vpop.f32.mrb[0].mxu0
        %2016 = vdwg.mxu0
        %v2017 = vadd.f32 %v2012, %v1856
        %v2018 = vld [vmem:[%s1054] sm:$0x1]
        %v2019 = vld [vmem:[%s1057] sm:$0x1]
        %v2020 = vsel %vm1124, %v2017, 0.0
        %2021 = vadd.xlane.f32.xlu0 %v2020
        %v2022 = vpop.xlane.xlu0 %2021
        %v2023 = vmul.f32 %v2022, %v1832
        %v2024 = vsub.f32 %v2017, %v2023
        %v2025 = vmul.f32 %v2024, %v2024
        %v2026 = vsel %vm1124, %v2025, 0.0
        %2027 = vadd.xlane.f32.xlu0 %v2026
        %v2028 = vpop.xlane.xlu0 %2027
        %v2029 = vmul.f32 %v2028, %v1832
        %v2030 = vadd.f32 %v2029, 1e-05
        %v2031 = vrsqrt.pop %v2030
        %v2032 = vmul.f32 %v2024, %v2031
        %v2034 = vlaneseq
        %v2035 = vshrl.u32 %v2034, 7
        %v2036 = vsub.s32 0, %v2035
        %v2037 = vrot.slane %v2018, %v2036
        %v2039 = vmul.f32 %v2032, %v2037
        %v2041 = vlaneseq
        %v2042 = vshrl.u32 %v2041, 7
        %v2043 = vsub.s32 0, %v2042
        %v2044 = vrot.slane %v2019, %v2043
        %v2046 = vadd.f32 %v2039, %v2044
        %v2047 = vpack.c.bf16 %v2046, %v2046
        %vm2048 = vcmask 257024
        %2049 = vst.msk [vmem:[#allocation2] sm:$0xf] %vm2048, %v2047
        %p2050 = scmp.eq.s32.totalorder %s47, 1
        // Predicated region
        $region137: #{my_bert_forward.1} parent=131 // pred_check
          %p2051 = pneg %p2050
        $region138: #{my_bert_forward.1} parent=131 // pred_check_branch
          %2053 = sbr.rel (%p2051) target = $region140
        $region139: #{my_bert_forward.1} parent=131 // pred_region
          %v2054 = vld [vmem:[%s16] sm:$0xf]
          %v2055 = vld [vmem:[%s16 + $0x4] sm:$0xf]
          %v2056 = vld [vmem:[%s16 + $0x8] sm:$0xf]
          %v2057 = vld [vmem:[%s16 + $0xc] sm:$0xf]
          %v2058 = vld [vmem:[%s17] sm:$0x1]
          %v2063 = vunpack.c.l.b16 %v2054
          %v2064 = vunpack.c.l.b16 %v2055
          %v2065 = vunpack.c.l.b16 %v2056
          %v2066 = vunpack.c.l.b16 %v2057
          %v2067 = vpack.c.b16 %v2064, %v2063
          %v2068 = vpack.c.b16 %v2066, %v2065
          %v2072 = vsel %vm1124, %v2047, 0
          %2074 = vmatprep.subr.bf16.mxu0 0
          %2075 = vmatpush1.bf16.msra.mxu0 %v2067
          %2076 = vmatprep.subr.bf16.mxu0 0
          %2077 = vmatpush1.bf16.msra.mxu0 %v2068
          %2078 = vmatprep.subr.bf16.mxu0 0
          %2079 = vmatpush1.bf16.msra.mxu0 0
          %2080 = vmatprep.subr.bf16.mxu0 0
          %2081 = vmatpush1.bf16.msra.mxu0 0
          %2082 = vmatprep.subr.bf16.mxu0 0
          %2083 = vmatpush1.bf16.msra.mxu0 0
          %2084 = vmatprep.subr.bf16.mxu0 0
          %2085 = vmatpush1.bf16.msra.mxu0 0
          %2086 = vmatprep.subr.bf16.mxu0 0
          %2087 = vmatpush1.bf16.msra.mxu0 0
          %2088 = vmatprep.subr.bf16.mxu0 0
          %2089 = vmatpush1.bf16.msra.mxu0 0
          %2090 = vmatprep.subr.bf16.mxu0 0
          %2091 = vmatpush1.bf16.msra.mxu0 0
          %2092 = vmatprep.subr.bf16.mxu0 0
          %2093 = vmatpush1.bf16.msra.mxu0 0
          %2094 = vmatprep.subr.bf16.mxu0 0
          %2095 = vmatpush1.bf16.msra.mxu0 0
          %2096 = vmatprep.subr.bf16.mxu0 0
          %2097 = vmatpush1.bf16.msra.mxu0 0
          %2098 = vmatprep.subr.bf16.mxu0 0
          %2099 = vmatpush1.bf16.msra.mxu0 0
          %2100 = vmatprep.subr.bf16.mxu0 0
          %2101 = vmatpush1.bf16.msra.mxu0 0
          %2102 = vmatprep.subr.bf16.mxu0 0
          %2103 = vmatpush1.bf16.msra.mxu0 0
          %2104 = vmatprep.subr.bf16.mxu0 0
          %2105 = vmatpush1.bf16.msra.mxu0 0
          %2106 = vmatprep.mubr.bf16.mxu0 0
          %2107 = vmatmul.mubr.bf16.gmra.mrb[0].mxu0 %v2072
          %v2108 = vpop.f32.mrb[0].mxu0
          %v2109 = vadd.f32 %v2058, %v2108
          %v2110 = vpop.f32.mrb[0].mxu0
          %v2111 = vpop.f32.mrb[0].mxu0
          %v2112 = vpop.f32.mrb[0].mxu0
          %2113 = vdwg.mxu0
          %v2114 = vtanh.pop %v2109
          %v2115 = vld [vmem:[%s18] sm:$0xff]
          %v2116 = vld [vmem:[%s18 + $0x8] sm:$0xff]
          %v2117 = vld [vmem:[%s18 + $0x10] sm:$0xff]
          %v2118 = vld [vmem:[%s18 + $0x18] sm:$0xff]
          %v2119 = vld [vmem:[%s19] sm:$0x3]
          %v2120 = vpack.c.bf16 %v2114, %v2114
          %v2125 = vunpack.c.l.b16 %v2115
          %v2126 = vunpack.c.h.b16 %v2115
          %v2127 = vunpack.c.l.b16 %v2116
          %v2128 = vunpack.c.h.b16 %v2116
          %v2129 = vunpack.c.l.b16 %v2117
          %v2130 = vunpack.c.h.b16 %v2117
          %v2131 = vunpack.c.l.b16 %v2118
          %v2132 = vunpack.c.h.b16 %v2118
          %v2133 = vpack.c.b16 %v2127, %v2125
          %v2134 = vpack.c.b16 %v2128, %v2126
          %v2135 = vpack.c.b16 %v2131, %v2129
          %v2136 = vpack.c.b16 %v2132, %v2130
          %v2142 = vlaneseq
          %v2143 = vshrl.u32 %v2142, 7
          %v2144 = vsub.s32 0, %v2143
          %v2145 = vrot.slane %v2119, %v2144
          %v2146 = vlaneseq
          %v2147 = vshrl.u32 %v2146, 7
          %v2148 = vsub.s32 1, %v2147
          %v2149 = vrot.slane %v2119, %v2148
          %v2153 = vsel %vm1124, %v2120, 0
          %2155 = vmatprep.subr.bf16.mxu0 %v2134
          %2156 = vmatpush1.bf16.msra.mxu0 %v2133
          %2157 = vmatprep.subr.bf16.mxu0 %v2136
          %2158 = vmatpush1.bf16.msra.mxu0 %v2135
          %2159 = vmatprep.subr.bf16.mxu0 0
          %2160 = vmatpush1.bf16.msra.mxu0 0
          %2161 = vmatprep.subr.bf16.mxu0 0
          %2162 = vmatpush1.bf16.msra.mxu0 0
          %2163 = vmatprep.subr.bf16.mxu0 0
          %2164 = vmatpush1.bf16.msra.mxu0 0
          %2165 = vmatprep.subr.bf16.mxu0 0
          %2166 = vmatpush1.bf16.msra.mxu0 0
          %2167 = vmatprep.subr.bf16.mxu0 0
          %2168 = vmatpush1.bf16.msra.mxu0 0
          %2169 = vmatprep.subr.bf16.mxu0 0
          %2170 = vmatpush1.bf16.msra.mxu0 0
          %2171 = vmatprep.subr.bf16.mxu0 0
          %2172 = vmatpush1.bf16.msra.mxu0 0
          %2173 = vmatprep.subr.bf16.mxu0 0
          %2174 = vmatpush1.bf16.msra.mxu0 0
          %2175 = vmatprep.subr.bf16.mxu0 0
          %2176 = vmatpush1.bf16.msra.mxu0 0
          %2177 = vmatprep.subr.bf16.mxu0 0
          %2178 = vmatpush1.bf16.msra.mxu0 0
          %2179 = vmatprep.subr.bf16.mxu0 0
          %2180 = vmatpush1.bf16.msra.mxu0 0
          %2181 = vmatprep.subr.bf16.mxu0 0
          %2182 = vmatpush1.bf16.msra.mxu0 0
          %2183 = vmatprep.subr.bf16.mxu0 0
          %2184 = vmatpush1.bf16.msra.mxu0 0
          %2185 = vmatprep.subr.bf16.mxu0 0
          %2186 = vmatpush1.bf16.msra.mxu0 0
          %2187 = vmatprep.mubr.bf16.mxu0 0
          %2188 = vmatmul.mubr.bf16.gmra.mrb[0].mxu0 %v2153
          %v2189 = vpop.f32.mrb[0].mxu0
          %v2190 = vadd.f32 %v2145, %v2189
          %v2191 = vpop.f32.mrb[0].mxu0
          %v2192 = vadd.f32 %v2149, %v2191
          %v2193 = vpop.f32.mrb[0].mxu0
          %v2194 = vpop.f32.mrb[0].mxu0
          %2195 = vdwg.mxu0
          %v2196 = vmax.f32 %v2190, 0.0
          %v2197 = vmax.f32 %v2192, 0.0
          %vm2198 = vcmp.ne.f32.partialorder %v2190, %v2190
          %vm2199 = vcmp.ne.f32.partialorder %v2192, %v2192
          %v2200 = vadd.f32 %v2190, 0.0
          %v2201 = vadd.f32 %v2192, 0.0
          %v2202 = vand.u32 2147483647, %v2190
          %v2203 = vand.u32 2147483647, %v2192
          %v2204 = vsub.f32 0.0, %v2202
          %v2205 = vsub.f32 0.0, %v2203
          %v2206 = vmul.f32 %v2204, 1.442695
          %v2207 = vpow.pop %v2206
          %v2208 = vmul.f32 %v2205, 1.442695
          %v2209 = vpow.pop %v2208
          %v2210 = vadd.f32 %v2207, 1.0
          %v2211 = vlog2.pop %v2210
          %v2212 = vmul.f32 %v2211, 0.6931472
          %v2213 = vmul.f32 -0.5, %v2207
          %v2214 = vadd.f32 %v2213, 1.0
          %v2215 = vmul.f32 %v2214, %v2207
          %v2216 = vand.u32 2147483647, %v2207
          %vm2217 = vcmp.lt.f32.partialorder %v2216, 0.0004427343
          %v2218 = vsel %vm2217, %v2215, %v2212
          %v2219 = vadd.f32 %v2209, 1.0
          %v2220 = vlog2.pop %v2219
          %v2221 = vmul.f32 %v2220, 0.6931472
          %v2222 = vmul.f32 -0.5, %v2209
          %v2223 = vadd.f32 %v2222, 1.0
          %v2224 = vmul.f32 %v2223, %v2209
          %v2225 = vand.u32 2147483647, %v2209
          %vm2226 = vcmp.lt.f32.partialorder %v2225, 0.0004427343
          %v2227 = vsel %vm2226, %v2224, %v2221
          %v2228 = vadd.f32 %v2196, %v2218
          %v2229 = vadd.f32 %v2197, %v2227
          %v2230 = vsel %vm2198, %v2200, %v2228
          %v2231 = vsel %vm2199, %v2201, %v2229
          %v2232 = vtanh.pop %v2230
          %v2233 = vtanh.pop %v2231
          %v2234 = vmul.f32 %v2190, %v2232
          %v2235 = vmul.f32 %v2192, %v2233
          %v2236 = vld [vmem:[%s20] sm:$0x3]
          %v2238 = vlaneseq
          %v2239 = vshrl.u32 %v2238, 7
          %v2240 = vsub.s32 0, %v2239
          %v2241 = vrot.slane %v2236, %v2240
          %v2242 = vlaneseq
          %v2243 = vshrl.u32 %v2242, 7
          %v2244 = vsub.s32 1, %v2243
          %v2245 = vrot.slane %v2236, %v2244
          %v2248 = vmul.f32 %v2234, %v2241
          %v2249 = vmul.f32 %v2235, %v2245
          %v2250 = vld [vmem:[%s21] sm:$0x3]
          %v2252 = vlaneseq
          %v2253 = vshrl.u32 %v2252, 7
          %v2254 = vsub.s32 0, %v2253
          %v2255 = vrot.slane %v2250, %v2254
          %v2256 = vlaneseq
          %v2257 = vshrl.u32 %v2256, 7
          %v2258 = vsub.s32 1, %v2257
          %v2259 = vrot.slane %v2250, %v2258
          %v2262 = vadd.f32 %v2248, %v2255
          %v2263 = vadd.f32 %v2249, %v2259
          %v2264 = vld [vmem:[%s22] sm:$0xf]
          %v2265 = vld [vmem:[%s22 + $0x4] sm:$0xf]
          %v2266 = vld [vmem:[%s22 + $0x8] sm:$0xf]
          %v2267 = vld [vmem:[%s22 + $0xc] sm:$0xf]
          %v2268 = vld [vmem:[%s22 + $0x10] sm:$0xf]
          %v2269 = vld [vmem:[%s22 + $0x14] sm:$0xf]
          %v2270 = vld [vmem:[%s22 + $0x18] sm:$0xf]
          %v2271 = vld [vmem:[%s22 + $0x1c] sm:$0xf]
          %v2272 = vld [vmem:[%s22 + $0x20] sm:$0xf]
          %v2273 = vld [vmem:[%s22 + $0x24] sm:$0xf]
          %v2274 = vld [vmem:[%s22 + $0x28] sm:$0xf]
          %v2275 = vld [vmem:[%s22 + $0x2c] sm:$0xf]
          %v2276 = vld [vmem:[%s22 + $0x30] sm:$0xf]
          %v2277 = vld [vmem:[%s22 + $0x34] sm:$0xf]
          %v2278 = vld [vmem:[%s22 + $0x38] sm:$0xf]
          %v2279 = vld [vmem:[%s22 + $0x3c] sm:$0xf]
          %v2280 = vld [vmem:[%s22 + $0x40] sm:$0xf]
          %v2281 = vld [vmem:[%s22 + $0x44] sm:$0xf]
          %v2282 = vld [vmem:[%s22 + $0x48] sm:$0xf]
          %v2283 = vld [vmem:[%s22 + $0x4c] sm:$0xf]
          %v2284 = vld [vmem:[%s22 + $0x50] sm:$0xf]
          %v2285 = vld [vmem:[%s22 + $0x54] sm:$0xf]
          %v2286 = vld [vmem:[%s22 + $0x58] sm:$0xf]
          %v2287 = vld [vmem:[%s22 + $0x5c] sm:$0xf]
          %v2288 = vld [vmem:[%s22 + $0x60] sm:$0xf]
          %v2289 = vld [vmem:[%s22 + $0x64] sm:$0xf]
          %v2290 = vld [vmem:[%s22 + $0x68] sm:$0xf]
          %v2291 = vld [vmem:[%s22 + $0x6c] sm:$0xf]
          %v2292 = vld [vmem:[%s22 + $0x70] sm:$0xf]
          %v2293 = vld [vmem:[%s22 + $0x74] sm:$0xf]
          %v2294 = vld [vmem:[%s22 + $0x78] sm:$0xf]
          %v2295 = vld [vmem:[%s22 + $0x7c] sm:$0xf]
          %v2296 = vld [vmem:[%s23] sm:$0x1]
          %v2297 = vpack.c.bf16 %v2262, %v2262
          %v2298 = vpack.c.bf16 %v2263, %v2263
          %v2331 = vunpack.c.l.b16 %v2264
          %v2332 = vunpack.c.l.b16 %v2265
          %v2333 = vunpack.c.l.b16 %v2266
          %v2334 = vunpack.c.l.b16 %v2267
          %v2335 = vunpack.c.l.b16 %v2268
          %v2336 = vunpack.c.l.b16 %v2269
          %v2337 = vunpack.c.l.b16 %v2270
          %v2338 = vunpack.c.l.b16 %v2271
          %v2339 = vunpack.c.l.b16 %v2272
          %v2340 = vunpack.c.l.b16 %v2273
          %v2341 = vunpack.c.l.b16 %v2274
          %v2342 = vunpack.c.l.b16 %v2275
          %v2343 = vunpack.c.l.b16 %v2276
          %v2344 = vunpack.c.l.b16 %v2277
          %v2345 = vunpack.c.l.b16 %v2278
          %v2346 = vunpack.c.l.b16 %v2279
          %v2347 = vunpack.c.l.b16 %v2280
          %v2348 = vunpack.c.l.b16 %v2281
          %v2349 = vunpack.c.l.b16 %v2282
          %v2350 = vunpack.c.l.b16 %v2283
          %v2351 = vunpack.c.l.b16 %v2284
          %v2352 = vunpack.c.l.b16 %v2285
          %v2353 = vunpack.c.l.b16 %v2286
          %v2354 = vunpack.c.l.b16 %v2287
          %v2355 = vunpack.c.l.b16 %v2288
          %v2356 = vunpack.c.l.b16 %v2289
          %v2357 = vunpack.c.l.b16 %v2290
          %v2358 = vunpack.c.l.b16 %v2291
          %v2359 = vunpack.c.l.b16 %v2292
          %v2360 = vunpack.c.l.b16 %v2293
          %v2361 = vunpack.c.l.b16 %v2294
          %v2362 = vunpack.c.l.b16 %v2295
          %v2363 = vpack.c.b16 %v2332, %v2331
          %v2364 = vpack.c.b16 %v2334, %v2333
          %v2365 = vpack.c.b16 %v2336, %v2335
          %v2366 = vpack.c.b16 %v2338, %v2337
          %v2367 = vpack.c.b16 %v2340, %v2339
          %v2368 = vpack.c.b16 %v2342, %v2341
          %v2369 = vpack.c.b16 %v2344, %v2343
          %v2370 = vpack.c.b16 %v2346, %v2345
          %v2371 = vpack.c.b16 %v2348, %v2347
          %v2372 = vpack.c.b16 %v2350, %v2349
          %v2373 = vpack.c.b16 %v2352, %v2351
          %v2374 = vpack.c.b16 %v2354, %v2353
          %v2375 = vpack.c.b16 %v2356, %v2355
          %v2376 = vpack.c.b16 %v2358, %v2357
          %v2377 = vpack.c.b16 %v2360, %v2359
          %v2378 = vpack.c.b16 %v2362, %v2361
          %2395 = vmatprep.subr.bf16.mxu0 0
          %2396 = vmatpush1.bf16.msra.mxu0 %v2363
          %2397 = vmatprep.subr.bf16.mxu0 0
          %2398 = vmatpush1.bf16.msra.mxu0 %v2364
          %2399 = vmatprep.subr.bf16.mxu0 0
          %2400 = vmatpush1.bf16.msra.mxu0 %v2365
          %2401 = vmatprep.subr.bf16.mxu0 0
          %2402 = vmatpush1.bf16.msra.mxu0 %v2366
          %2403 = vmatprep.subr.bf16.mxu0 0
          %2404 = vmatpush1.bf16.msra.mxu0 %v2367
          %2405 = vmatprep.subr.bf16.mxu0 0
          %2406 = vmatpush1.bf16.msra.mxu0 %v2368
          %2407 = vmatprep.subr.bf16.mxu0 0
          %2408 = vmatpush1.bf16.msra.mxu0 %v2369
          %2409 = vmatprep.subr.bf16.mxu0 0
          %2410 = vmatpush1.bf16.msra.mxu0 %v2370
          %2411 = vmatprep.subr.bf16.mxu0 0
          %2412 = vmatpush1.bf16.msra.mxu0 %v2371
          %2413 = vmatprep.subr.bf16.mxu0 0
          %2414 = vmatpush1.bf16.msra.mxu0 %v2372
          %2415 = vmatprep.subr.bf16.mxu0 0
          %2416 = vmatpush1.bf16.msra.mxu0 %v2373
          %2417 = vmatprep.subr.bf16.mxu0 0
          %2418 = vmatpush1.bf16.msra.mxu0 %v2374
          %2419 = vmatprep.subr.bf16.mxu0 0
          %2420 = vmatpush1.bf16.msra.mxu0 %v2375
          %2421 = vmatprep.subr.bf16.mxu0 0
          %2422 = vmatpush1.bf16.msra.mxu0 %v2376
          %2423 = vmatprep.subr.bf16.mxu0 0
          %2424 = vmatpush1.bf16.msra.mxu0 %v2377
          %2425 = vmatprep.subr.bf16.mxu0 0
          %2426 = vmatpush1.bf16.msra.mxu0 %v2378
          %2427 = vmatprep.mubr.bf16.mxu0 %v2298
          %2428 = vmatmul.mubr.bf16.gmra.mrb[0].mxu0 %v2297
          %v2429 = vpop.f32.mrb[0].mxu0
          %v2430 = vadd.f32 %v2296, %v2429
          %v2431 = vpop.f32.mrb[0].mxu0
          %v2432 = vpop.f32.mrb[0].mxu0
          %v2433 = vpop.f32.mrb[0].mxu0
          %2434 = vdwg.mxu0
          %v2435 = vmax.f32 %v2430, 0.0
          %vm2436 = vcmp.ne.f32.partialorder %v2430, %v2430
          %v2437 = vadd.f32 %v2430, 0.0
          %v2438 = vand.u32 2147483647, %v2430
          %v2439 = vsub.f32 0.0, %v2438
          %v2440 = vmul.f32 %v2439, 1.442695
          %v2441 = vpow.pop %v2440
          %v2442 = vadd.f32 %v2441, 1.0
          %v2443 = vlog2.pop %v2442
          %v2444 = vmul.f32 %v2443, 0.6931472
          %v2445 = vmul.f32 -0.5, %v2441
          %v2446 = vadd.f32 %v2445, 1.0
          %v2447 = vmul.f32 %v2446, %v2441
          %v2448 = vand.u32 2147483647, %v2441
          %vm2449 = vcmp.lt.f32.partialorder %v2448, 0.0004427343
          %v2450 = vsel %vm2449, %v2447, %v2444
          %v2451 = vadd.f32 %v2435, %v2450
          %v2452 = vsel %vm2436, %v2437, %v2451
          %v2453 = vtanh.pop %v2452
          %v2454 = vmul.f32 %v2430, %v2453
          %v2455 = vld [vmem:[%s24] sm:$0x1]
          %v2456 = vmul.f32 %v2454, %v2455
          %v2457 = vld [vmem:[%s25] sm:$0x1]
          %v2458 = vadd.f32 %v2456, %v2457
          %v2459 = vld [vmem:[%s26] sm:$0xf]
          %v2460 = vld [vmem:[%s26 + $0x4] sm:$0xf]
          %v2461 = vld [vmem:[%s26 + $0x8] sm:$0xf]
          %v2462 = vld [vmem:[%s26 + $0xc] sm:$0xf]
          %v2463 = vld [vmem:[%s26 + $0x10] sm:$0xf]
          %v2464 = vld [vmem:[%s26 + $0x14] sm:$0xf]
          %v2465 = vld [vmem:[%s26 + $0x18] sm:$0xf]
          %v2466 = vld [vmem:[%s26 + $0x1c] sm:$0xf]
          %v2467 = vld [vmem:[%s27] sm:$0x1]
          %v2468 = vpack.c.bf16 %v2458, %v2458
          %v2477 = vunpack.c.l.b16 %v2459
          %v2478 = vunpack.c.l.b16 %v2460
          %v2479 = vunpack.c.l.b16 %v2461
          %v2480 = vunpack.c.l.b16 %v2462
          %v2481 = vunpack.c.l.b16 %v2463
          %v2482 = vunpack.c.l.b16 %v2464
          %v2483 = vunpack.c.l.b16 %v2465
          %v2484 = vunpack.c.l.b16 %v2466
          %v2485 = vpack.c.b16 %v2478, %v2477
          %v2486 = vpack.c.b16 %v2480, %v2479
          %v2487 = vpack.c.b16 %v2482, %v2481
          %v2488 = vpack.c.b16 %v2484, %v2483
          %v2494 = vsel %vm1973, %v2468, 0
          %2496 = vmatprep.subr.bf16.mxu0 0
          %2497 = vmatpush1.bf16.msra.mxu0 %v2485
          %2498 = vmatprep.subr.bf16.mxu0 0
          %2499 = vmatpush1.bf16.msra.mxu0 %v2486
          %2500 = vmatprep.subr.bf16.mxu0 0
          %2501 = vmatpush1.bf16.msra.mxu0 %v2487
          %2502 = vmatprep.subr.bf16.mxu0 0
          %2503 = vmatpush1.bf16.msra.mxu0 %v2488
          %2504 = vmatprep.subr.bf16.mxu0 0
          %2505 = vmatpush1.bf16.msra.mxu0 0
          %2506 = vmatprep.subr.bf16.mxu0 0
          %2507 = vmatpush1.bf16.msra.mxu0 0
          %2508 = vmatprep.subr.bf16.mxu0 0
          %2509 = vmatpush1.bf16.msra.mxu0 0
          %2510 = vmatprep.subr.bf16.mxu0 0
          %2511 = vmatpush1.bf16.msra.mxu0 0
          %2512 = vmatprep.subr.bf16.mxu0 0
          %2513 = vmatpush1.bf16.msra.mxu0 0
          %2514 = vmatprep.subr.bf16.mxu0 0
          %2515 = vmatpush1.bf16.msra.mxu0 0
          %2516 = vmatprep.subr.bf16.mxu0 0
          %2517 = vmatpush1.bf16.msra.mxu0 0
          %2518 = vmatprep.subr.bf16.mxu0 0
          %2519 = vmatpush1.bf16.msra.mxu0 0
          %2520 = vmatprep.subr.bf16.mxu0 0
          %2521 = vmatpush1.bf16.msra.mxu0 0
          %2522 = vmatprep.subr.bf16.mxu0 0
          %2523 = vmatpush1.bf16.msra.mxu0 0
          %2524 = vmatprep.subr.bf16.mxu0 0
          %2525 = vmatpush1.bf16.msra.mxu0 0
          %2526 = vmatprep.subr.bf16.mxu0 0
          %2527 = vmatpush1.bf16.msra.mxu0 0
          %2528 = vmatprep.mubr.bf16.mxu0 0
          %2529 = vmatmul.mubr.bf16.gmra.mrb[0].mxu0 %v2494
          %v2530 = vpop.f32.mrb[0].mxu0
          %v2531 = vadd.f32 %v2467, %v2530
          %v2532 = vpop.f32.mrb[0].mxu0
          %v2533 = vpop.f32.mrb[0].mxu0
          %v2534 = vpop.f32.mrb[0].mxu0
          %2535 = vdwg.mxu0
          %2536 = vst [vmem:[%s1006] sm:$0x1] %v2531
        $region140: #{my_bert_forward.1} parent=131 // pred_fallthru
          _
        %s2537 = sand.u32 %s720, 1
        %s2538 = scalar_lea.sflag [#allocation4], %s2537
        %s2539 = sand.u32 %s720, 1
        %s2540 = scalar_lea.vmem [#allocation3], %s2539
        // Predicated region
        $region141: #{my_bert_forward.1} parent=131 // pred_check
          %p2541 = pneg %p730
        $region142: #{my_bert_forward.1} parent=131 // pred_check_branch
          %2543 = sbr.rel (%p2541) target = $region144
        $region143: #{my_bert_forward.1} parent=131 // pred_region
          %s2545 = ssub.s32 16, 16
          %2546 = vsyncadd %s2538, %s2545
          %s2547 = smul.addr %s46, 16
          %s2548 = scalar_lea.hbm %s28, %s2547
          %s2550 = sshll.u32 %s2540, 4
          %s2551 = int_to_ptr.vmem [resolvable:$true] %s2550
          %2553 = dma.vmem_to_hbm [thread:$0]  %s2551, 16, %s2548, %s2538
        $region144: #{my_bert_forward.1} parent=131 // pred_fallthru
          _
      $region132: #{my_bert_forward.1} parent=5 // pred_fallthru
        _
      %p2554 = scmp.le.s32.totalorder 2, %s37
      // Predicated region
      $region145: #{my_bert_forward.1} parent=5 // pred_check
        %p2555 = pneg %p2554
      $region146: #{my_bert_forward.1} parent=5 // pred_check_branch
        %2557 = sbr.rel (%p2555) target = $region148
      $region147: #{my_bert_forward.1} parent=5 // pred_region
        %s2558 = ssub.s32 %s37, 2
        // Predicated region
        $region149: #{my_bert_forward.1} parent=147 // pred_check
          %p2559 = pneg %p736
        $region150: #{my_bert_forward.1} parent=147 // pred_check_branch
          %2561 = sbr.rel (%p2559) target = $region152
        $region151: #{my_bert_forward.1} parent=147 // pred_region
          %s2562 = sand.u32 %s721, 1
          %s2563 = scalar_lea.sflag [#allocation4], %s2562
          %s2564 = sand.u32 %s721, 1
          %s2565 = scalar_lea.vmem [#allocation3], %s2564
          %2566 = dma.done %s2563, 16
        $region152: #{my_bert_forward.1} parent=147 // pred_fallthru
          _
      $region148: #{my_bert_forward.1} parent=5 // pred_fallthru
        _
    $region6: #{my_bert_forward.1} parent=1 // loop_footer
      %s41 = sadd.s32 1, %s37
    $region7: #{my_bert_forward.1} parent=1 // loop_footer_branch
      %36 = sbr.rel target = $region3
    $region8: #{my_bert_forward.1} parent=1 // loop_exit
      _
    %2567 = vsyncpa [#allocation4], 1
    %s2568 = scalar_lea.sflag [#allocation4], 1
    %2569 = vsyncpa %s2568, 1

</llo_original>
